<compile_context>
chip_gen: v7x
topology: tpu7x:2x2x1
jax: 0.10.0
libtpu: 0.0.40
codegen_flags: <defaults>
</compile_context>

<pallas_src>
import functools

import jax
import jax.numpy as jnp
from jax import lax
from jax.experimental import pallas as pl
from jax.experimental.pallas import tpu as pltpu


_HALO_BLK = 8   # 8-row (sublane aligned) blocks loaded above/below each H tile


# ------------------------------ fused kernel --------------------------------

def _lite_mla_kernel(x_up_ref, x_cur_ref, x_dn_ref, wqkv_ref, bqkv_ref,
                     wdw_ref, wgrp_ref, gmask_ref, wproj_ref, bproj_ref,
                     o_ref, kv_ref, q_ref, watt_ref, *,
                     H, W, TH, dim, heads, eps):
    p = pl.program_id(1)      # 0: accumulate kv/ksum + stash q, 1: emit output
    h = pl.program_id(2)      # H-tile index
    td = heads * dim
    td2 = 2 * td              # packed channels (direct + aggregated scale)
    C = 3 * td                # qkv channels
    n = TH * W                # tokens per tile
    Cin = x_cur_ref.shape[3]

    # ------------------ pass 0: convs + kv/ksum accumulation ------------------
    @pl.when(p == 0)
    def _pass0():
        @pl.when(h == 0)
        def _():
            kv_ref[...] = jnp.zeros_like(kv_ref)

        # qkv 1x1 conv (+ folded BN) over tile rows + 2-row halo on each side.
        top = x_up_ref[0, _HALO_BLK - 2:_HALO_BLK]          # (2, W, Cin)
        bot = x_dn_ref[0, 0:2]                              # (2, W, Cin)
        x_halo = jnp.concatenate([top, x_cur_ref[0], bot], axis=0)  # (TH+4,W,Cin)
        nh = (TH + 4) * W
        qkv = jnp.dot(x_halo.reshape(nh, Cin).astype(jnp.bfloat16), wqkv_ref[...],
                      preferred_element_type=jnp.float32) + bqkv_ref[...]
        qkv = qkv.reshape(TH + 4, W, C)
        # zero halo rows outside the image ('same' zero padding of the dw conv)
        row = lax.broadcasted_iota(jnp.int32, (TH + 4, 1, 1), 0) + (h * TH - 2)
        qkv = jnp.where(jnp.logical_and(row >= 0, row < H), qkv, 0.0)

        # 5x5 depthwise conv: single (TH, W, C) accumulator, dx outer / dy
        # inner row slices, W shifts as sublane rolls + edge masks.
        colw = lax.broadcasted_iota(jnp.int32, (1, W, 1), 1)
        w_dw = wdw_ref[...]                                 # (5, 5, C) f32
        dw = None
        for dx in range(5):
            a = qkv[0:TH] * w_dw[0, dx]
            for dy in range(1, 5):
                a = a + qkv[dy:dy + TH] * w_dw[dy, dx]
            ox = dx - 2
            if ox != 0:
                a = pltpu.roll(a, shift=(-ox) % W, axis=1)
                a = jnp.where(jnp.logical_and(colw + ox >= 0, colw + ox < W),
                              a, 0.0)
            dw = a if dw is None else dw + a
        dw = dw.reshape(n, C)

        # grouped 1x1 conv == block-diagonal matmul (weight built host-side)
        agg = jnp.dot(dw.astype(jnp.bfloat16), wgrp_ref[...],
                      preferred_element_type=jnp.float32)   # (n, C)
        qkv_c = qkv[2:TH + 2].reshape(n, C)                 # central rows

        # pack both scales along lanes: (n, 2*td)
        q_all = jnp.concatenate([jnp.maximum(qkv_c[:, 0:td], 0.0),
                                 jnp.maximum(agg[:, 0:td], 0.0)], axis=1)
        k_all = jnp.concatenate([jnp.maximum(qkv_c[:, td:2 * td], 0.0),
                                 jnp.maximum(agg[:, td:2 * td], 0.0)], axis=1)
        # extra ones column folds ksum into the same kv accumulation
        v_ext = jnp.concatenate([qkv_c[:, 2 * td:], agg[:, 2 * td:],
                                 jnp.ones((n, 1), jnp.float32)], axis=1)

        start = pl.multiple_of(h * n, 8)
        q_ref[pl.ds(start, n), :] = q_all
        kv_ref[...] += lax.dot_general(
            k_all.astype(jnp.bfloat16), v_ext.astype(jnp.bfloat16),
            (((0,), (0,)), ((), ())), preferred_element_type=jnp.float32)

    # ------------------ pass 1: num|den matmul, proj, store -------------------
    @pl.when(p == 1)
    def _pass1():
        @pl.when(h == 0)
        def _():
            g = gmask_ref[...]                              # (2td, 2td) f32
            kv_m = kv_ref[:, 0:td2] * g                     # masked kv
            den_m = kv_ref[:, td2:td2 + 1] * g              # diag(ksum) * mask
            watt_ref[...] = jnp.concatenate([kv_m, den_m],
                                            axis=1).astype(jnp.bfloat16)

        start = pl.multiple_of(h * n, 8)
        q_all = q_ref[pl.ds(start, n), :]
        nd = jnp.dot(q_all.astype(jnp.bfloat16), watt_ref[...],
                     preferred_element_type=jnp.float32)    # (n, 4*td)
        att = nd[:, 0:td2] * pl.reciprocal(nd[:, td2:2 * td2] + eps, approx=True)
        out = jnp.dot(att.astype(jnp.bfloat16), wproj_ref[...],
                      preferred_element_type=jnp.float32) + bproj_ref[...]
        o_ref[0] = out.T                                    # (Cout, TH*W) lane-dense


def lite_mla_forward(x_nchw, wp, *, dim, heads, eps=1e-15, tile_h=None):
    B, Cin, H, W = x_nchw.shape
    td = heads * dim
    C = 3 * td
    Cout = wp["w_proj"].shape[1]

    assert H % _HALO_BLK == 0, "H must be a multiple of 8"
    if tile_h is None:
        tile_h = 8 if H <= 16 else next(t for t in (32, 16, 8) if H % t == 0)
    TH = tile_h
    assert H % TH == 0 and TH % _HALO_BLK == 0
    NT = H // TH
    nhb = TH // _HALO_BLK
    n = TH * W

    x_nhwc = jnp.transpose(x_nchw, (0, 2, 3, 1))            # channels on lanes

    def hsel(p, h):
        return h * (1 - p)      # during pass 1 keep x DMAs parked on tile 0

    in_specs = [
        pl.BlockSpec((1, _HALO_BLK, W, Cin),
                     lambda b, p, h: (b, jnp.maximum(hsel(p, h) * nhb - 1, 0),
                                      0, 0)),
        pl.BlockSpec((1, TH, W, Cin),
                     lambda b, p, h: (b, hsel(p, h), 0, 0)),
        pl.BlockSpec((1, _HALO_BLK, W, Cin),
                     lambda b, p, h: (b, jnp.minimum(hsel(p, h) * nhb + nhb,
                                                     H // _HALO_BLK - 1), 0, 0)),
        pl.BlockSpec(wp["w_qkv"].shape, lambda b, p, h: (0, 0)),
        pl.BlockSpec(wp["b_qkv"].shape, lambda b, p, h: (0, 0)),
        pl.BlockSpec(wp["w_dw"].shape, lambda b, p, h: (0, 0, 0)),
        pl.BlockSpec(wp["w_grp"].shape, lambda b, p, h: (0, 0)),
        pl.BlockSpec(wp["gmask"].shape, lambda b, p, h: (0, 0)),
        pl.BlockSpec(wp["w_proj"].shape, lambda b, p, h: (0, 0)),
        pl.BlockSpec(wp["b_proj"].shape, lambda b, p, h: (0, 0)),
    ]
    # h*p: during pass 0 the out window stays parked on block 0 (never written
    # back until pass 1 fills it); pass 1 writes each H-tile block exactly once.
    out_specs = pl.BlockSpec((1, Cout, n), lambda b, p, h: (b, 0, h * p))

    # explicit VMEM budget: q stash + pass-0 intermediates + weights/headroom
    vmem_est = (H * W * 2 * td * 4
                + 8 * (TH + 4) * W * C * 4
                + 4 * n * max(C, 128) * 4
                + 4 * (1 << 20))
    vmem_limit = int(min(max(vmem_est, 16 << 20), 100 << 20))

    kern = functools.partial(_lite_mla_kernel, H=H, W=W, TH=TH,
                             dim=dim, heads=heads, eps=eps)
    out_flat = pl.pallas_call(
        kern,
        out_shape=jax.ShapeDtypeStruct((B, Cout, H * W), jnp.float32),
        grid=(B, 2, NT),
        in_specs=in_specs,
        out_specs=out_specs,
        scratch_shapes=[
            pltpu.VMEM((2 * td, 2 * td + 1), jnp.float32),   # [kv | ksum] accum
            pltpu.VMEM((H * W, 2 * td), jnp.float32),        # q stash for pass 1
            pltpu.VMEM((2 * td, 4 * td), jnp.bfloat16),      # [kv_masked | den] weight
        ],
        compiler_params=pltpu.CompilerParams(
            dimension_semantics=("parallel", "arbitrary", "arbitrary"),
            vmem_limit_bytes=vmem_limit),
    )(x_nhwc, x_nhwc, x_nhwc, wp["w_qkv"], wp["b_qkv"], wp["w_dw"],
      wp["w_grp"], wp["gmask"], wp["w_proj"], wp["b_proj"])

    return out_flat.reshape(B, Cout, H, W)


# --------------------------- parameter preparation --------------------------

def fold_bn(w_oi, gamma, beta, mean, var, eps=1e-5):
    """Fold eval-mode BatchNorm2d into a bias-free 1x1 conv (OI layout)."""
    s = gamma / jnp.sqrt(var + eps)
    w_eff = (w_oi * s[:, None]).T          # (Cin, Cout)
    b_eff = beta - mean * s                # (Cout,)
    return w_eff, b_eff


def prepare_params(p, *, dim, heads):
    """Host-side, once: fold BN, permute qkv channels to [Q|K|V] sections,
    build block-diagonal grouped weight + head mask, cast matmul weights."""
    td = heads * dim
    c_qkv = 3 * td
    # new channel (section s, head g, d)  <-  old channel g*3*dim + s*dim + d
    perm = jnp.asarray(
        [g * 3 * dim + s * dim + d
         for s in range(3) for g in range(heads) for d in range(dim)],
        dtype=jnp.int32)

    w_qkv, b_qkv = fold_bn(p["w_qkv"], *p["bn_qkv"])
    w_qkv = w_qkv[:, perm]
    b_qkv = b_qkv[perm]

    w_dw = jnp.transpose(p["w_dw"][:, 0], (1, 2, 0))[:, :, perm]   # (5,5,C)

    # grouped 1x1 conv (groups = 3*heads, group size = dim) -> block-diagonal
    w_g = p["w_pw_g"][perm, :]
    blocks = [w_g[g * dim:(g + 1) * dim, :].T for g in range(3 * heads)]
    w_grp = jax.scipy.linalg.block_diag(*blocks)                   # (C, C)

    w_proj, b_proj = fold_bn(p["w_proj"], *p["bn_proj"])

    # block-diagonal head mask over 2*heads packed heads (both scales)
    hid = jnp.arange(2 * td) // dim
    gmask = (hid[:, None] == hid[None, :]).astype(jnp.float32)

    return {
        "w_qkv": w_qkv.astype(jnp.bfloat16),
        "b_qkv": b_qkv.reshape(1, c_qkv).astype(jnp.float32),
        "w_dw": w_dw.astype(jnp.float32),
        "w_grp": w_grp.astype(jnp.bfloat16),
        "gmask": gmask,
        "w_proj": w_proj.astype(jnp.bfloat16),
        "b_proj": b_proj.reshape(1, -1).astype(jnp.float32),
    }


def init_params(key, in_channels, out_channels, dim, heads, scales=(5,)):
    total_dim = heads * dim
    c_qkv = 3 * total_dim
    ks = jax.random.split(key, 12)
    p = {}
    p["w_qkv"] = 0.1 * jax.random.normal(ks[0], (c_qkv, in_channels), jnp.float32)
    p["bn_qkv"] = (1.0 + 0.1 * jax.random.normal(ks[1], (c_qkv,), jnp.float32),
                   0.1 * jax.random.normal(ks[2], (c_qkv,), jnp.float32),
                   0.1 * jax.random.normal(ks[3], (c_qkv,), jnp.float32),
                   1.0 + 0.1 * jax.random.uniform(ks[4], (c_qkv,), jnp.float32))
    p["w_dw"] = 0.1 * jax.random.normal(ks[5], (c_qkv, 1, 5, 5), jnp.float32)
    p["w_pw_g"] = 0.1 * jax.random.normal(ks[6], (c_qkv, dim), jnp.float32)
    p["w_proj"] = 0.1 * jax.random.normal(
        ks[7], (out_channels, total_dim * (1 + len(scales))), jnp.float32)
    p["bn_proj"] = (1.0 + 0.1 * jax.random.normal(ks[8], (out_channels,), jnp.float32),
                    0.1 * jax.random.normal(ks[9], (out_channels,), jnp.float32),
                    0.1 * jax.random.normal(ks[10], (out_channels,), jnp.float32),
                    1.0 + 0.1 * jax.random.uniform(ks[11], (out_channels,), jnp.float32))
    return p


# --------------------------- pure-JAX reference -----------------------------

def ref_forward(x, p, *, dim, heads, eps=1e-15):
    def conv1x1(x, w_oi, groups=1):
        return lax.conv_general_dilated(
            x, w_oi[:, :, None, None], (1, 1), "VALID",
            dimension_numbers=("NCHW", "OIHW", "NCHW"),
            feature_group_count=groups, precision=lax.Precision.HIGHEST)

    def bn(x, gamma, beta, mean, var, e=1e-5):
        s = gamma / jnp.sqrt(var + e)
        return x * s[None, :, None, None] + (beta - mean * s)[None, :, None, None]

    c_qkv = 3 * heads * dim
    qkv = bn(conv1x1(x, p["w_qkv"]), *p["bn_qkv"])
    dw = lax.conv_general_dilated(
        qkv, p["w_dw"], (1, 1), ((2, 2), (2, 2)),
        dimension_numbers=("NCHW", "OIHW", "NCHW"),
        feature_group_count=c_qkv, precision=lax.Precision.HIGHEST)
    agg = conv1x1(dw, p["w_pw_g"], groups=3 * heads)
    ms = jnp.concatenate([qkv, agg], axis=1)
    B, Ct, H, W = ms.shape
    qkv_r = ms.reshape(B, -1, 3 * dim, H * W).transpose(0, 1, 3, 2)
    q = jnp.maximum(qkv_r[..., :dim], 0.0)
    k = jnp.maximum(qkv_r[..., dim:2 * dim], 0.0)
    v = qkv_r[..., 2 * dim:]
    v1 = jnp.concatenate([v, jnp.ones(v.shape[:-1] + (1,), v.dtype)], axis=-1)
    kv = jnp.einsum("bgnd,bgne->bgde", k, v1, precision=lax.Precision.HIGHEST)
    out = jnp.einsum("bgnd,bgde->bgne", q, kv, precision=lax.Precision.HIGHEST)
    out = out[..., :-1] / (out[..., -1:] + eps)
    out = out.transpose(0, 1, 3, 2).reshape(B, -1, H, W)
    return bn(conv1x1(out, p["w_proj"]), *p["bn_proj"])


# ---------------------------------- main -------------------------------------

if __name__ == "__main__":
    B, Cin, H, W = 2, 32, 16, 16
    dim = 8
    heads = Cin // dim        # heads = in_channels // dim * heads_ratio = 4
    Cout = 32

    key = jax.random.PRNGKey(0)
    kx, kp = jax.random.split(key)
    x = jax.random.normal(kx, (B, Cin, H, W), jnp.float32)
    params = init_params(kp, Cin, Cout, dim, heads)

    wp = prepare_params(params, dim=dim, heads=heads)   # host-side, once
    fwd = jax.jit(functools.partial(lite_mla_forward, dim=dim, heads=heads,
                                    tile_h=8))          # 2 H-tiles at this size
    out = jax.block_until_ready(fwd(x, wp))

    ref = ref_forward(x, params, dim=dim, heads=heads)
    assert out.shape == (B, Cout, H, W), out.shape
    err = float(jnp.max(jnp.abs(out - ref)))
    assert err < 3e-2, f"max abs err {err}"
    print("KERNEL_OK")
</pallas_src>

<mosaic_0001>
module attributes {stable_mosaic.version = 11 : i64} {
  func.func @_lite_mla_kernel(%arg0: i32, %arg1: i32, %arg2: i32, %arg3: memref<1x8x16x32xf32, #tpu.memory_space<vmem>>, %arg4: memref<1x8x16x32xf32, #tpu.memory_space<vmem>>, %arg5: memref<1x8x16x32xf32, #tpu.memory_space<vmem>>, %arg6: memref<32x96xbf16, #tpu.memory_space<vmem>>, %arg7: memref<1x96xf32, #tpu.memory_space<vmem>>, %arg8: memref<5x5x96xf32, #tpu.memory_space<vmem>>, %arg9: memref<96x96xbf16, #tpu.memory_space<vmem>>, %arg10: memref<64x64xf32, #tpu.memory_space<vmem>>, %arg11: memref<64x32xbf16, #tpu.memory_space<vmem>>, %arg12: memref<1x32xf32, #tpu.memory_space<vmem>>, %arg13: memref<1x32x128xf32, #tpu.memory_space<vmem>>, %arg14: memref<64x65xf32, #tpu.memory_space<vmem>>, %arg15: memref<256x64xf32, #tpu.memory_space<vmem>>, %arg16: memref<64x128xbf16, #tpu.memory_space<vmem>>) attributes {dimension_semantics = [#tpu.dimension_semantics<parallel>, #tpu.dimension_semantics<arbitrary>, #tpu.dimension_semantics<arbitrary>], iteration_bounds = array<i64: 2, 2, 2>, scalar_prefetch = 0 : i64, scratch_operands = 3 : i64, tpu.core_type = #tpu.core_type<tc>, window_params = [{transform_indices = @transform_0, window_bounds = array<i64: 1, 8, 16, 32>}, {transform_indices = @transform_1, window_bounds = array<i64: 1, 8, 16, 32>}, {transform_indices = @transform_2, window_bounds = array<i64: 1, 8, 16, 32>}, {pipeline_mode = #tpu.pipeline_mode<synchronous>, transform_indices = @transform_3, window_bounds = array<i64: 32, 96>}, {pipeline_mode = #tpu.pipeline_mode<synchronous>, transform_indices = @transform_4, window_bounds = array<i64: 1, 96>}, {pipeline_mode = #tpu.pipeline_mode<synchronous>, transform_indices = @transform_5, window_bounds = array<i64: 5, 5, 96>}, {pipeline_mode = #tpu.pipeline_mode<synchronous>, transform_indices = @transform_6, window_bounds = array<i64: 96, 96>}, {pipeline_mode = #tpu.pipeline_mode<synchronous>, transform_indices = @transform_7, window_bounds = array<i64: 64, 64>}, {pipeline_mode = #tpu.pipeline_mode<synchronous>, transform_indices = @transform_8, window_bounds = array<i64: 64, 32>}, {pipeline_mode = #tpu.pipeline_mode<synchronous>, transform_indices = @transform_9, window_bounds = array<i64: 1, 32>}, {transform_indices = @transform_10, window_bounds = array<i64: 1, 32, 128>}]} {
    %c0_i32 = arith.constant 0 : i32
    %0 = arith.cmpi eq, %arg1, %c0_i32 : i32
    %1 = arith.extui %0 : i1 to i32
    %c0_i32_0 = arith.constant 0 : i32
    %2 = arith.cmpi ne, %1, %c0_i32_0 : i32
    scf.if %2 {
      %c0_i32_2 = arith.constant 0 : i32
      %6 = arith.cmpi eq, %arg2, %c0_i32_2 : i32
      %7 = arith.extui %6 : i1 to i32
      %c0_i32_3 = arith.constant 0 : i32
      %8 = arith.cmpi ne, %7, %c0_i32_3 : i32
      scf.if %8 {
        %cst_57 = arith.constant 0.000000e+00 : f32
        %304 = vector.broadcast %cst_57 : f32 to vector<64x65xf32>
        %c0_58 = arith.constant 0 : index
        %c0_59 = arith.constant 0 : index
        %305 = vector.load %arg14[%c0_58, %c0_59] : memref<64x65xf32, #tpu.memory_space<vmem>>, vector<64x65xf32>
        tpu.vector_store %arg14[%c0_58, %c0_59], %304 {strides = array<i32>} : memref<64x65xf32, #tpu.memory_space<vmem>>, vector<64x65xf32>,
      } else {
      }
      %c0 = arith.constant 0 : index
      %c6 = arith.constant 6 : index
      %c0_4 = arith.constant 0 : index
      %c0_5 = arith.constant 0 : index
      %9 = vector.load %arg3[%c0, %c6, %c0_4, %c0_5] : memref<1x8x16x32xf32, #tpu.memory_space<vmem>>, vector<1x2x16x32xf32>
      %10 = vector.shape_cast %9 : vector<1x2x16x32xf32> to vector<2x16x32xf32>
      %c0_6 = arith.constant 0 : index
      %c0_7 = arith.constant 0 : index
      %c0_8 = arith.constant 0 : index
      %c0_9 = arith.constant 0 : index
      %11 = vector.load %arg5[%c0_6, %c0_7, %c0_8, %c0_9] : memref<1x8x16x32xf32, #tpu.memory_space<vmem>>, vector<1x2x16x32xf32>
      %12 = vector.shape_cast %11 : vector<1x2x16x32xf32> to vector<2x16x32xf32>
      %c0_10 = arith.constant 0 : index
      %c0_11 = arith.constant 0 : index
      %c0_12 = arith.constant 0 : index
      %c0_13 = arith.constant 0 : index
      %13 = vector.load %arg4[%c0_10, %c0_11, %c0_12, %c0_13] : memref<1x8x16x32xf32, #tpu.memory_space<vmem>>, vector<1x8x16x32xf32>
      %14 = vector.shape_cast %13 : vector<1x8x16x32xf32> to vector<8x16x32xf32>
      %15 = tpu.concatenate %10, %14, %12 in 0 : vector<2x16x32xf32>, vector<8x16x32xf32>, vector<2x16x32xf32> -> vector<12x16x32xf32>
      %16 = vector.shape_cast %15 : vector<12x16x32xf32> to vector<192x32xf32>
      %17 = arith.truncf %16 : vector<192x32xf32> to vector<192x32xbf16>
      %c0_14 = arith.constant 0 : index
      %c0_15 = arith.constant 0 : index
      %18 = vector.load %arg6[%c0_14, %c0_15] : memref<32x96xbf16, #tpu.memory_space<vmem>>, vector<32x96xbf16>
      %cst = arith.constant dense<0.000000e+00> : vector<192x96xf32>
      %19 = tpu.matmul %17, %18, %cst {dimension_numbers = #tpu.dot_dimension_numbers<[1], [0], [0], [1], [0, 0, 1, 1], [], []>} : vector<192x32xbf16>, vector<32x96xbf16>, vector<192x96xf32> -> vector<192x96xf32>
      %c0_16 = arith.constant 0 : index
      %c0_17 = arith.constant 0 : index
      %20 = vector.load %arg7[%c0_16, %c0_17] : memref<1x96xf32, #tpu.memory_space<vmem>>, vector<1x96xf32>
      %21 = vector.broadcast %20 : vector<1x96xf32> to vector<192x96xf32>
      %22 = arith.addf %19, %21 : vector<192x96xf32>
      %23 = vector.shape_cast %22 : vector<192x96xf32> to vector<12x16x96xf32>
      %24 = tpu.iota {dimensions = array<i32: 0>} : vector<12x1x1xi32>
      %c8_i32 = arith.constant 8 : i32
      %25 = arith.muli %arg2, %c8_i32 : i32
      %c2_i32 = arith.constant 2 : i32
      %26 = arith.subi %25, %c2_i32 : i32
      %27 = vector.broadcast %26 : i32 to vector<12x1x1xi32>
      %28 = arith.addi %24, %27 : vector<12x1x1xi32>
      %c0_i32_18 = arith.constant 0 : i32
      %29 = vector.broadcast %c0_i32_18 : i32 to vector<12x1x1xi32>
      %30 = arith.cmpi sge, %28, %29 : vector<12x1x1xi32>
      %c16_i32 = arith.constant 16 : i32
      %31 = vector.broadcast %c16_i32 : i32 to vector<12x1x1xi32>
      %32 = arith.cmpi slt, %28, %31 : vector<12x1x1xi32>
      %33 = arith.andi %30, %32 : vector<12x1x1xi1>
      %cst_19 = arith.constant 0.000000e+00 : f32
      %34 = vector.shape_cast %33 : vector<12x1x1xi1> to vector<12x1x1xi1>
      %35 = vector.broadcast %34 : vector<12x1x1xi1> to vector<12x16x96xi1>
      %36 = vector.broadcast %cst_19 : f32 to vector<12x16x96xf32>
      %37 = arith.select %35, %23, %36 : vector<12x16x96xi1>, vector<12x16x96xf32>
      %38 = tpu.iota {dimensions = array<i32: 1>} : vector<1x16x1xi32>
      %c0_20 = arith.constant 0 : index
      %c0_21 = arith.constant 0 : index
      %c0_22 = arith.constant 0 : index
      %39 = vector.load %arg8[%c0_20, %c0_21, %c0_22] : memref<5x5x96xf32, #tpu.memory_space<vmem>>, vector<5x5x96xf32>
      %40 = vector.extract_strided_slice %37 {offsets = [0, 0, 0], sizes = [8, 16, 96], strides = [1, 1, 1]} : vector<12x16x96xf32> to vector<8x16x96xf32>
      %41 = vector.extract_strided_slice %39 {offsets = [0, 0, 0], sizes = [1, 1, 96], strides = [1, 1, 1]} : vector<5x5x96xf32> to vector<1x1x96xf32>
      %42 = vector.shape_cast %41 : vector<1x1x96xf32> to vector<96xf32>
      %43 = vector.shape_cast %42 : vector<96xf32> to vector<1x1x96xf32>
      %44 = vector.broadcast %43 : vector<1x1x96xf32> to vector<8x16x96xf32>
      %45 = arith.mulf %40, %44 : vector<8x16x96xf32>
      %46 = vector.extract_strided_slice %37 {offsets = [1, 0, 0], sizes = [8, 16, 96], strides = [1, 1, 1]} : vector<12x16x96xf32> to vector<8x16x96xf32>
      %47 = vector.extract_strided_slice %39 {offsets = [1, 0, 0], sizes = [1, 1, 96], strides = [1, 1, 1]} : vector<5x5x96xf32> to vector<1x1x96xf32>
      %48 = vector.shape_cast %47 : vector<1x1x96xf32> to vector<96xf32>
      %49 = vector.shape_cast %48 : vector<96xf32> to vector<1x1x96xf32>
      %50 = vector.broadcast %49 : vector<1x1x96xf32> to vector<8x16x96xf32>
      %51 = arith.mulf %46, %50 : vector<8x16x96xf32>
      %52 = arith.addf %45, %51 : vector<8x16x96xf32>
      %53 = vector.extract_strided_slice %37 {offsets = [2, 0, 0], sizes = [8, 16, 96], strides = [1, 1, 1]} : vector<12x16x96xf32> to vector<8x16x96xf32>
      %54 = vector.extract_strided_slice %39 {offsets = [2, 0, 0], sizes = [1, 1, 96], strides = [1, 1, 1]} : vector<5x5x96xf32> to vector<1x1x96xf32>
      %55 = vector.shape_cast %54 : vector<1x1x96xf32> to vector<96xf32>
      %56 = vector.shape_cast %55 : vector<96xf32> to vector<1x1x96xf32>
      %57 = vector.broadcast %56 : vector<1x1x96xf32> to vector<8x16x96xf32>
      %58 = arith.mulf %53, %57 : vector<8x16x96xf32>
      %59 = arith.addf %52, %58 : vector<8x16x96xf32>
      %60 = vector.extract_strided_slice %37 {offsets = [3, 0, 0], sizes = [8, 16, 96], strides = [1, 1, 1]} : vector<12x16x96xf32> to vector<8x16x96xf32>
      %61 = vector.extract_strided_slice %39 {offsets = [3, 0, 0], sizes = [1, 1, 96], strides = [1, 1, 1]} : vector<5x5x96xf32> to vector<1x1x96xf32>
      %62 = vector.shape_cast %61 : vector<1x1x96xf32> to vector<96xf32>
      %63 = vector.shape_cast %62 : vector<96xf32> to vector<1x1x96xf32>
      %64 = vector.broadcast %63 : vector<1x1x96xf32> to vector<8x16x96xf32>
      %65 = arith.mulf %60, %64 : vector<8x16x96xf32>
      %66 = arith.addf %59, %65 : vector<8x16x96xf32>
      %67 = vector.extract_strided_slice %37 {offsets = [4, 0, 0], sizes = [8, 16, 96], strides = [1, 1, 1]} : vector<12x16x96xf32> to vector<8x16x96xf32>
      %68 = vector.extract_strided_slice %39 {offsets = [4, 0, 0], sizes = [1, 1, 96], strides = [1, 1, 1]} : vector<5x5x96xf32> to vector<1x1x96xf32>
      %69 = vector.shape_cast %68 : vector<1x1x96xf32> to vector<96xf32>
      %70 = vector.shape_cast %69 : vector<96xf32> to vector<1x1x96xf32>
      %71 = vector.broadcast %70 : vector<1x1x96xf32> to vector<8x16x96xf32>
      %72 = arith.mulf %67, %71 : vector<8x16x96xf32>
      %73 = arith.addf %66, %72 : vector<8x16x96xf32>
      %c2_i32_23 = arith.constant 2 : i32
      %74 = tpu.dynamic_rotate %73 by %c2_i32_23 dim 1 : vector<8x16x96xf32>, i32 -> vector<8x16x96xf32>
      %c-2_i32 = arith.constant -2 : i32
      %75 = vector.broadcast %c-2_i32 : i32 to vector<1x16x1xi32>
      %76 = arith.addi %38, %75 : vector<1x16x1xi32>
      %c0_i32_24 = arith.constant 0 : i32
      %77 = vector.broadcast %c0_i32_24 : i32 to vector<1x16x1xi32>
      %78 = arith.cmpi sge, %76, %77 : vector<1x16x1xi32>
      %c-2_i32_25 = arith.constant -2 : i32
      %79 = vector.broadcast %c-2_i32_25 : i32 to vector<1x16x1xi32>
      %80 = arith.addi %38, %79 : vector<1x16x1xi32>
      %c16_i32_26 = arith.constant 16 : i32
      %81 = vector.broadcast %c16_i32_26 : i32 to vector<1x16x1xi32>
      %82 = arith.cmpi slt, %80, %81 : vector<1x16x1xi32>
      %83 = arith.andi %78, %82 : vector<1x16x1xi1>
      %cst_27 = arith.constant 0.000000e+00 : f32
      %84 = vector.shape_cast %83 : vector<1x16x1xi1> to vector<1x16x1xi1>
      %85 = vector.broadcast %84 : vector<1x16x1xi1> to vector<8x16x96xi1>
      %86 = vector.broadcast %cst_27 : f32 to vector<8x16x96xf32>
      %87 = arith.select %85, %74, %86 : vector<8x16x96xi1>, vector<8x16x96xf32>
      %88 = vector.extract_strided_slice %37 {offsets = [0, 0, 0], sizes = [8, 16, 96], strides = [1, 1, 1]} : vector<12x16x96xf32> to vector<8x16x96xf32>
      %89 = vector.extract_strided_slice %39 {offsets = [0, 1, 0], sizes = [1, 1, 96], strides = [1, 1, 1]} : vector<5x5x96xf32> to vector<1x1x96xf32>
      %90 = vector.shape_cast %89 : vector<1x1x96xf32> to vector<96xf32>
      %91 = vector.shape_cast %90 : vector<96xf32> to vector<1x1x96xf32>
      %92 = vector.broadcast %91 : vector<1x1x96xf32> to vector<8x16x96xf32>
      %93 = arith.mulf %88, %92 : vector<8x16x96xf32>
      %94 = vector.extract_strided_slice %37 {offsets = [1, 0, 0], sizes = [8, 16, 96], strides = [1, 1, 1]} : vector<12x16x96xf32> to vector<8x16x96xf32>
      %95 = vector.extract_strided_slice %39 {offsets = [1, 1, 0], sizes = [1, 1, 96], strides = [1, 1, 1]} : vector<5x5x96xf32> to vector<1x1x96xf32>
      %96 = vector.shape_cast %95 : vector<1x1x96xf32> to vector<96xf32>
      %97 = vector.shape_cast %96 : vector<96xf32> to vector<1x1x96xf32>
      %98 = vector.broadcast %97 : vector<1x1x96xf32> to vector<8x16x96xf32>
      %99 = arith.mulf %94, %98 : vector<8x16x96xf32>
      %100 = arith.addf %93, %99 : vector<8x16x96xf32>
      %101 = vector.extract_strided_slice %37 {offsets = [2, 0, 0], sizes = [8, 16, 96], strides = [1, 1, 1]} : vector<12x16x96xf32> to vector<8x16x96xf32>
      %102 = vector.extract_strided_slice %39 {offsets = [2, 1, 0], sizes = [1, 1, 96], strides = [1, 1, 1]} : vector<5x5x96xf32> to vector<1x1x96xf32>
      %103 = vector.shape_cast %102 : vector<1x1x96xf32> to vector<96xf32>
      %104 = vector.shape_cast %103 : vector<96xf32> to vector<1x1x96xf32>
      %105 = vector.broadcast %104 : vector<1x1x96xf32> to vector<8x16x96xf32>
      %106 = arith.mulf %101, %105 : vector<8x16x96xf32>
      %107 = arith.addf %100, %106 : vector<8x16x96xf32>
      %108 = vector.extract_strided_slice %37 {offsets = [3, 0, 0], sizes = [8, 16, 96], strides = [1, 1, 1]} : vector<12x16x96xf32> to vector<8x16x96xf32>
      %109 = vector.extract_strided_slice %39 {offsets = [3, 1, 0], sizes = [1, 1, 96], strides = [1, 1, 1]} : vector<5x5x96xf32> to vector<1x1x96xf32>
      %110 = vector.shape_cast %109 : vector<1x1x96xf32> to vector<96xf32>
      %111 = vector.shape_cast %110 : vector<96xf32> to vector<1x1x96xf32>
      %112 = vector.broadcast %111 : vector<1x1x96xf32> to vector<8x16x96xf32>
      %113 = arith.mulf %108, %112 : vector<8x16x96xf32>
      %114 = arith.addf %107, %113 : vector<8x16x96xf32>
      %115 = vector.extract_strided_slice %37 {offsets = [4, 0, 0], sizes = [8, 16, 96], strides = [1, 1, 1]} : vector<12x16x96xf32> to vector<8x16x96xf32>
      %116 = vector.extract_strided_slice %39 {offsets = [4, 1, 0], sizes = [1, 1, 96], strides = [1, 1, 1]} : vector<5x5x96xf32> to vector<1x1x96xf32>
      %117 = vector.shape_cast %116 : vector<1x1x96xf32> to vector<96xf32>
      %118 = vector.shape_cast %117 : vector<96xf32> to vector<1x1x96xf32>
      %119 = vector.broadcast %118 : vector<1x1x96xf32> to vector<8x16x96xf32>
      %120 = arith.mulf %115, %119 : vector<8x16x96xf32>
      %121 = arith.addf %114, %120 : vector<8x16x96xf32>
      %c1_i32_28 = arith.constant 1 : i32
      %122 = tpu.dynamic_rotate %121 by %c1_i32_28 dim 1 : vector<8x16x96xf32>, i32 -> vector<8x16x96xf32>
      %c-1_i32 = arith.constant -1 : i32
      %123 = vector.broadcast %c-1_i32 : i32 to vector<1x16x1xi32>
      %124 = arith.addi %38, %123 : vector<1x16x1xi32>
      %c0_i32_29 = arith.constant 0 : i32
      %125 = vector.broadcast %c0_i32_29 : i32 to vector<1x16x1xi32>
      %126 = arith.cmpi sge, %124, %125 : vector<1x16x1xi32>
      %c-1_i32_30 = arith.constant -1 : i32
      %127 = vector.broadcast %c-1_i32_30 : i32 to vector<1x16x1xi32>
      %128 = arith.addi %38, %127 : vector<1x16x1xi32>
      %c16_i32_31 = arith.constant 16 : i32
      %129 = vector.broadcast %c16_i32_31 : i32 to vector<1x16x1xi32>
      %130 = arith.cmpi slt, %128, %129 : vector<1x16x1xi32>
      %131 = arith.andi %126, %130 : vector<1x16x1xi1>
      %cst_32 = arith.constant 0.000000e+00 : f32
      %132 = vector.shape_cast %131 : vector<1x16x1xi1> to vector<1x16x1xi1>
      %133 = vector.broadcast %132 : vector<1x16x1xi1> to vector<8x16x96xi1>
      %134 = vector.broadcast %cst_32 : f32 to vector<8x16x96xf32>
      %135 = arith.select %133, %122, %134 : vector<8x16x96xi1>, vector<8x16x96xf32>
      %136 = arith.addf %87, %135 : vector<8x16x96xf32>
      %137 = vector.extract_strided_slice %37 {offsets = [0, 0, 0], sizes = [8, 16, 96], strides = [1, 1, 1]} : vector<12x16x96xf32> to vector<8x16x96xf32>
      %138 = vector.extract_strided_slice %39 {offsets = [0, 2, 0], sizes = [1, 1, 96], strides = [1, 1, 1]} : vector<5x5x96xf32> to vector<1x1x96xf32>
      %139 = vector.shape_cast %138 : vector<1x1x96xf32> to vector<96xf32>
      %140 = vector.shape_cast %139 : vector<96xf32> to vector<1x1x96xf32>
      %141 = vector.broadcast %140 : vector<1x1x96xf32> to vector<8x16x96xf32>
      %142 = arith.mulf %137, %141 : vector<8x16x96xf32>
      %143 = vector.extract_strided_slice %37 {offsets = [1, 0, 0], sizes = [8, 16, 96], strides = [1, 1, 1]} : vector<12x16x96xf32> to vector<8x16x96xf32>
      %144 = vector.extract_strided_slice %39 {offsets = [1, 2, 0], sizes = [1, 1, 96], strides = [1, 1, 1]} : vector<5x5x96xf32> to vector<1x1x96xf32>
      %145 = vector.shape_cast %144 : vector<1x1x96xf32> to vector<96xf32>
      %146 = vector.shape_cast %145 : vector<96xf32> to vector<1x1x96xf32>
      %147 = vector.broadcast %146 : vector<1x1x96xf32> to vector<8x16x96xf32>
      %148 = arith.mulf %143, %147 : vector<8x16x96xf32>
      %149 = arith.addf %142, %148 : vector<8x16x96xf32>
      %150 = vector.extract_strided_slice %37 {offsets = [2, 0, 0], sizes = [8, 16, 96], strides = [1, 1, 1]} : vector<12x16x96xf32> to vector<8x16x96xf32>
      %151 = vector.extract_strided_slice %39 {offsets = [2, 2, 0], sizes = [1, 1, 96], strides = [1, 1, 1]} : vector<5x5x96xf32> to vector<1x1x96xf32>
      %152 = vector.shape_cast %151 : vector<1x1x96xf32> to vector<96xf32>
      %153 = vector.shape_cast %152 : vector<96xf32> to vector<1x1x96xf32>
      %154 = vector.broadcast %153 : vector<1x1x96xf32> to vector<8x16x96xf32>
      %155 = arith.mulf %150, %154 : vector<8x16x96xf32>
      %156 = arith.addf %149, %155 : vector<8x16x96xf32>
      %157 = vector.extract_strided_slice %37 {offsets = [3, 0, 0], sizes = [8, 16, 96], strides = [1, 1, 1]} : vector<12x16x96xf32> to vector<8x16x96xf32>
      %158 = vector.extract_strided_slice %39 {offsets = [3, 2, 0], sizes = [1, 1, 96], strides = [1, 1, 1]} : vector<5x5x96xf32> to vector<1x1x96xf32>
      %159 = vector.shape_cast %158 : vector<1x1x96xf32> to vector<96xf32>
      %160 = vector.shape_cast %159 : vector<96xf32> to vector<1x1x96xf32>
      %161 = vector.broadcast %160 : vector<1x1x96xf32> to vector<8x16x96xf32>
      %162 = arith.mulf %157, %161 : vector<8x16x96xf32>
      %163 = arith.addf %156, %162 : vector<8x16x96xf32>
      %164 = vector.extract_strided_slice %37 {offsets = [4, 0, 0], sizes = [8, 16, 96], strides = [1, 1, 1]} : vector<12x16x96xf32> to vector<8x16x96xf32>
      %165 = vector.extract_strided_slice %39 {offsets = [4, 2, 0], sizes = [1, 1, 96], strides = [1, 1, 1]} : vector<5x5x96xf32> to vector<1x1x96xf32>
      %166 = vector.shape_cast %165 : vector<1x1x96xf32> to vector<96xf32>
      %167 = vector.shape_cast %166 : vector<96xf32> to vector<1x1x96xf32>
      %168 = vector.broadcast %167 : vector<1x1x96xf32> to vector<8x16x96xf32>
      %169 = arith.mulf %164, %168 : vector<8x16x96xf32>
      %170 = arith.addf %163, %169 : vector<8x16x96xf32>
      %171 = arith.addf %136, %170 : vector<8x16x96xf32>
      %172 = vector.extract_strided_slice %37 {offsets = [0, 0, 0], sizes = [8, 16, 96], strides = [1, 1, 1]} : vector<12x16x96xf32> to vector<8x16x96xf32>
      %173 = vector.extract_strided_slice %39 {offsets = [0, 3, 0], sizes = [1, 1, 96], strides = [1, 1, 1]} : vector<5x5x96xf32> to vector<1x1x96xf32>
      %174 = vector.shape_cast %173 : vector<1x1x96xf32> to vector<96xf32>
      %175 = vector.shape_cast %174 : vector<96xf32> to vector<1x1x96xf32>
      %176 = vector.broadcast %175 : vector<1x1x96xf32> to vector<8x16x96xf32>
      %177 = arith.mulf %172, %176 : vector<8x16x96xf32>
      %178 = vector.extract_strided_slice %37 {offsets = [1, 0, 0], sizes = [8, 16, 96], strides = [1, 1, 1]} : vector<12x16x96xf32> to vector<8x16x96xf32>
      %179 = vector.extract_strided_slice %39 {offsets = [1, 3, 0], sizes = [1, 1, 96], strides = [1, 1, 1]} : vector<5x5x96xf32> to vector<1x1x96xf32>
      %180 = vector.shape_cast %179 : vector<1x1x96xf32> to vector<96xf32>
      %181 = vector.shape_cast %180 : vector<96xf32> to vector<1x1x96xf32>
      %182 = vector.broadcast %181 : vector<1x1x96xf32> to vector<8x16x96xf32>
      %183 = arith.mulf %178, %182 : vector<8x16x96xf32>
      %184 = arith.addf %177, %183 : vector<8x16x96xf32>
      %185 = vector.extract_strided_slice %37 {offsets = [2, 0, 0], sizes = [8, 16, 96], strides = [1, 1, 1]} : vector<12x16x96xf32> to vector<8x16x96xf32>
      %186 = vector.extract_strided_slice %39 {offsets = [2, 3, 0], sizes = [1, 1, 96], strides = [1, 1, 1]} : vector<5x5x96xf32> to vector<1x1x96xf32>
      %187 = vector.shape_cast %186 : vector<1x1x96xf32> to vector<96xf32>
      %188 = vector.shape_cast %187 : vector<96xf32> to vector<1x1x96xf32>
      %189 = vector.broadcast %188 : vector<1x1x96xf32> to vector<8x16x96xf32>
      %190 = arith.mulf %185, %189 : vector<8x16x96xf32>
      %191 = arith.addf %184, %190 : vector<8x16x96xf32>
      %192 = vector.extract_strided_slice %37 {offsets = [3, 0, 0], sizes = [8, 16, 96], strides = [1, 1, 1]} : vector<12x16x96xf32> to vector<8x16x96xf32>
      %193 = vector.extract_strided_slice %39 {offsets = [3, 3, 0], sizes = [1, 1, 96], strides = [1, 1, 1]} : vector<5x5x96xf32> to vector<1x1x96xf32>
      %194 = vector.shape_cast %193 : vector<1x1x96xf32> to vector<96xf32>
      %195 = vector.shape_cast %194 : vector<96xf32> to vector<1x1x96xf32>
      %196 = vector.broadcast %195 : vector<1x1x96xf32> to vector<8x16x96xf32>
      %197 = arith.mulf %192, %196 : vector<8x16x96xf32>
      %198 = arith.addf %191, %197 : vector<8x16x96xf32>
      %199 = vector.extract_strided_slice %37 {offsets = [4, 0, 0], sizes = [8, 16, 96], strides = [1, 1, 1]} : vector<12x16x96xf32> to vector<8x16x96xf32>
      %200 = vector.extract_strided_slice %39 {offsets = [4, 3, 0], sizes = [1, 1, 96], strides = [1, 1, 1]} : vector<5x5x96xf32> to vector<1x1x96xf32>
      %201 = vector.shape_cast %200 : vector<1x1x96xf32> to vector<96xf32>
      %202 = vector.shape_cast %201 : vector<96xf32> to vector<1x1x96xf32>
      %203 = vector.broadcast %202 : vector<1x1x96xf32> to vector<8x16x96xf32>
      %204 = arith.mulf %199, %203 : vector<8x16x96xf32>
      %205 = arith.addf %198, %204 : vector<8x16x96xf32>
      %c15_i32 = arith.constant 15 : i32
      %206 = tpu.dynamic_rotate %205 by %c15_i32 dim 1 : vector<8x16x96xf32>, i32 -> vector<8x16x96xf32>
      %c1_i32_33 = arith.constant 1 : i32
      %207 = vector.broadcast %c1_i32_33 : i32 to vector<1x16x1xi32>
      %208 = arith.addi %38, %207 : vector<1x16x1xi32>
      %c0_i32_34 = arith.constant 0 : i32
      %209 = vector.broadcast %c0_i32_34 : i32 to vector<1x16x1xi32>
      %210 = arith.cmpi sge, %208, %209 : vector<1x16x1xi32>
      %c1_i32_35 = arith.constant 1 : i32
      %211 = vector.broadcast %c1_i32_35 : i32 to vector<1x16x1xi32>
      %212 = arith.addi %38, %211 : vector<1x16x1xi32>
      %c16_i32_36 = arith.constant 16 : i32
      %213 = vector.broadcast %c16_i32_36 : i32 to vector<1x16x1xi32>
      %214 = arith.cmpi slt, %212, %213 : vector<1x16x1xi32>
      %215 = arith.andi %210, %214 : vector<1x16x1xi1>
      %cst_37 = arith.constant 0.000000e+00 : f32
      %216 = vector.shape_cast %215 : vector<1x16x1xi1> to vector<1x16x1xi1>
      %217 = vector.broadcast %216 : vector<1x16x1xi1> to vector<8x16x96xi1>
      %218 = vector.broadcast %cst_37 : f32 to vector<8x16x96xf32>
      %219 = arith.select %217, %206, %218 : vector<8x16x96xi1>, vector<8x16x96xf32>
      %220 = arith.addf %171, %219 : vector<8x16x96xf32>
      %221 = vector.extract_strided_slice %37 {offsets = [0, 0, 0], sizes = [8, 16, 96], strides = [1, 1, 1]} : vector<12x16x96xf32> to vector<8x16x96xf32>
      %222 = vector.extract_strided_slice %39 {offsets = [0, 4, 0], sizes = [1, 1, 96], strides = [1, 1, 1]} : vector<5x5x96xf32> to vector<1x1x96xf32>
      %223 = vector.shape_cast %222 : vector<1x1x96xf32> to vector<96xf32>
      %224 = vector.shape_cast %223 : vector<96xf32> to vector<1x1x96xf32>
      %225 = vector.broadcast %224 : vector<1x1x96xf32> to vector<8x16x96xf32>
      %226 = arith.mulf %221, %225 : vector<8x16x96xf32>
      %227 = vector.extract_strided_slice %37 {offsets = [1, 0, 0], sizes = [8, 16, 96], strides = [1, 1, 1]} : vector<12x16x96xf32> to vector<8x16x96xf32>
      %228 = vector.extract_strided_slice %39 {offsets = [1, 4, 0], sizes = [1, 1, 96], strides = [1, 1, 1]} : vector<5x5x96xf32> to vector<1x1x96xf32>
      %229 = vector.shape_cast %228 : vector<1x1x96xf32> to vector<96xf32>
      %230 = vector.shape_cast %229 : vector<96xf32> to vector<1x1x96xf32>
      %231 = vector.broadcast %230 : vector<1x1x96xf32> to vector<8x16x96xf32>
      %232 = arith.mulf %227, %231 : vector<8x16x96xf32>
      %233 = arith.addf %226, %232 : vector<8x16x96xf32>
      %234 = vector.extract_strided_slice %37 {offsets = [2, 0, 0], sizes = [8, 16, 96], strides = [1, 1, 1]} : vector<12x16x96xf32> to vector<8x16x96xf32>
      %235 = vector.extract_strided_slice %39 {offsets = [2, 4, 0], sizes = [1, 1, 96], strides = [1, 1, 1]} : vector<5x5x96xf32> to vector<1x1x96xf32>
      %236 = vector.shape_cast %235 : vector<1x1x96xf32> to vector<96xf32>
      %237 = vector.shape_cast %236 : vector<96xf32> to vector<1x1x96xf32>
      %238 = vector.broadcast %237 : vector<1x1x96xf32> to vector<8x16x96xf32>
      %239 = arith.mulf %234, %238 : vector<8x16x96xf32>
      %240 = arith.addf %233, %239 : vector<8x16x96xf32>
      %241 = vector.extract_strided_slice %37 {offsets = [3, 0, 0], sizes = [8, 16, 96], strides = [1, 1, 1]} : vector<12x16x96xf32> to vector<8x16x96xf32>
      %242 = vector.extract_strided_slice %39 {offsets = [3, 4, 0], sizes = [1, 1, 96], strides = [1, 1, 1]} : vector<5x5x96xf32> to vector<1x1x96xf32>
      %243 = vector.shape_cast %242 : vector<1x1x96xf32> to vector<96xf32>
      %244 = vector.shape_cast %243 : vector<96xf32> to vector<1x1x96xf32>
      %245 = vector.broadcast %244 : vector<1x1x96xf32> to vector<8x16x96xf32>
      %246 = arith.mulf %241, %245 : vector<8x16x96xf32>
      %247 = arith.addf %240, %246 : vector<8x16x96xf32>
      %248 = vector.extract_strided_slice %37 {offsets = [4, 0, 0], sizes = [8, 16, 96], strides = [1, 1, 1]} : vector<12x16x96xf32> to vector<8x16x96xf32>
      %249 = vector.extract_strided_slice %39 {offsets = [4, 4, 0], sizes = [1, 1, 96], strides = [1, 1, 1]} : vector<5x5x96xf32> to vector<1x1x96xf32>
      %250 = vector.shape_cast %249 : vector<1x1x96xf32> to vector<96xf32>
      %251 = vector.shape_cast %250 : vector<96xf32> to vector<1x1x96xf32>
      %252 = vector.broadcast %251 : vector<1x1x96xf32> to vector<8x16x96xf32>
      %253 = arith.mulf %248, %252 : vector<8x16x96xf32>
      %254 = arith.addf %247, %253 : vector<8x16x96xf32>
      %c14_i32 = arith.constant 14 : i32
      %255 = tpu.dynamic_rotate %254 by %c14_i32 dim 1 : vector<8x16x96xf32>, i32 -> vector<8x16x96xf32>
      %c2_i32_38 = arith.constant 2 : i32
      %256 = vector.broadcast %c2_i32_38 : i32 to vector<1x16x1xi32>
      %257 = arith.addi %38, %256 : vector<1x16x1xi32>
      %c0_i32_39 = arith.constant 0 : i32
      %258 = vector.broadcast %c0_i32_39 : i32 to vector<1x16x1xi32>
      %259 = arith.cmpi sge, %257, %258 : vector<1x16x1xi32>
      %c2_i32_40 = arith.constant 2 : i32
      %260 = vector.broadcast %c2_i32_40 : i32 to vector<1x16x1xi32>
      %261 = arith.addi %38, %260 : vector<1x16x1xi32>
      %c16_i32_41 = arith.constant 16 : i32
      %262 = vector.broadcast %c16_i32_41 : i32 to vector<1x16x1xi32>
      %263 = arith.cmpi slt, %261, %262 : vector<1x16x1xi32>
      %264 = arith.andi %259, %263 : vector<1x16x1xi1>
      %cst_42 = arith.constant 0.000000e+00 : f32
      %265 = vector.shape_cast %264 : vector<1x16x1xi1> to vector<1x16x1xi1>
      %266 = vector.broadcast %265 : vector<1x16x1xi1> to vector<8x16x96xi1>
      %267 = vector.broadcast %cst_42 : f32 to vector<8x16x96xf32>
      %268 = arith.select %266, %255, %267 : vector<8x16x96xi1>, vector<8x16x96xf32>
      %269 = arith.addf %220, %268 : vector<8x16x96xf32>
      %270 = vector.shape_cast %269 : vector<8x16x96xf32> to vector<128x96xf32>
      %271 = arith.truncf %270 : vector<128x96xf32> to vector<128x96xbf16>
      %c0_43 = arith.constant 0 : index
      %c0_44 = arith.constant 0 : index
      %272 = vector.load %arg9[%c0_43, %c0_44] : memref<96x96xbf16, #tpu.memory_space<vmem>>, vector<96x96xbf16>
      %cst_45 = arith.constant dense<0.000000e+00> : vector<128x96xf32>
      %273 = tpu.matmul %271, %272, %cst_45 {dimension_numbers = #tpu.dot_dimension_numbers<[1], [0], [0], [1], [0, 0, 1, 1], [], []>} : vector<128x96xbf16>, vector<96x96xbf16>, vector<128x96xf32> -> vector<128x96xf32>
      %274 = vector.extract_strided_slice %37 {offsets = [2, 0, 0], sizes = [8, 16, 96], strides = [1, 1, 1]} : vector<12x16x96xf32> to vector<8x16x96xf32>
      %275 = vector.shape_cast %274 : vector<8x16x96xf32> to vector<128x96xf32>
      %276 = vector.extract_strided_slice %275 {offsets = [0, 0], sizes = [128, 32], strides = [1, 1]} : vector<128x96xf32> to vector<128x32xf32>
      %cst_46 = arith.constant 0.000000e+00 : f32
      %277 = vector.broadcast %cst_46 : f32 to vector<128x32xf32>
      %278 = arith.maximumf %276, %277 : vector<128x32xf32>
      %279 = vector.extract_strided_slice %273 {offsets = [0, 0], sizes = [128, 32], strides = [1, 1]} : vector<128x96xf32> to vector<128x32xf32>
      %cst_47 = arith.constant 0.000000e+00 : f32
      %280 = vector.broadcast %cst_47 : f32 to vector<128x32xf32>
      %281 = arith.maximumf %279, %280 : vector<128x32xf32>
      %282 = tpu.concatenate %278, %281 in 1 : vector<128x32xf32>, vector<128x32xf32> -> vector<128x64xf32>
      %283 = vector.extract_strided_slice %275 {offsets = [0, 32], sizes = [128, 32], strides = [1, 1]} : vector<128x96xf32> to vector<128x32xf32>
      %cst_48 = arith.constant 0.000000e+00 : f32
      %284 = vector.broadcast %cst_48 : f32 to vector<128x32xf32>
      %285 = arith.maximumf %283, %284 : vector<128x32xf32>
      %286 = vector.extract_strided_slice %273 {offsets = [0, 32], sizes = [128, 32], strides = [1, 1]} : vector<128x96xf32> to vector<128x32xf32>
      %cst_49 = arith.constant 0.000000e+00 : f32
      %287 = vector.broadcast %cst_49 : f32 to vector<128x32xf32>
      %288 = arith.maximumf %286, %287 : vector<128x32xf32>
      %289 = tpu.concatenate %285, %288 in 1 : vector<128x32xf32>, vector<128x32xf32> -> vector<128x64xf32>
      %290 = vector.extract_strided_slice %275 {offsets = [0, 64], sizes = [128, 32], strides = [1, 1]} : vector<128x96xf32> to vector<128x32xf32>
      %291 = vector.extract_strided_slice %273 {offsets = [0, 64], sizes = [128, 32], strides = [1, 1]} : vector<128x96xf32> to vector<128x32xf32>
      %cst_50 = arith.constant 1.000000e+00 : f32
      %292 = vector.broadcast %cst_50 : f32 to vector<128x1xf32>
      %293 = tpu.concatenate %290, %291, %292 in 1 : vector<128x32xf32>, vector<128x32xf32>, vector<128x1xf32> -> vector<128x65xf32>
      %c128_i32 = arith.constant 128 : i32
      %294 = arith.muli %arg2, %c128_i32 : i32
      %295 = tpu.assume_multiple %294, 8 : i32
      %296 = arith.index_cast %295 : i32 to index
      %c0_51 = arith.constant 0 : index
      %297 = vector.load %arg15[%296, %c0_51] : memref<256x64xf32, #tpu.memory_space<vmem>>, vector<128x64xf32>
      tpu.vector_store %arg15[%296, %c0_51], %282 {strides = array<i32>} : memref<256x64xf32, #tpu.memory_space<vmem>>, vector<128x64xf32>,
      %c0_52 = arith.constant 0 : index
      %c0_53 = arith.constant 0 : index
      %298 = vector.load %arg14[%c0_52, %c0_53] : memref<64x65xf32, #tpu.memory_space<vmem>>, vector<64x65xf32>
      %299 = arith.truncf %289 : vector<128x64xf32> to vector<128x64xbf16>
      %300 = arith.truncf %293 : vector<128x65xf32> to vector<128x65xbf16>
      %cst_54 = arith.constant dense<0.000000e+00> : vector<64x65xf32>
      %301 = tpu.matmul %299, %300, %cst_54 {dimension_numbers = #tpu.dot_dimension_numbers<[0], [0], [1], [1], [0, 1, 1, 1], [], []>} : vector<128x64xbf16>, vector<128x65xbf16>, vector<64x65xf32> -> vector<64x65xf32>
      %302 = arith.addf %298, %301 : vector<64x65xf32>
      %c0_55 = arith.constant 0 : index
      %c0_56 = arith.constant 0 : index
      %303 = vector.load %arg14[%c0_55, %c0_56] : memref<64x65xf32, #tpu.memory_space<vmem>>, vector<64x65xf32>
      tpu.vector_store %arg14[%c0_55, %c0_56], %302 {strides = array<i32>} : memref<64x65xf32, #tpu.memory_space<vmem>>, vector<64x65xf32>,
    } else {
    }
    %c1_i32 = arith.constant 1 : i32
    %3 = arith.cmpi eq, %arg1, %c1_i32 : i32
    %4 = arith.extui %3 : i1 to i32
    %c0_i32_1 = arith.constant 0 : i32
    %5 = arith.cmpi ne, %4, %c0_i32_1 : i32
    scf.if %5 {
      %c0_i32_2 = arith.constant 0 : i32
      %6 = arith.cmpi eq, %arg2, %c0_i32_2 : i32
      %7 = arith.extui %6 : i1 to i32
      %c0_i32_3 = arith.constant 0 : i32
      %8 = arith.cmpi ne, %7, %c0_i32_3 : i32
      scf.if %8 {
        %c0_15 = arith.constant 0 : index
        %c0_16 = arith.constant 0 : index
        %32 = vector.load %arg10[%c0_15, %c0_16] : memref<64x64xf32, #tpu.memory_space<vmem>>, vector<64x64xf32>
        %c0_17 = arith.constant 0 : index
        %c0_18 = arith.constant 0 : index
        %33 = vector.load %arg14[%c0_17, %c0_18] : memref<64x65xf32, #tpu.memory_space<vmem>>, vector<64x64xf32>
        %34 = arith.mulf %33, %32 : vector<64x64xf32>
        %c0_19 = arith.constant 0 : index
        %c64 = arith.constant 64 : index
        %35 = vector.load %arg14[%c0_19, %c64] : memref<64x65xf32, #tpu.memory_space<vmem>>, vector<64x1xf32>
        %36 = vector.broadcast %35 : vector<64x1xf32> to vector<64x64xf32>
        %37 = arith.mulf %36, %32 : vector<64x64xf32>
        %38 = tpu.concatenate %34, %37 in 1 : vector<64x64xf32>, vector<64x64xf32> -> vector<64x128xf32>
        %39 = arith.truncf %38 : vector<64x128xf32> to vector<64x128xbf16>
        %c0_20 = arith.constant 0 : index
        %c0_21 = arith.constant 0 : index
        %40 = vector.load %arg16[%c0_20, %c0_21] : memref<64x128xbf16, #tpu.memory_space<vmem>>, vector<64x128xbf16>
        tpu.vector_store %arg16[%c0_20, %c0_21], %39 {strides = array<i32>} : memref<64x128xbf16, #tpu.memory_space<vmem>>, vector<64x128xbf16>,
      } else {
      }
      %c128_i32 = arith.constant 128 : i32
      %9 = arith.muli %arg2, %c128_i32 : i32
      %10 = tpu.assume_multiple %9, 8 : i32
      %11 = arith.index_cast %10 : i32 to index
      %c0 = arith.constant 0 : index
      %12 = vector.load %arg15[%11, %c0] : memref<256x64xf32, #tpu.memory_space<vmem>>, vector<128x64xf32>
      %13 = arith.truncf %12 : vector<128x64xf32> to vector<128x64xbf16>
      %c0_4 = arith.constant 0 : index
      %c0_5 = arith.constant 0 : index
      %14 = vector.load %arg16[%c0_4, %c0_5] : memref<64x128xbf16, #tpu.memory_space<vmem>>, vector<64x128xbf16>
      %cst = arith.constant dense<0.000000e+00> : vector<128x128xf32>
      %15 = tpu.matmul %13, %14, %cst {dimension_numbers = #tpu.dot_dimension_numbers<[1], [0], [0], [1], [0, 0, 1, 1], [], []>} : vector<128x64xbf16>, vector<64x128xbf16>, vector<128x128xf32> -> vector<128x128xf32>
      %16 = vector.extract_strided_slice %15 {offsets = [0, 0], sizes = [128, 64], strides = [1, 1]} : vector<128x128xf32> to vector<128x64xf32>
      %17 = vector.extract_strided_slice %15 {offsets = [0, 64], sizes = [128, 64], strides = [1, 1]} : vector<128x128xf32> to vector<128x64xf32>
      %cst_6 = arith.constant 1.000000e-15 : f32
      %18 = vector.broadcast %cst_6 : f32 to vector<128x64xf32>
      %19 = arith.addf %17, %18 : vector<128x64xf32>
      %20 = tpu.reciprocal %19 {approx = true} : vector<128x64xf32> -> vector<128x64xf32>
      %21 = arith.mulf %16, %20 : vector<128x64xf32>
      %22 = arith.truncf %21 : vector<128x64xf32> to vector<128x64xbf16>
      %c0_7 = arith.constant 0 : index
      %c0_8 = arith.constant 0 : index
      %23 = vector.load %arg11[%c0_7, %c0_8] : memref<64x32xbf16, #tpu.memory_space<vmem>>, vector<64x32xbf16>
      %cst_9 = arith.constant dense<0.000000e+00> : vector<128x32xf32>
      %24 = tpu.matmul %22, %23, %cst_9 {dimension_numbers = #tpu.dot_dimension_numbers<[1], [0], [0], [1], [0, 0, 1, 1], [], []>} : vector<128x64xbf16>, vector<64x32xbf16>, vector<128x32xf32> -> vector<128x32xf32>
      %c0_10 = arith.constant 0 : index
      %c0_11 = arith.constant 0 : index
      %25 = vector.load %arg12[%c0_10, %c0_11] : memref<1x32xf32, #tpu.memory_space<vmem>>, vector<1x32xf32>
      %26 = vector.broadcast %25 : vector<1x32xf32> to vector<128x32xf32>
      %27 = arith.addf %24, %26 : vector<128x32xf32>
      %28 = tpu.transpose %27, [1, 0] : vector<128x32xf32> -> vector<32x128xf32>
      %c0_12 = arith.constant 0 : index
      %c0_13 = arith.constant 0 : index
      %c0_14 = arith.constant 0 : index
      %29 = vector.load %arg13[%c0_12, %c0_13, %c0_14] : memref<1x32x128xf32, #tpu.memory_space<vmem>>, vector<1x32x128xf32>
      %30 = vector.shape_cast %29 : vector<1x32x128xf32> to vector<32x128xf32>
      %31 = vector.shape_cast %28 : vector<32x128xf32> to vector<1x32x128xf32>
      tpu.vector_store %arg13[%c0_12, %c0_13, %c0_14], %31 {strides = array<i32>} : memref<1x32x128xf32, #tpu.memory_space<vmem>>, vector<1x32x128xf32>,
    } else {
    }
    return
  }
  func.func @transform_0(%arg0: i32, %arg1: i32, %arg2: i32) -> (i32, i32, i32, i32) {
    %c1_i32 = arith.constant 1 : i32
    %0 = arith.subi %c1_i32, %arg1 : i32
    %1 = arith.muli %arg2, %0 : i32
    %c1_i32_0 = arith.constant 1 : i32
    %2 = arith.muli %1, %c1_i32_0 : i32
    %c1_i32_1 = arith.constant 1 : i32
    %3 = arith.subi %2, %c1_i32_1 : i32
    %c0_i32 = arith.constant 0 : i32
    %4 = arith.maxsi %3, %c0_i32 : i32
    %c0_i32_2 = arith.constant 0 : i32
    %c0_i32_3 = arith.constant 0 : i32
    %c0_i32_4 = arith.constant 0 : i32
    return %arg0, %4, %c0_i32_2, %c0_i32_3 : i32, i32, i32, i32
  }
  func.func @transform_1(%arg0: i32, %arg1: i32, %arg2: i32) -> (i32, i32, i32, i32) {
    %c1_i32 = arith.constant 1 : i32
    %0 = arith.subi %c1_i32, %arg1 : i32
    %1 = arith.muli %arg2, %0 : i32
    %c0_i32 = arith.constant 0 : i32
    %c0_i32_0 = arith.constant 0 : i32
    %c0_i32_1 = arith.constant 0 : i32
    return %arg0, %1, %c0_i32, %c0_i32_0 : i32, i32, i32, i32
  }
  func.func @transform_2(%arg0: i32, %arg1: i32, %arg2: i32) -> (i32, i32, i32, i32) {
    %c1_i32 = arith.constant 1 : i32
    %0 = arith.subi %c1_i32, %arg1 : i32
    %1 = arith.muli %arg2, %0 : i32
    %c1_i32_0 = arith.constant 1 : i32
    %2 = arith.muli %1, %c1_i32_0 : i32
    %c1_i32_1 = arith.constant 1 : i32
    %3 = arith.addi %2, %c1_i32_1 : i32
    %c1_i32_2 = arith.constant 1 : i32
    %4 = arith.minsi %3, %c1_i32_2 : i32
    %c0_i32 = arith.constant 0 : i32
    %c0_i32_3 = arith.constant 0 : i32
    %c0_i32_4 = arith.constant 0 : i32
    return %arg0, %4, %c0_i32, %c0_i32_3 : i32, i32, i32, i32
  }
  func.func @transform_3(%arg0: i32, %arg1: i32, %arg2: i32) -> (i32, i32) {
    %c0_i32 = arith.constant 0 : i32
    %c0_i32_0 = arith.constant 0 : i32
    %c0_i32_1 = arith.constant 0 : i32
    return %c0_i32, %c0_i32_0 : i32, i32
  }
  func.func @transform_4(%arg0: i32, %arg1: i32, %arg2: i32) -> (i32, i32) {
    %c0_i32 = arith.constant 0 : i32
    %c0_i32_0 = arith.constant 0 : i32
    %c0_i32_1 = arith.constant 0 : i32
    return %c0_i32, %c0_i32_0 : i32, i32
  }
  func.func @transform_5(%arg0: i32, %arg1: i32, %arg2: i32) -> (i32, i32, i32) {
    %c0_i32 = arith.constant 0 : i32
    %c0_i32_0 = arith.constant 0 : i32
    %c0_i32_1 = arith.constant 0 : i32
    %c0_i32_2 = arith.constant 0 : i32
    return %c0_i32, %c0_i32_0, %c0_i32_1 : i32, i32, i32
  }
  func.func @transform_6(%arg0: i32, %arg1: i32, %arg2: i32) -> (i32, i32) {
    %c0_i32 = arith.constant 0 : i32
    %c0_i32_0 = arith.constant 0 : i32
    %c0_i32_1 = arith.constant 0 : i32
    return %c0_i32, %c0_i32_0 : i32, i32
  }
  func.func @transform_7(%arg0: i32, %arg1: i32, %arg2: i32) -> (i32, i32) {
    %c0_i32 = arith.constant 0 : i32
    %c0_i32_0 = arith.constant 0 : i32
    %c0_i32_1 = arith.constant 0 : i32
    return %c0_i32, %c0_i32_0 : i32, i32
  }
  func.func @transform_8(%arg0: i32, %arg1: i32, %arg2: i32) -> (i32, i32) {
    %c0_i32 = arith.constant 0 : i32
    %c0_i32_0 = arith.constant 0 : i32
    %c0_i32_1 = arith.constant 0 : i32
    return %c0_i32, %c0_i32_0 : i32, i32
  }
  func.func @transform_9(%arg0: i32, %arg1: i32, %arg2: i32) -> (i32, i32) {
    %c0_i32 = arith.constant 0 : i32
    %c0_i32_0 = arith.constant 0 : i32
    %c0_i32_1 = arith.constant 0 : i32
    return %c0_i32, %c0_i32_0 : i32, i32
  }
  func.func @transform_10(%arg0: i32, %arg1: i32, %arg2: i32) -> (i32, i32, i32) {
    %0 = arith.muli %arg2, %arg1 : i32
    %c0_i32 = arith.constant 0 : i32
    %c0_i32_0 = arith.constant 0 : i32
    return %arg0, %c0_i32, %0 : i32, i32, i32
  }
}

</mosaic_0001>

<llo_original>
// kernel: lite_mla_forward.1
$region0: #{lite_mla_forward.1}
  #allocation0 [shape = 'u32[]', space=smem, size = 0x4, offset = 0x4, fixed_abs, tag = 'smem constant byte address 0x4 - core index']
  #allocation1 [shape = 'u32[144,128]{1,0:T(1,128)}', space=vmem, size = 0x12000, scoped, tag = 'internal scratch']
  #allocation2 [shape = 'f32[64,65]{1,0:T(8,128)}', space=vmem, size = 0x8000, scoped, tag = 'scratch operand']
  #allocation3 [shape = 'f32[256,64]{1,0:T(8,128)}', space=vmem, size = 0x20000, scoped, tag = 'scratch operand']
  #allocation4 [shape = 'bf16[64,128]{1,0:T(16,128)(2,1)}', space=vmem, size = 0x4000, scoped, tag = 'scratch operand']
  %s0 = inlined_call_operand.hbm [shape: f32[2,16,16,32], index: 0, kind: input, shape index: {}, may-alias: {0,1,2}]
  %s1 = inlined_call_operand.hbm [shape: f32[2,16,16,32], index: 1, kind: input, shape index: {}, may-alias: {0,1,2}]
  %s2 = inlined_call_operand.hbm [shape: f32[2,16,16,32], index: 2, kind: input, shape index: {}, may-alias: {0,1,2}]
  %s3 = inlined_call_operand.vmem [shape: bf16[32,96], index: 3, kind: input, shape index: {}]
  %s4 = inlined_call_operand.vmem [shape: f32[1,96], index: 4, kind: input, shape index: {}]
  %s5 = inlined_call_operand.hbm [shape: f32[5,5,96], index: 5, kind: input, shape index: {}]
  %s6 = inlined_call_operand.vmem [shape: bf16[96,96], index: 6, kind: input, shape index: {}]
  %s7 = inlined_call_operand.hbm [shape: f32[64,64], index: 7, kind: input, shape index: {}]
  %s8 = inlined_call_operand.vmem [shape: bf16[64,32], index: 8, kind: input, shape index: {}]
  %s9 = inlined_call_operand.vmem [shape: f32[1,32], index: 9, kind: input, shape index: {}]
  %s10 = inlined_call_operand.vmem [shape: f32[2,32,256], index: 10, kind: output, shape index: {}]
  %s11 = sld [smem:[#allocation0]]
  $region143: #{lite_mla_forward.1} parent=0
    _
  %s13 = ssub.s32 1, %s11
  %s14 = scalar_select 0, %s13, %s11
  $region1: #{lite_mla_forward.1} parent=0
    #allocation5 [shape = 'u8[131072]{0}', space=vmem, size = 0x20000, scoped, tag = 'input window, operand 0']
    #allocation6 [shape = 's32[2]{0}', space=sflag, size = 0x8, scoped, tag = 'scoped memory for lite_mla_forward.1']
    #allocation7 [shape = 'u8[131072]{0}', space=vmem, size = 0x20000, scoped, tag = 'input window, operand 1']
    #allocation8 [shape = 's32[2]{0}', space=sflag, size = 0x8, scoped, tag = 'scoped memory for lite_mla_forward.1']
    #allocation9 [shape = 'u8[131072]{0}', space=vmem, size = 0x20000, scoped, tag = 'input window, operand 2']
    #allocation10 [shape = 'u8[20480]{0}', space=vmem, size = 0x5000, scoped, tag = 'input window, operand 5, single buffered']
    #allocation11 [shape = 's32[1]{0}', space=sflag, size = 0x4, scoped, tag = 'scoped memory for lite_mla_forward.1']
    #allocation12 [shape = 'u8[32768]{0}', space=vmem, size = 0x8000, scoped, tag = 'input window, operand 7, single buffered']
    #allocation13 [shape = 'u8[32768]{0}', space=vmem, size = 0x8000, scoped, tag = 'output window, operand 0']
    %15 = vsyncpa [#allocation6], 0
    %s16 = scalar_lea.sflag [#allocation6], 1
    %17 = vsyncpa %s16, 0
    %18 = vsyncpa [#allocation8], 0
    %s19 = scalar_lea.sflag [#allocation8], 1
    %20 = vsyncpa %s19, 0
    %21 = vsyncpa [#allocation11], 0
    loop: start=0, step=1, limit=10
    $region2: #{lite_mla_forward.1} parent=1 // loop_pre_header
      _
    $region3: #{lite_mla_forward.1} parent=1 // loop_header
      %s23 = sphi 0, %s27
      %p24 = scmp.ge.s32.totalorder %s23, 10
      %s30 = sphi 0, %s49
      %s31 = sphi 0, %s45
      %s32 = sphi 0, %s41
      %s33 = sphi 0, %s30
      %s34 = sphi 0, %s31
      %s35 = sphi 0, %s32
      %s36 = sphi 0, %s33
      %s37 = sphi 0, %s34
      %s38 = sphi 0, %s35
      %s64 = sphi 0, %s66
      %s67 = sphi 0, %s64
      %s68 = sphi 0, %s67
      %s84 = sphi 0, %s68
      %s96 = sphi 0, %s98
      %s99 = sphi 0, %s96
      %s100 = sphi 0, %s99
      %s116 = sphi 0, %s100
      %s134 = sphi 0, %s136
      %s137 = sphi 0, %s134
      %s138 = sphi 0, %s137
      %s154 = sphi 0, %s138
      %s158 = sphi 0, %s158
      %s160 = sphi 0, %s158
      %s161 = sphi 0, %s160
      %s175 = sphi 0, %s161
      %s179 = sphi 0, %s179
      %s181 = sphi 0, %s179
      %s182 = sphi 0, %s181
      %s196 = sphi 0, %s182
      %s200 = sphi 0, %s200
      %s202 = sphi 0, %s200
      %s203 = sphi 0, %s202
      %s217 = sphi 0, %s203
      %s221 = sphi 0, %s221
      %s223 = sphi 0, %s221
      %s224 = sphi 0, %s223
      %s238 = sphi 0, %s224
      %s242 = sphi 0, %s242
      %s244 = sphi 0, %s242
      %s245 = sphi 0, %s244
      %s259 = sphi 0, %s245
      %s263 = sphi 0, %s263
      %s265 = sphi 0, %s263
      %s266 = sphi 0, %s265
      %s280 = sphi 0, %s266
      %s284 = sphi 0, %s284
      %s286 = sphi 0, %s284
      %s287 = sphi 0, %s286
      %s301 = sphi 0, %s287
      %s311 = sphi 0, %s313
      %s314 = sphi 0, %s311
      %s315 = sphi 0, %s314
      %s331 = sphi 0, %s315
    $region4: #{lite_mla_forward.1} parent=1 // loop_header_branch
      %26 = sbr.rel (%p24) target = $region8
    $region5: #{lite_mla_forward.1} parent=1 // loop_body
      %s28 = ssub.s32 %s23, 1
      %s29 = ssub.s32 %s23, 2
      %s39 = sadd.s32 1, %s32
      %p40 = scmp.ge.s32.totalorder %s39, 2
      %s41 = scalar_select %p40, 0, %s39
      %s42 = sadd.s32 1, %s31
      %s43 = scalar_select %p40, %s42, %s31
      %p44 = scmp.ge.s32.totalorder %s43, 2
      %s45 = scalar_select %p44, 0, %s43
      %s46 = sadd.s32 1, %s30
      %s47 = scalar_select %p44, %s46, %s30
      %p48 = scmp.ge.s32.totalorder %s47, 2
      %s49 = scalar_select %p48, 0, %s47
      %s50 = ssub.s32 1, %s31
      %s51 = smul.u32 %s32, %s50
      %s52 = ssub.s32 %s51, 1
      %p53 = scmp.gt.s32.totalorder %s52, 0
      %s54 = scalar_select %p53, %s52, 0
      %s55 = ssub.s32 1, %s45
      %s56 = smul.u32 %s41, %s55
      %s57 = ssub.s32 %s56, 1
      %p58 = scmp.gt.s32.totalorder %s57, 0
      %s59 = scalar_select %p58, %s57, 0
      %s60 = ssub.s32 %s30, %s49
      %s61 = ssub.s32 %s54, %s59
      %s62 = sor.u32 %s60, %s61
      %p63 = scmp.eq.s32.totalorder %s62, 0
      %s65 = sadd.s32 %s64, 1
      %s66 = scalar_select %p63, %s64, %s65
      %p69 = pneg %p63
      %p70 = scmp.eq.s32.totalorder %s23, 7
      %p71 = por %p69, %p70
      %p72 = scmp.ne.s32.totalorder %s64, %s67
      %p73 = scmp.eq.s32.totalorder %s23, 0
      %p74 = por %p72, %p73
      %p75 = scmp.ne.s32.totalorder %s64, %s67
      %p76 = scmp.eq.s32.totalorder %s28, 7
      %p77 = por %p75, %p76
      %p78 = scmp.ne.s32.totalorder %s67, %s68
      %p79 = scmp.eq.s32.totalorder %s28, 0
      %p80 = por %p78, %p79
      %p81 = scmp.ne.s32.totalorder %s67, %s68
      %p82 = scmp.eq.s32.totalorder %s29, 7
      %p83 = por %p81, %p82
      %p85 = scmp.ne.s32.totalorder %s68, %s84
      %p86 = scmp.eq.s32.totalorder %s29, 0
      %p87 = por %p85, %p86
      %s88 = ssub.s32 1, %s31
      %s89 = smul.u32 %s32, %s88
      %s90 = ssub.s32 1, %s45
      %s91 = smul.u32 %s41, %s90
      %s92 = ssub.s32 %s30, %s49
      %s93 = ssub.s32 %s89, %s91
      %s94 = sor.u32 %s92, %s93
      %p95 = scmp.eq.s32.totalorder %s94, 0
      %s97 = sadd.s32 %s96, 1
      %s98 = scalar_select %p95, %s96, %s97
      %p101 = pneg %p95
      %p102 = scmp.eq.s32.totalorder %s23, 7
      %p103 = por %p101, %p102
      %p104 = scmp.ne.s32.totalorder %s96, %s99
      %p105 = scmp.eq.s32.totalorder %s23, 0
      %p106 = por %p104, %p105
      %p107 = scmp.ne.s32.totalorder %s96, %s99
      %p108 = scmp.eq.s32.totalorder %s28, 7
      %p109 = por %p107, %p108
      %p110 = scmp.ne.s32.totalorder %s99, %s100
      %p111 = scmp.eq.s32.totalorder %s28, 0
      %p112 = por %p110, %p111
      %p113 = scmp.ne.s32.totalorder %s99, %s100
      %p114 = scmp.eq.s32.totalorder %s29, 7
      %p115 = por %p113, %p114
      %p117 = scmp.ne.s32.totalorder %s100, %s116
      %p118 = scmp.eq.s32.totalorder %s29, 0
      %p119 = por %p117, %p118
      %s120 = ssub.s32 1, %s31
      %s121 = smul.u32 %s32, %s120
      %s122 = sadd.s32 %s121, 1
      %p123 = scmp.lt.s32.totalorder %s122, 1
      %s124 = scalar_select %p123, %s122, 1
      %s125 = ssub.s32 1, %s45
      %s126 = smul.u32 %s41, %s125
      %s127 = sadd.s32 %s126, 1
      %p128 = scmp.lt.s32.totalorder %s127, 1
      %s129 = scalar_select %p128, %s127, 1
      %s130 = ssub.s32 %s30, %s49
      %s131 = ssub.s32 %s124, %s129
      %s132 = sor.u32 %s130, %s131
      %p133 = scmp.eq.s32.totalorder %s132, 0
      %s135 = sadd.s32 %s134, 1
      %s136 = scalar_select %p133, %s134, %s135
      %p139 = pneg %p133
      %p140 = scmp.eq.s32.totalorder %s23, 7
      %p141 = por %p139, %p140
      %p142 = scmp.ne.s32.totalorder %s134, %s137
      %p143 = scmp.eq.s32.totalorder %s23, 0
      %p144 = por %p142, %p143
      %p145 = scmp.ne.s32.totalorder %s134, %s137
      %p146 = scmp.eq.s32.totalorder %s28, 7
      %p147 = por %p145, %p146
      %p148 = scmp.ne.s32.totalorder %s137, %s138
      %p149 = scmp.eq.s32.totalorder %s28, 0
      %p150 = por %p148, %p149
      %p151 = scmp.ne.s32.totalorder %s137, %s138
      %p152 = scmp.eq.s32.totalorder %s29, 7
      %p153 = por %p151, %p152
      %p155 = scmp.ne.s32.totalorder %s138, %s154
      %p156 = scmp.eq.s32.totalorder %s29, 0
      %p157 = por %p155, %p156
      %s159 = sadd.s32 %s158, 1
      %p162 = scmp.eq.s32.totalorder %s23, 7
      %p163 = scmp.ne.s32.totalorder %s158, %s160
      %p164 = scmp.eq.s32.totalorder %s23, 0
      %p165 = por %p163, %p164
      %p166 = scmp.ne.s32.totalorder %s158, %s160
      %p167 = scmp.eq.s32.totalorder %s28, 7
      %p168 = por %p166, %p167
      %p169 = scmp.ne.s32.totalorder %s160, %s161
      %p170 = scmp.eq.s32.totalorder %s28, 0
      %p171 = por %p169, %p170
      %p172 = scmp.ne.s32.totalorder %s160, %s161
      %p173 = scmp.eq.s32.totalorder %s29, 7
      %p174 = por %p172, %p173
      %p176 = scmp.ne.s32.totalorder %s161, %s175
      %p177 = scmp.eq.s32.totalorder %s29, 0
      %p178 = por %p176, %p177
      %s180 = sadd.s32 %s179, 1
      %p183 = scmp.eq.s32.totalorder %s23, 7
      %p184 = scmp.ne.s32.totalorder %s179, %s181
      %p185 = scmp.eq.s32.totalorder %s23, 0
      %p186 = por %p184, %p185
      %p187 = scmp.ne.s32.totalorder %s179, %s181
      %p188 = scmp.eq.s32.totalorder %s28, 7
      %p189 = por %p187, %p188
      %p190 = scmp.ne.s32.totalorder %s181, %s182
      %p191 = scmp.eq.s32.totalorder %s28, 0
      %p192 = por %p190, %p191
      %p193 = scmp.ne.s32.totalorder %s181, %s182
      %p194 = scmp.eq.s32.totalorder %s29, 7
      %p195 = por %p193, %p194
      %p197 = scmp.ne.s32.totalorder %s182, %s196
      %p198 = scmp.eq.s32.totalorder %s29, 0
      %p199 = por %p197, %p198
      %s201 = sadd.s32 %s200, 1
      %p204 = scmp.eq.s32.totalorder %s23, 7
      %p205 = scmp.ne.s32.totalorder %s200, %s202
      %p206 = scmp.eq.s32.totalorder %s23, 0
      %p207 = por %p205, %p206
      %p208 = scmp.ne.s32.totalorder %s200, %s202
      %p209 = scmp.eq.s32.totalorder %s28, 7
      %p210 = por %p208, %p209
      %p211 = scmp.ne.s32.totalorder %s202, %s203
      %p212 = scmp.eq.s32.totalorder %s28, 0
      %p213 = por %p211, %p212
      %p214 = scmp.ne.s32.totalorder %s202, %s203
      %p215 = scmp.eq.s32.totalorder %s29, 7
      %p216 = por %p214, %p215
      %p218 = scmp.ne.s32.totalorder %s203, %s217
      %p219 = scmp.eq.s32.totalorder %s29, 0
      %p220 = por %p218, %p219
      %s222 = sadd.s32 %s221, 1
      %p225 = scmp.eq.s32.totalorder %s23, 7
      %p226 = scmp.ne.s32.totalorder %s221, %s223
      %p227 = scmp.eq.s32.totalorder %s23, 0
      %p228 = por %p226, %p227
      %p229 = scmp.ne.s32.totalorder %s221, %s223
      %p230 = scmp.eq.s32.totalorder %s28, 7
      %p231 = por %p229, %p230
      %p232 = scmp.ne.s32.totalorder %s223, %s224
      %p233 = scmp.eq.s32.totalorder %s28, 0
      %p234 = por %p232, %p233
      %p235 = scmp.ne.s32.totalorder %s223, %s224
      %p236 = scmp.eq.s32.totalorder %s29, 7
      %p237 = por %p235, %p236
      %p239 = scmp.ne.s32.totalorder %s224, %s238
      %p240 = scmp.eq.s32.totalorder %s29, 0
      %p241 = por %p239, %p240
      %s243 = sadd.s32 %s242, 1
      %p246 = scmp.eq.s32.totalorder %s23, 7
      %p247 = scmp.ne.s32.totalorder %s242, %s244
      %p248 = scmp.eq.s32.totalorder %s23, 0
      %p249 = por %p247, %p248
      %p250 = scmp.ne.s32.totalorder %s242, %s244
      %p251 = scmp.eq.s32.totalorder %s28, 7
      %p252 = por %p250, %p251
      %p253 = scmp.ne.s32.totalorder %s244, %s245
      %p254 = scmp.eq.s32.totalorder %s28, 0
      %p255 = por %p253, %p254
      %p256 = scmp.ne.s32.totalorder %s244, %s245
      %p257 = scmp.eq.s32.totalorder %s29, 7
      %p258 = por %p256, %p257
      %p260 = scmp.ne.s32.totalorder %s245, %s259
      %p261 = scmp.eq.s32.totalorder %s29, 0
      %p262 = por %p260, %p261
      %s264 = sadd.s32 %s263, 1
      %p267 = scmp.eq.s32.totalorder %s23, 7
      %p268 = scmp.ne.s32.totalorder %s263, %s265
      %p269 = scmp.eq.s32.totalorder %s23, 0
      %p270 = por %p268, %p269
      %p271 = scmp.ne.s32.totalorder %s263, %s265
      %p272 = scmp.eq.s32.totalorder %s28, 7
      %p273 = por %p271, %p272
      %p274 = scmp.ne.s32.totalorder %s265, %s266
      %p275 = scmp.eq.s32.totalorder %s28, 0
      %p276 = por %p274, %p275
      %p277 = scmp.ne.s32.totalorder %s265, %s266
      %p278 = scmp.eq.s32.totalorder %s29, 7
      %p279 = por %p277, %p278
      %p281 = scmp.ne.s32.totalorder %s266, %s280
      %p282 = scmp.eq.s32.totalorder %s29, 0
      %p283 = por %p281, %p282
      %s285 = sadd.s32 %s284, 1
      %p288 = scmp.eq.s32.totalorder %s23, 7
      %p289 = scmp.ne.s32.totalorder %s284, %s286
      %p290 = scmp.eq.s32.totalorder %s23, 0
      %p291 = por %p289, %p290
      %p292 = scmp.ne.s32.totalorder %s284, %s286
      %p293 = scmp.eq.s32.totalorder %s28, 7
      %p294 = por %p292, %p293
      %p295 = scmp.ne.s32.totalorder %s286, %s287
      %p296 = scmp.eq.s32.totalorder %s28, 0
      %p297 = por %p295, %p296
      %p298 = scmp.ne.s32.totalorder %s286, %s287
      %p299 = scmp.eq.s32.totalorder %s29, 7
      %p300 = por %p298, %p299
      %p302 = scmp.ne.s32.totalorder %s287, %s301
      %p303 = scmp.eq.s32.totalorder %s29, 0
      %p304 = por %p302, %p303
      %s305 = smul.u32 %s32, %s31
      %s306 = smul.u32 %s41, %s45
      %s307 = ssub.s32 %s30, %s49
      %s308 = ssub.s32 %s305, %s306
      %s309 = sor.u32 %s307, %s308
      %p310 = scmp.eq.s32.totalorder %s309, 0
      %s312 = sadd.s32 %s311, 1
      %s313 = scalar_select %p310, %s311, %s312
      %p316 = pneg %p310
      %p317 = scmp.eq.s32.totalorder %s23, 7
      %p318 = por %p316, %p317
      %p319 = scmp.ne.s32.totalorder %s311, %s314
      %p320 = scmp.eq.s32.totalorder %s23, 0
      %p321 = por %p319, %p320
      %p322 = scmp.ne.s32.totalorder %s311, %s314
      %p323 = scmp.eq.s32.totalorder %s28, 7
      %p324 = por %p322, %p323
      %p325 = scmp.ne.s32.totalorder %s314, %s315
      %p326 = scmp.eq.s32.totalorder %s28, 0
      %p327 = por %p325, %p326
      %p328 = scmp.ne.s32.totalorder %s314, %s315
      %p329 = scmp.eq.s32.totalorder %s29, 7
      %p330 = por %p328, %p329
      %p332 = scmp.ne.s32.totalorder %s315, %s331
      %p333 = scmp.eq.s32.totalorder %s29, 0
      %p334 = por %p332, %p333
      %p335 = scmp.le.s32.totalorder 1, %s23
      %p336 = scmp.lt.s32.totalorder %s23, 9
      %p337 = pnand %p335, %p336
      %p338 = pneg %p337
      // Predicated region
      $region9: #{lite_mla_forward.1} parent=5 // pred_check
        _
      $region10: #{lite_mla_forward.1} parent=5 // pred_check_branch
        %340 = sbr.rel (%p337) target = $region12
      $region11: #{lite_mla_forward.1} parent=5 // pred_region
        %s341 = ssub.s32 %s23, 1
        // Predicated region
        $region13: #{lite_mla_forward.1} parent=11 // pred_check
          %p342 = pneg %p171
        $region14: #{lite_mla_forward.1} parent=11 // pred_check_branch
          %344 = sbr.rel (%p342) target = $region16
        $region15: #{lite_mla_forward.1} parent=11 // pred_region
          _
        $region16: #{lite_mla_forward.1} parent=11 // pred_fallthru
          _
        // Predicated region
        $region17: #{lite_mla_forward.1} parent=11 // pred_check
          %p345 = pneg %p192
        $region18: #{lite_mla_forward.1} parent=11 // pred_check_branch
          %347 = sbr.rel (%p345) target = $region20
        $region19: #{lite_mla_forward.1} parent=11 // pred_region
          _
        $region20: #{lite_mla_forward.1} parent=11 // pred_fallthru
          _
        // Predicated region
        $region21: #{lite_mla_forward.1} parent=11 // pred_check
          %p348 = pneg %p213
        $region22: #{lite_mla_forward.1} parent=11 // pred_check_branch
          %350 = sbr.rel (%p348) target = $region24
        $region23: #{lite_mla_forward.1} parent=11 // pred_region
          %s352 = ssub.s32 640, 640
          %353 = vsyncadd [#allocation11], %s352
          %s354 = sshll.u32 [#allocation10], 4
          %s355 = int_to_ptr.vmem [resolvable:$true] %s354
          %360 = dma.hbm_to_vmem [thread:$0]  %s5, 640, %s355, [#allocation11], 128, 128, 8
        $region24: #{lite_mla_forward.1} parent=11 // pred_fallthru
          _
        // Predicated region
        $region25: #{lite_mla_forward.1} parent=11 // pred_check
          %p361 = pneg %p234
        $region26: #{lite_mla_forward.1} parent=11 // pred_check_branch
          %363 = sbr.rel (%p361) target = $region28
        $region27: #{lite_mla_forward.1} parent=11 // pred_region
          _
        $region28: #{lite_mla_forward.1} parent=11 // pred_fallthru
          _
        // Predicated region
        $region29: #{lite_mla_forward.1} parent=11 // pred_check
          %p364 = pneg %p255
        $region30: #{lite_mla_forward.1} parent=11 // pred_check_branch
          %366 = sbr.rel (%p364) target = $region32
        $region31: #{lite_mla_forward.1} parent=11 // pred_region
          %s368 = ssub.s32 1024, 1024
          %369 = vsyncadd [#allocation11], %s368
          %s370 = sshll.u32 [#allocation12], 4
          %s371 = int_to_ptr.vmem [resolvable:$true] %s370
          %376 = dma.hbm_to_vmem [thread:$0]  %s7, 1024, %s371, [#allocation11], 128, 128, 8
        $region32: #{lite_mla_forward.1} parent=11 // pred_fallthru
          _
        // Predicated region
        $region33: #{lite_mla_forward.1} parent=11 // pred_check
          %p377 = pneg %p276
        $region34: #{lite_mla_forward.1} parent=11 // pred_check_branch
          %379 = sbr.rel (%p377) target = $region36
        $region35: #{lite_mla_forward.1} parent=11 // pred_region
          _
        $region36: #{lite_mla_forward.1} parent=11 // pred_fallthru
          _
        // Predicated region
        $region37: #{lite_mla_forward.1} parent=11 // pred_check
          %p380 = pneg %p297
        $region38: #{lite_mla_forward.1} parent=11 // pred_check_branch
          %382 = sbr.rel (%p380) target = $region40
        $region39: #{lite_mla_forward.1} parent=11 // pred_region
          _
        $region40: #{lite_mla_forward.1} parent=11 // pred_fallthru
          _
      $region12: #{lite_mla_forward.1} parent=5 // pred_fallthru
        _
      %p383 = scmp.lt.s32.totalorder %s23, 8
      // Predicated region
      $region41: #{lite_mla_forward.1} parent=5 // pred_check
        %p384 = pneg %p383
      $region42: #{lite_mla_forward.1} parent=5 // pred_check_branch
        %386 = sbr.rel (%p384) target = $region44
      $region43: #{lite_mla_forward.1} parent=5 // pred_region
        // Predicated region
        $region45: #{lite_mla_forward.1} parent=43 // pred_check
          %p387 = pneg %p74
        $region46: #{lite_mla_forward.1} parent=43 // pred_check_branch
          %389 = sbr.rel (%p387) target = $region48
        $region47: #{lite_mla_forward.1} parent=43 // pred_region
          %s390 = sand.u32 %s64, 1
          %s391 = scalar_lea.sflag [#allocation6], %s390
          %s392 = sand.u32 %s64, 1
          %s393 = smul.addr %s392, 128
          %s394 = scalar_lea.vmem [#allocation5], %s393
          %s395 = ssub.s32 1, %s31
          %s396 = smul.u32 %s32, %s395
          %s397 = ssub.s32 %s396, 1
          %p398 = scmp.gt.s32.totalorder %s397, 0
          %s399 = scalar_select %p398, %s397, 0
          %s400 = smul.u32 8, %s399
          %s402 = ssub.s32 2048, 2048
          %403 = vsyncadd %s391, %s402
          %s404 = smul.addr %s400, 2
          %s405 = smul.addr %s30, 32
          %s406 = sadd.s32 %s404, %s405
          %s407 = smul.addr %s406, 128
          %s408 = scalar_lea.hbm %s0, %s407
          %s409 = sshll.u32 %s394, 4
          %s410 = int_to_ptr.vmem [resolvable:$true] %s409
          %415 = dma.hbm_to_vmem [thread:$0]  %s408, 2048, %s410, %s391, 128, 128, 8
        $region48: #{lite_mla_forward.1} parent=43 // pred_fallthru
          _
        // Predicated region
        $region49: #{lite_mla_forward.1} parent=43 // pred_check
          %p416 = pneg %p106
        $region50: #{lite_mla_forward.1} parent=43 // pred_check_branch
          %418 = sbr.rel (%p416) target = $region52
        $region51: #{lite_mla_forward.1} parent=43 // pred_region
          %s419 = sand.u32 %s23, 1
          %s420 = scalar_lea.sflag [#allocation8], %s419
          %s421 = sand.u32 %s96, 1
          %s422 = smul.addr %s421, 128
          %s423 = scalar_lea.vmem [#allocation7], %s422
          %s424 = ssub.s32 1, %s31
          %s425 = smul.u32 %s32, %s424
          %s426 = smul.u32 8, %s425
          %s428 = ssub.s32 2048, 2048
          %429 = vsyncadd %s420, %s428
          %s430 = smul.addr %s426, 2
          %s431 = smul.addr %s30, 32
          %s432 = sadd.s32 %s430, %s431
          %s433 = smul.addr %s432, 128
          %s434 = scalar_lea.hbm %s1, %s433
          %s435 = sshll.u32 %s423, 4
          %s436 = int_to_ptr.vmem [resolvable:$true] %s435
          %441 = dma.hbm_to_vmem [thread:$0]  %s434, 2048, %s436, %s420, 128, 128, 8
        $region52: #{lite_mla_forward.1} parent=43 // pred_fallthru
          _
        // Predicated region
        $region53: #{lite_mla_forward.1} parent=43 // pred_check
          %p442 = pneg %p144
        $region54: #{lite_mla_forward.1} parent=43 // pred_check_branch
          %444 = sbr.rel (%p442) target = $region56
        $region55: #{lite_mla_forward.1} parent=43 // pred_region
          %s445 = sand.u32 %s23, 1
          %s446 = scalar_lea.sflag [#allocation8], %s445
          %s447 = sand.u32 %s134, 1
          %s448 = smul.addr %s447, 128
          %s449 = scalar_lea.vmem [#allocation9], %s448
          %s450 = ssub.s32 1, %s31
          %s451 = smul.u32 %s32, %s450
          %s452 = sadd.s32 %s451, 1
          %p453 = scmp.lt.s32.totalorder %s452, 1
          %s454 = scalar_select %p453, %s452, 1
          %s455 = smul.u32 8, %s454
          %s457 = ssub.s32 2048, 2048
          %458 = vsyncadd %s446, %s457
          %s459 = smul.addr %s455, 2
          %s460 = smul.addr %s30, 32
          %s461 = sadd.s32 %s459, %s460
          %s462 = smul.addr %s461, 128
          %s463 = scalar_lea.hbm %s2, %s462
          %s464 = sshll.u32 %s449, 4
          %s465 = int_to_ptr.vmem [resolvable:$true] %s464
          %470 = dma.hbm_to_vmem [thread:$0]  %s463, 2048, %s465, %s446, 128, 128, 8
        $region56: #{lite_mla_forward.1} parent=43 // pred_fallthru
          _
      $region44: #{lite_mla_forward.1} parent=5 // pred_fallthru
        _
      %p471 = scmp.le.s32.totalorder 1, %s23
      %p472 = scmp.lt.s32.totalorder %s23, 9
      %p473 = pnand %p471, %p472
      %p474 = pneg %p473
      // Predicated region
      $region57: #{lite_mla_forward.1} parent=5 // pred_check
        _
      $region58: #{lite_mla_forward.1} parent=5 // pred_check_branch
        %476 = sbr.rel (%p473) target = $region60
      $region59: #{lite_mla_forward.1} parent=5 // pred_region
        %s477 = ssub.s32 %s23, 1
        %s478 = sand.u32 %s67, 1
        %s479 = scalar_lea.sflag [#allocation6], %s478
        %s480 = sand.u32 %s67, 1
        %s481 = smul.addr %s480, 128
        %s482 = scalar_lea.vmem [#allocation5], %s481
        // Predicated region
        $region61: #{lite_mla_forward.1} parent=59 // pred_check
          %p483 = pneg %p80
        $region62: #{lite_mla_forward.1} parent=59 // pred_check_branch
          %485 = sbr.rel (%p483) target = $region64
        $region63: #{lite_mla_forward.1} parent=59 // pred_region
          %486 = dma.done %s479, 2048
        $region64: #{lite_mla_forward.1} parent=59 // pred_fallthru
          _
        %s487 = sand.u32 %s28, 1
        %s488 = scalar_lea.sflag [#allocation8], %s487
        %s489 = sand.u32 %s99, 1
        %s490 = smul.addr %s489, 128
        %s491 = scalar_lea.vmem [#allocation7], %s490
        // Predicated region
        $region65: #{lite_mla_forward.1} parent=59 // pred_check
          %p492 = pneg %p112
        $region66: #{lite_mla_forward.1} parent=59 // pred_check_branch
          %494 = sbr.rel (%p492) target = $region68
        $region67: #{lite_mla_forward.1} parent=59 // pred_region
          %495 = dma.done %s488, 2048
        $region68: #{lite_mla_forward.1} parent=59 // pred_fallthru
          _
        %s496 = sand.u32 %s28, 1
        %s497 = scalar_lea.sflag [#allocation8], %s496
        %s498 = sand.u32 %s137, 1
        %s499 = smul.addr %s498, 128
        %s500 = scalar_lea.vmem [#allocation9], %s499
        // Predicated region
        $region69: #{lite_mla_forward.1} parent=59 // pred_check
          %p501 = pneg %p150
        $region70: #{lite_mla_forward.1} parent=59 // pred_check_branch
          %503 = sbr.rel (%p501) target = $region72
        $region71: #{lite_mla_forward.1} parent=59 // pred_region
          %504 = dma.done %s497, 2048
        $region72: #{lite_mla_forward.1} parent=59 // pred_fallthru
          _
        // Predicated region
        $region73: #{lite_mla_forward.1} parent=59 // pred_check
          %p505 = pneg %p213
        $region74: #{lite_mla_forward.1} parent=59 // pred_check_branch
          %507 = sbr.rel (%p505) target = $region76
        $region75: #{lite_mla_forward.1} parent=59 // pred_region
          %508 = dma.done [#allocation11], 640
        $region76: #{lite_mla_forward.1} parent=59 // pred_fallthru
          _
        // Predicated region
        $region77: #{lite_mla_forward.1} parent=59 // pred_check
          %p509 = pneg %p255
        $region78: #{lite_mla_forward.1} parent=59 // pred_check_branch
          %511 = sbr.rel (%p509) target = $region80
        $region79: #{lite_mla_forward.1} parent=59 // pred_region
          %512 = dma.done [#allocation11], 1024
        $region80: #{lite_mla_forward.1} parent=59 // pred_fallthru
          _
        %s513 = sand.u32 %s67, 1
        %s514 = scalar_lea.sflag [#allocation6], %s513
        %s515 = sand.u32 %s67, 1
        %s516 = smul.addr %s515, 128
        %s517 = scalar_lea.vmem [#allocation5], %s516
        %p518 = pneg %p80
        %p519 = pneg %p77
        %s520 = sand.u32 %s28, 1
        %s521 = scalar_lea.sflag [#allocation8], %s520
        %s522 = sand.u32 %s99, 1
        %s523 = smul.addr %s522, 128
        %s524 = scalar_lea.vmem [#allocation7], %s523
        %p525 = pneg %p112
        %p526 = pneg %p109
        %s527 = sand.u32 %s28, 1
        %s528 = scalar_lea.sflag [#allocation8], %s527
        %s529 = sand.u32 %s137, 1
        %s530 = smul.addr %s529, 128
        %s531 = scalar_lea.vmem [#allocation9], %s530
        %p532 = pneg %p150
        %p533 = pneg %p147
        %p534 = pneg %p171
        %p535 = pneg %p168
        %p536 = pneg %p192
        %p537 = pneg %p189
        %p538 = pneg %p213
        %p539 = pneg %p210
        %p540 = pneg %p234
        %p541 = pneg %p231
        %p542 = pneg %p255
        %p543 = pneg %p252
        %p544 = pneg %p276
        %p545 = pneg %p273
        %p546 = pneg %p297
        %p547 = pneg %p294
        %p548 = pneg %p327
        %p549 = pneg %p324
        %s550 = sand.u32 %s314, 1
        %s551 = sand.u32 %s314, 1
        %s552 = smul.addr %s551, 32
        %s553 = scalar_lea.vmem [#allocation13], %s552
        %s554 = ssub.s32 1, %s34
        %s555 = smul.u32 %s35, %s554
        %s556 = ssub.s32 %s555, 1
        %p557 = scmp.gt.s32.totalorder %s556, 0
        %s558 = scalar_select %p557, %s556, 0
        %s559 = smul.u32 8, %s558
        %s560 = ssub.s32 1, %s34
        %s561 = smul.u32 %s35, %s560
        %s562 = smul.u32 8, %s561
        %s563 = ssub.s32 1, %s34
        %s564 = smul.u32 %s35, %s563
        %s565 = sadd.s32 %s564, 1
        %p566 = scmp.lt.s32.totalorder %s565, 1
        %s567 = scalar_select %p566, %s565, 1
        %s568 = smul.u32 8, %s567
        %s569 = smul.u32 %s35, %s34
        %p571 = scmp.eq.s32.totalorder %s34, 0
        // Predicated region
        $region81: #{lite_mla_forward.1} parent=59 // pred_check
          %p572 = pneg %p571
        $region82: #{lite_mla_forward.1} parent=59 // pred_check_branch
          %574 = sbr.rel (%p572) target = $region84
        $region83: #{lite_mla_forward.1} parent=59 // pred_region
          %p575 = scmp.eq.s32.totalorder %s35, 0
          // Predicated region
          $region85: #{lite_mla_forward.1} parent=83 // pred_check
            %p576 = pneg %p575
          $region86: #{lite_mla_forward.1} parent=83 // pred_check_branch
            %578 = sbr.rel (%p576) target = $region88
          $region87: #{lite_mla_forward.1} parent=83 // pred_region
            %vm579 = vcmask 531456
            %580 = vst.msk [vmem:[#allocation2] sm:$0xff] %vm579, 0.0
            %581 = vst.msk [vmem:[#allocation2 + $0x8] sm:$0xff] %vm579, 0.0
            %582 = vst.msk [vmem:[#allocation2 + $0x10] sm:$0xff] %vm579, 0.0
            %583 = vst.msk [vmem:[#allocation2 + $0x18] sm:$0xff] %vm579, 0.0
            %584 = vst.msk [vmem:[#allocation2 + $0x20] sm:$0xff] %vm579, 0.0
            %585 = vst.msk [vmem:[#allocation2 + $0x28] sm:$0xff] %vm579, 0.0
            %586 = vst.msk [vmem:[#allocation2 + $0x30] sm:$0xff] %vm579, 0.0
            %587 = vst.msk [vmem:[#allocation2 + $0x38] sm:$0xff] %vm579, 0.0
          $region88: #{lite_mla_forward.1} parent=83 // pred_fallthru
            _
          %s588 = scalar_lea.vmem %s482, 96 [#allocation5]
          %v589 = vld [vmem:[%s588] sm:$0xff]
          %v590 = vld [vmem:[%s588 + $0x8] sm:$0xff]
          %v591 = vld [vmem:[%s588 + $0x10] sm:$0xff]
          %v592 = vld [vmem:[%s588 + $0x18] sm:$0xff]
          %v593 = vld [vmem:[%s500] sm:$0xff]
          %v594 = vld [vmem:[%s500 + $0x8] sm:$0xff]
          %v595 = vld [vmem:[%s500 + $0x10] sm:$0xff]
          %v596 = vld [vmem:[%s500 + $0x18] sm:$0xff]
          %v597 = vld [vmem:[%s491] sm:$0xff]
          %v598 = vld [vmem:[%s491 + $0x8] sm:$0xff]
          %v599 = vld [vmem:[%s491 + $0x10] sm:$0xff]
          %v600 = vld [vmem:[%s491 + $0x18] sm:$0xff]
          %v601 = vld [vmem:[%s491 + $0x20] sm:$0xff]
          %v602 = vld [vmem:[%s491 + $0x28] sm:$0xff]
          %v603 = vld [vmem:[%s491 + $0x30] sm:$0xff]
          %v604 = vld [vmem:[%s491 + $0x38] sm:$0xff]
          %v605 = vld [vmem:[%s491 + $0x40] sm:$0xff]
          %v606 = vld [vmem:[%s491 + $0x48] sm:$0xff]
          %v607 = vld [vmem:[%s491 + $0x50] sm:$0xff]
          %v608 = vld [vmem:[%s491 + $0x58] sm:$0xff]
          %v609 = vld [vmem:[%s491 + $0x60] sm:$0xff]
          %v610 = vld [vmem:[%s491 + $0x68] sm:$0xff]
          %v611 = vld [vmem:[%s491 + $0x70] sm:$0xff]
          %v612 = vld [vmem:[%s491 + $0x78] sm:$0xff]
          %v613 = vpack.c.bf16 %v590, %v589
          %v614 = vpack.c.bf16 %v592, %v591
          %v615 = vpack.c.bf16 %v598, %v597
          %v616 = vpack.c.bf16 %v600, %v599
          %v617 = vpack.c.bf16 %v602, %v601
          %v618 = vpack.c.bf16 %v604, %v603
          %v619 = vpack.c.bf16 %v606, %v605
          %v620 = vpack.c.bf16 %v608, %v607
          %v621 = vpack.c.bf16 %v610, %v609
          %v622 = vpack.c.bf16 %v612, %v611
          %v623 = vpack.c.bf16 %v594, %v593
          %v624 = vpack.c.bf16 %v596, %v595
          %v625 = vld [vmem:[%s3] sm:$0xf]
          %v626 = vld [vmem:[%s3 + $0x4] sm:$0xf]
          %v627 = vld [vmem:[%s3 + $0x8] sm:$0xf]
          %v628 = vld [vmem:[%s3 + $0xc] sm:$0xf]
          %v629 = vld [vmem:[%s4] sm:$0x1]
          %v631 = vlaneseq
          %v632 = vshrl.u32 %v631, 7
          %v633 = vsub.s32 0, %v632
          %v634 = vrot.slane %v629, %v633
          %v640 = vunpack.c.l.b16 %v625
          %v641 = vunpack.c.l.b16 %v626
          %v642 = vunpack.c.l.b16 %v627
          %v643 = vunpack.c.l.b16 %v628
          %v644 = vpack.c.b16 %v641, %v640
          %v645 = vpack.c.b16 %v643, %v642
          %vm648 = vcmask 261120
          %v650 = vsel %vm648, %v613, 0
          %v653 = vsel %vm648, %v614, 0
          %v656 = vsel %vm648, %v615, 0
          %v659 = vsel %vm648, %v616, 0
          %v662 = vsel %vm648, %v617, 0
          %v665 = vsel %vm648, %v618, 0
          %v668 = vsel %vm648, %v619, 0
          %v671 = vsel %vm648, %v620, 0
          %v674 = vsel %vm648, %v621, 0
          %v677 = vsel %vm648, %v622, 0
          %v680 = vsel %vm648, %v623, 0
          %v683 = vsel %vm648, %v624, 0
          %685 = vmatprep.subr.bf16.mxu0 0
          %686 = vmatpush1.bf16.msra.mxu0 %v644
          %687 = vmatprep.subr.bf16.mxu0 0
          %688 = vmatpush1.bf16.msra.mxu0 %v645
          %689 = vmatprep.subr.bf16.mxu0 0
          %690 = vmatpush1.bf16.msra.mxu0 0
          %691 = vmatprep.subr.bf16.mxu0 0
          %692 = vmatpush1.bf16.msra.mxu0 0
          %693 = vmatprep.subr.bf16.mxu0 0
          %694 = vmatpush1.bf16.msra.mxu0 0
          %695 = vmatprep.subr.bf16.mxu0 0
          %696 = vmatpush1.bf16.msra.mxu0 0
          %697 = vmatprep.subr.bf16.mxu0 0
          %698 = vmatpush1.bf16.msra.mxu0 0
          %699 = vmatprep.subr.bf16.mxu0 0
          %700 = vmatpush1.bf16.msra.mxu0 0
          %701 = vmatprep.subr.bf16.mxu0 0
          %702 = vmatpush1.bf16.msra.mxu0 0
          %703 = vmatprep.subr.bf16.mxu0 0
          %704 = vmatpush1.bf16.msra.mxu0 0
          %705 = vmatprep.subr.bf16.mxu0 0
          %706 = vmatpush1.bf16.msra.mxu0 0
          %707 = vmatprep.subr.bf16.mxu0 0
          %708 = vmatpush1.bf16.msra.mxu0 0
          %709 = vmatprep.subr.bf16.mxu0 0
          %710 = vmatpush1.bf16.msra.mxu0 0
          %711 = vmatprep.subr.bf16.mxu0 0
          %712 = vmatpush1.bf16.msra.mxu0 0
          %713 = vmatprep.subr.bf16.mxu0 0
          %714 = vmatpush1.bf16.msra.mxu0 0
          %715 = vmatprep.subr.bf16.mxu0 0
          %716 = vmatpush1.bf16.msra.mxu0 0
          %717 = vmatprep.mubr.bf16.mxu0 0
          %718 = vmatmul.mubr.bf16.gmra.mrb[0].mxu0 %v650
          %v719 = vpop.f32.mrb[0].mxu0
          %v720 = vadd.f32 %v634, %v719
          %v721 = vpop.f32.mrb[0].mxu0
          %v722 = vpop.f32.mrb[0].mxu0
          %v723 = vadd.f32 %v634, %v722
          %v724 = vpop.f32.mrb[0].mxu0
          %725 = vmatprep.mubr.bf16.mxu0 0
          %726 = vmatmul.mubr.bf16.gmra.mrb[0].mxu0 %v653
          %v727 = vpop.f32.mrb[0].mxu0
          %v728 = vadd.f32 %v634, %v727
          %v729 = vpop.f32.mrb[0].mxu0
          %v730 = vpop.f32.mrb[0].mxu0
          %v731 = vadd.f32 %v634, %v730
          %v732 = vpop.f32.mrb[0].mxu0
          %733 = vmatprep.mubr.bf16.mxu0 0
          %734 = vmatmul.mubr.bf16.gmra.mrb[0].mxu0 %v656
          %v735 = vpop.f32.mrb[0].mxu0
          %v736 = vadd.f32 %v634, %v735
          %v737 = vpop.f32.mrb[0].mxu0
          %v738 = vpop.f32.mrb[0].mxu0
          %v739 = vadd.f32 %v634, %v738
          %v740 = vpop.f32.mrb[0].mxu0
          %741 = vmatprep.mubr.bf16.mxu0 0
          %742 = vmatmul.mubr.bf16.gmra.mrb[0].mxu0 %v659
          %v743 = vpop.f32.mrb[0].mxu0
          %v744 = vadd.f32 %v634, %v743
          %v745 = vpop.f32.mrb[0].mxu0
          %v746 = vpop.f32.mrb[0].mxu0
          %v747 = vadd.f32 %v634, %v746
          %v748 = vpop.f32.mrb[0].mxu0
          %749 = vmatprep.mubr.bf16.mxu0 0
          %750 = vmatmul.mubr.bf16.gmra.mrb[0].mxu0 %v662
          %v751 = vpop.f32.mrb[0].mxu0
          %v752 = vadd.f32 %v634, %v751
          %v753 = vpop.f32.mrb[0].mxu0
          %v754 = vpop.f32.mrb[0].mxu0
          %v755 = vadd.f32 %v634, %v754
          %v756 = vpop.f32.mrb[0].mxu0
          %757 = vmatprep.mubr.bf16.mxu0 0
          %758 = vmatmul.mubr.bf16.gmra.mrb[0].mxu0 %v665
          %v759 = vpop.f32.mrb[0].mxu0
          %v760 = vadd.f32 %v634, %v759
          %v761 = vpop.f32.mrb[0].mxu0
          %v762 = vpop.f32.mrb[0].mxu0
          %v763 = vadd.f32 %v634, %v762
          %v764 = vpop.f32.mrb[0].mxu0
          %765 = vmatprep.mubr.bf16.mxu0 0
          %766 = vmatmul.mubr.bf16.gmra.mrb[0].mxu0 %v668
          %v767 = vpop.f32.mrb[0].mxu0
          %v768 = vadd.f32 %v634, %v767
          %v769 = vpop.f32.mrb[0].mxu0
          %v770 = vpop.f32.mrb[0].mxu0
          %v771 = vadd.f32 %v634, %v770
          %v772 = vpop.f32.mrb[0].mxu0
          %773 = vmatprep.mubr.bf16.mxu0 0
          %774 = vmatmul.mubr.bf16.gmra.mrb[0].mxu0 %v671
          %v775 = vpop.f32.mrb[0].mxu0
          %v776 = vadd.f32 %v634, %v775
          %v777 = vpop.f32.mrb[0].mxu0
          %v778 = vpop.f32.mrb[0].mxu0
          %v779 = vadd.f32 %v634, %v778
          %v780 = vpop.f32.mrb[0].mxu0
          %781 = vmatprep.mubr.bf16.mxu0 0
          %782 = vmatmul.mubr.bf16.gmra.mrb[0].mxu0 %v674
          %v783 = vpop.f32.mrb[0].mxu0
          %v784 = vadd.f32 %v634, %v783
          %v785 = vpop.f32.mrb[0].mxu0
          %v786 = vpop.f32.mrb[0].mxu0
          %v787 = vadd.f32 %v634, %v786
          %v788 = vpop.f32.mrb[0].mxu0
          %789 = vmatprep.mubr.bf16.mxu0 0
          %790 = vmatmul.mubr.bf16.gmra.mrb[0].mxu0 %v677
          %v791 = vpop.f32.mrb[0].mxu0
          %v792 = vadd.f32 %v634, %v791
          %v793 = vpop.f32.mrb[0].mxu0
          %v794 = vpop.f32.mrb[0].mxu0
          %v795 = vadd.f32 %v634, %v794
          %v796 = vpop.f32.mrb[0].mxu0
          %797 = vmatprep.mubr.bf16.mxu0 0
          %798 = vmatmul.mubr.bf16.gmra.mrb[0].mxu0 %v680
          %v799 = vpop.f32.mrb[0].mxu0
          %v800 = vadd.f32 %v634, %v799
          %v801 = vpop.f32.mrb[0].mxu0
          %v802 = vpop.f32.mrb[0].mxu0
          %v803 = vadd.f32 %v634, %v802
          %v804 = vpop.f32.mrb[0].mxu0
          %805 = vmatprep.mubr.bf16.mxu0 0
          %806 = vmatmul.mubr.bf16.gmra.mrb[0].mxu0 %v683
          %v807 = vpop.f32.mrb[0].mxu0
          %v808 = vadd.f32 %v634, %v807
          %v809 = vpop.f32.mrb[0].mxu0
          %v810 = vpop.f32.mrb[0].mxu0
          %v811 = vadd.f32 %v634, %v810
          %v812 = vpop.f32.mrb[0].mxu0
          %813 = vdwg.mxu0
          %s814 = smul.u32 %s35, 8
          %s815 = ssub.s32 %s814, 2
          %v816 = vstv %s815
          %v817 = vadd.s32 %v816, 1
          %v818 = vadd.s32 %v816, 2
          %v819 = vadd.s32 %v816, 3
          %v820 = vadd.s32 %v816, 4
          %v821 = vadd.s32 %v816, 5
          %v822 = vadd.s32 %v816, 6
          %v823 = vadd.s32 %v816, 7
          %v824 = vadd.s32 %v816, 8
          %v825 = vadd.s32 %v816, 9
          %v826 = vadd.s32 %v816, 10
          %v827 = vadd.s32 %v816, 11
          %vm828 = vcmp.ge.s32.totalorder %v816, 0
          %vm829 = vcmp.ge.s32.totalorder %v817, 0
          %vm830 = vcmp.ge.s32.totalorder %v818, 0
          %vm831 = vcmp.ge.s32.totalorder %v819, 0
          %vm832 = vcmp.ge.s32.totalorder %v820, 0
          %vm833 = vcmp.ge.s32.totalorder %v821, 0
          %vm834 = vcmp.ge.s32.totalorder %v822, 0
          %vm835 = vcmp.ge.s32.totalorder %v823, 0
          %vm836 = vcmp.ge.s32.totalorder %v824, 0
          %vm837 = vcmp.ge.s32.totalorder %v825, 0
          %vm838 = vcmp.ge.s32.totalorder %v826, 0
          %vm839 = vcmp.ge.s32.totalorder %v827, 0
          %vm840 = vcmp.lt.s32.totalorder %v816, 16
          %vm841 = vcmp.lt.s32.totalorder %v817, 16
          %vm842 = vcmp.lt.s32.totalorder %v818, 16
          %vm843 = vcmp.lt.s32.totalorder %v819, 16
          %vm844 = vcmp.lt.s32.totalorder %v820, 16
          %vm845 = vcmp.lt.s32.totalorder %v821, 16
          %vm846 = vcmp.lt.s32.totalorder %v822, 16
          %vm847 = vcmp.lt.s32.totalorder %v823, 16
          %vm848 = vcmp.lt.s32.totalorder %v824, 16
          %vm849 = vcmp.lt.s32.totalorder %v825, 16
          %vm850 = vcmp.lt.s32.totalorder %v826, 16
          %vm851 = vcmp.lt.s32.totalorder %v827, 16
          %vm852 = vmand %vm828, %vm840
          %vm853 = vmand %vm829, %vm841
          %vm854 = vmand %vm830, %vm842
          %vm855 = vmand %vm831, %vm843
          %vm856 = vmand %vm832, %vm844
          %vm857 = vmand %vm833, %vm845
          %vm858 = vmand %vm834, %vm846
          %vm859 = vmand %vm835, %vm847
          %vm860 = vmand %vm836, %vm848
          %vm861 = vmand %vm837, %vm849
          %vm862 = vmand %vm838, %vm850
          %vm863 = vmand %vm839, %vm851
          %v864 = vsel %vm852, 1, 0
          %v865 = vsel %vm853, 1, 0
          %v866 = vsel %vm854, 1, 0
          %v867 = vsel %vm855, 1, 0
          %v868 = vsel %vm856, 1, 0
          %v869 = vsel %vm857, 1, 0
          %v870 = vsel %vm858, 1, 0
          %v871 = vsel %vm859, 1, 0
          %v872 = vsel %vm860, 1, 0
          %v873 = vsel %vm861, 1, 0
          %v874 = vsel %vm862, 1, 0
          %v875 = vsel %vm863, 1, 0
          %vm876 = vcmp.eq.s32.totalorder %v864, 1
          %vm877 = vcmp.eq.s32.totalorder %v865, 1
          %vm878 = vcmp.eq.s32.totalorder %v866, 1
          %vm879 = vcmp.eq.s32.totalorder %v867, 1
          %vm880 = vcmp.eq.s32.totalorder %v868, 1
          %vm881 = vcmp.eq.s32.totalorder %v869, 1
          %vm882 = vcmp.eq.s32.totalorder %v870, 1
          %vm883 = vcmp.eq.s32.totalorder %v871, 1
          %vm884 = vcmp.eq.s32.totalorder %v872, 1
          %vm885 = vcmp.eq.s32.totalorder %v873, 1
          %vm886 = vcmp.eq.s32.totalorder %v874, 1
          %vm887 = vcmp.eq.s32.totalorder %v875, 1
          %v888 = vsel %vm876, %v720, 0.0
          %v889 = vsel %vm876, %v723, 0.0
          %v890 = vsel %vm877, %v728, 0.0
          %v891 = vsel %vm877, %v731, 0.0
          %v892 = vsel %vm878, %v736, 0.0
          %v893 = vsel %vm878, %v739, 0.0
          %v894 = vsel %vm879, %v744, 0.0
          %v895 = vsel %vm879, %v747, 0.0
          %v896 = vsel %vm880, %v752, 0.0
          %v897 = vsel %vm880, %v755, 0.0
          %v898 = vsel %vm881, %v760, 0.0
          %v899 = vsel %vm881, %v763, 0.0
          %v900 = vsel %vm882, %v768, 0.0
          %v901 = vsel %vm882, %v771, 0.0
          %v902 = vsel %vm883, %v776, 0.0
          %v903 = vsel %vm883, %v779, 0.0
          %v904 = vsel %vm884, %v784, 0.0
          %v905 = vsel %vm884, %v787, 0.0
          %v906 = vsel %vm885, %v792, 0.0
          %v907 = vsel %vm885, %v795, 0.0
          %v908 = vsel %vm886, %v800, 0.0
          %v909 = vsel %vm886, %v803, 0.0
          %v910 = vsel %vm887, %v808, 0.0
          %v911 = vsel %vm887, %v811, 0.0
          %v912 = vlaneseq
          %v913 = vshrl.u32 %v912, 7
          %v914 = vadd.s32 %v913, 8
          %v915 = vld [vmem:[#allocation10] sm:$0x1f]
          %v916 = vld [vmem:[#allocation10 + $0x8] sm:$0x1f]
          %v917 = vld [vmem:[#allocation10 + $0x10] sm:$0x1f]
          %v918 = vld [vmem:[#allocation10 + $0x18] sm:$0x1f]
          %v919 = vld [vmem:[#allocation10 + $0x20] sm:$0x1f]
          %v920 = vlaneseq
          %v921 = vshrl.u32 %v920, 7
          %v922 = vsub.s32 0, %v921
          %v923 = vrot.slane %v915, %v922
          %v924 = vmul.f32 %v888, %v923
          %v925 = vmul.f32 %v889, %v923
          %v926 = vmul.f32 %v890, %v923
          %v927 = vmul.f32 %v891, %v923
          %v928 = vmul.f32 %v892, %v923
          %v929 = vmul.f32 %v893, %v923
          %v930 = vmul.f32 %v894, %v923
          %v931 = vmul.f32 %v895, %v923
          %v932 = vmul.f32 %v896, %v923
          %v933 = vmul.f32 %v897, %v923
          %v934 = vmul.f32 %v898, %v923
          %v935 = vmul.f32 %v899, %v923
          %v936 = vmul.f32 %v900, %v923
          %v937 = vmul.f32 %v901, %v923
          %v938 = vmul.f32 %v902, %v923
          %v939 = vmul.f32 %v903, %v923
          %v940 = vlaneseq
          %v941 = vshrl.u32 %v940, 7
          %v942 = vsub.s32 0, %v941
          %v943 = vrot.slane %v916, %v942
          %v944 = vmul.f32 %v890, %v943
          %v945 = vmul.f32 %v891, %v943
          %v946 = vmul.f32 %v892, %v943
          %v947 = vmul.f32 %v893, %v943
          %v948 = vmul.f32 %v894, %v943
          %v949 = vmul.f32 %v895, %v943
          %v950 = vmul.f32 %v896, %v943
          %v951 = vmul.f32 %v897, %v943
          %v952 = vmul.f32 %v898, %v943
          %v953 = vmul.f32 %v899, %v943
          %v954 = vmul.f32 %v900, %v943
          %v955 = vmul.f32 %v901, %v943
          %v956 = vmul.f32 %v902, %v943
          %v957 = vmul.f32 %v903, %v943
          %v958 = vmul.f32 %v904, %v943
          %v959 = vmul.f32 %v905, %v943
          %v960 = vadd.f32 %v924, %v944
          %v961 = vadd.f32 %v925, %v945
          %v962 = vadd.f32 %v926, %v946
          %v963 = vadd.f32 %v927, %v947
          %v964 = vadd.f32 %v928, %v948
          %v965 = vadd.f32 %v929, %v949
          %v966 = vadd.f32 %v930, %v950
          %v967 = vadd.f32 %v931, %v951
          %v968 = vadd.f32 %v932, %v952
          %v969 = vadd.f32 %v933, %v953
          %v970 = vadd.f32 %v934, %v954
          %v971 = vadd.f32 %v935, %v955
          %v972 = vadd.f32 %v936, %v956
          %v973 = vadd.f32 %v937, %v957
          %v974 = vadd.f32 %v938, %v958
          %v975 = vadd.f32 %v939, %v959
          %v976 = vlaneseq
          %v977 = vshrl.u32 %v976, 7
          %v978 = vsub.s32 0, %v977
          %v979 = vrot.slane %v917, %v978
          %v980 = vmul.f32 %v892, %v979
          %v981 = vmul.f32 %v893, %v979
          %v982 = vmul.f32 %v894, %v979
          %v983 = vmul.f32 %v895, %v979
          %v984 = vmul.f32 %v896, %v979
          %v985 = vmul.f32 %v897, %v979
          %v986 = vmul.f32 %v898, %v979
          %v987 = vmul.f32 %v899, %v979
          %v988 = vmul.f32 %v900, %v979
          %v989 = vmul.f32 %v901, %v979
          %v990 = vmul.f32 %v902, %v979
          %v991 = vmul.f32 %v903, %v979
          %v992 = vmul.f32 %v904, %v979
          %v993 = vmul.f32 %v905, %v979
          %v994 = vmul.f32 %v906, %v979
          %v995 = vmul.f32 %v907, %v979
          %v996 = vadd.f32 %v960, %v980
          %v997 = vadd.f32 %v961, %v981
          %v998 = vadd.f32 %v962, %v982
          %v999 = vadd.f32 %v963, %v983
          %v1000 = vadd.f32 %v964, %v984
          %v1001 = vadd.f32 %v965, %v985
          %v1002 = vadd.f32 %v966, %v986
          %v1003 = vadd.f32 %v967, %v987
          %v1004 = vadd.f32 %v968, %v988
          %v1005 = vadd.f32 %v969, %v989
          %v1006 = vadd.f32 %v970, %v990
          %v1007 = vadd.f32 %v971, %v991
          %v1008 = vadd.f32 %v972, %v992
          %v1009 = vadd.f32 %v973, %v993
          %v1010 = vadd.f32 %v974, %v994
          %v1011 = vadd.f32 %v975, %v995
          %v1012 = vlaneseq
          %v1013 = vshrl.u32 %v1012, 7
          %v1014 = vsub.s32 0, %v1013
          %v1015 = vrot.slane %v918, %v1014
          %v1016 = vmul.f32 %v894, %v1015
          %v1017 = vmul.f32 %v895, %v1015
          %v1018 = vmul.f32 %v896, %v1015
          %v1019 = vmul.f32 %v897, %v1015
          %v1020 = vmul.f32 %v898, %v1015
          %v1021 = vmul.f32 %v899, %v1015
          %v1022 = vmul.f32 %v900, %v1015
          %v1023 = vmul.f32 %v901, %v1015
          %v1024 = vmul.f32 %v902, %v1015
          %v1025 = vmul.f32 %v903, %v1015
          %v1026 = vmul.f32 %v904, %v1015
          %v1027 = vmul.f32 %v905, %v1015
          %v1028 = vmul.f32 %v906, %v1015
          %v1029 = vmul.f32 %v907, %v1015
          %v1030 = vmul.f32 %v908, %v1015
          %v1031 = vmul.f32 %v909, %v1015
          %v1032 = vadd.f32 %v996, %v1016
          %v1033 = vadd.f32 %v997, %v1017
          %v1034 = vadd.f32 %v998, %v1018
          %v1035 = vadd.f32 %v999, %v1019
          %v1036 = vadd.f32 %v1000, %v1020
          %v1037 = vadd.f32 %v1001, %v1021
          %v1038 = vadd.f32 %v1002, %v1022
          %v1039 = vadd.f32 %v1003, %v1023
          %v1040 = vadd.f32 %v1004, %v1024
          %v1041 = vadd.f32 %v1005, %v1025
          %v1042 = vadd.f32 %v1006, %v1026
          %v1043 = vadd.f32 %v1007, %v1027
          %v1044 = vadd.f32 %v1008, %v1028
          %v1045 = vadd.f32 %v1009, %v1029
          %v1046 = vadd.f32 %v1010, %v1030
          %v1047 = vadd.f32 %v1011, %v1031
          %v1048 = vlaneseq
          %v1049 = vshrl.u32 %v1048, 7
          %v1050 = vsub.s32 0, %v1049
          %v1051 = vrot.slane %v919, %v1050
          %v1052 = vmul.f32 %v896, %v1051
          %v1053 = vmul.f32 %v897, %v1051
          %v1054 = vmul.f32 %v898, %v1051
          %v1055 = vmul.f32 %v899, %v1051
          %v1056 = vmul.f32 %v900, %v1051
          %v1057 = vmul.f32 %v901, %v1051
          %v1058 = vmul.f32 %v902, %v1051
          %v1059 = vmul.f32 %v903, %v1051
          %v1060 = vmul.f32 %v904, %v1051
          %v1061 = vmul.f32 %v905, %v1051
          %v1062 = vmul.f32 %v906, %v1051
          %v1063 = vmul.f32 %v907, %v1051
          %v1064 = vmul.f32 %v908, %v1051
          %v1065 = vmul.f32 %v909, %v1051
          %v1066 = vmul.f32 %v910, %v1051
          %v1067 = vmul.f32 %v911, %v1051
          %v1068 = vadd.f32 %v1032, %v1052
          %v1069 = vadd.f32 %v1033, %v1053
          %v1070 = vadd.f32 %v1034, %v1054
          %v1071 = vadd.f32 %v1035, %v1055
          %v1072 = vadd.f32 %v1036, %v1056
          %v1073 = vadd.f32 %v1037, %v1057
          %v1074 = vadd.f32 %v1038, %v1058
          %v1075 = vadd.f32 %v1039, %v1059
          %v1076 = vadd.f32 %v1040, %v1060
          %v1077 = vadd.f32 %v1041, %v1061
          %v1078 = vadd.f32 %v1042, %v1062
          %v1079 = vadd.f32 %v1043, %v1063
          %v1080 = vadd.f32 %v1044, %v1064
          %v1081 = vadd.f32 %v1045, %v1065
          %v1082 = vadd.f32 %v1046, %v1066
          %v1083 = vadd.f32 %v1047, %v1067
          %v1084 = vrot.slane %v1068, 6
          %v1085 = vrot.slane %v1070, 6
          %v1086 = vrot.slane %v1072, 6
          %v1087 = vrot.slane %v1074, 6
          %v1088 = vrot.slane %v1076, 6
          %v1089 = vrot.slane %v1078, 6
          %v1090 = vrot.slane %v1080, 6
          %v1091 = vrot.slane %v1082, 6
          %v1092 = vrot.slane %v1069, 6
          %v1093 = vrot.slane %v1071, 6
          %v1094 = vrot.slane %v1073, 6
          %v1095 = vrot.slane %v1075, 6
          %v1096 = vrot.slane %v1077, 6
          %v1097 = vrot.slane %v1079, 6
          %v1098 = vrot.slane %v1081, 6
          %v1099 = vrot.slane %v1083, 6
          %vm1100 = vcmp.lt.s32.totalorder %v913, 2
          %v1101 = vsel %vm1100, %v1084, %v1092
          %v1102 = vsel %vm1100, %v1085, %v1093
          %v1103 = vsel %vm1100, %v1086, %v1094
          %v1104 = vsel %vm1100, %v1087, %v1095
          %v1105 = vsel %vm1100, %v1088, %v1096
          %v1106 = vsel %vm1100, %v1089, %v1097
          %v1107 = vsel %vm1100, %v1090, %v1098
          %v1108 = vsel %vm1100, %v1091, %v1099
          %v1109 = vsel %vm1100, %v1092, %v1084
          %v1110 = vsel %vm1100, %v1093, %v1085
          %v1111 = vsel %vm1100, %v1094, %v1086
          %v1112 = vsel %vm1100, %v1095, %v1087
          %v1113 = vsel %vm1100, %v1096, %v1088
          %v1114 = vsel %vm1100, %v1097, %v1089
          %v1115 = vsel %vm1100, %v1098, %v1090
          %v1116 = vsel %vm1100, %v1099, %v1091
          %v1117 = vadd.s32 %v913, 4294967294
          %v1118 = vadd.s32 %v914, 4294967294
          %vm1119 = vcmp.ge.s32.totalorder %v1117, 0
          %vm1120 = vcmp.ge.s32.totalorder %v1118, 0
          %vm1121 = vcmp.lt.s32.totalorder %v1117, 16
          %vm1122 = vcmp.lt.s32.totalorder %v1118, 16
          %vm1123 = vmand %vm1119, %vm1121
          %vm1124 = vmand %vm1120, %vm1122
          %v1125 = vsel %vm1123, 1, 0
          %v1126 = vsel %vm1124, 1, 0
          %vm1127 = vcmp.eq.s32.totalorder %v1125, 1
          %vm1128 = vcmp.eq.s32.totalorder %v1126, 1
          %v1129 = vsel %vm1127, %v1109, 0.0
          %v1130 = vsel %vm1128, %v1101, 0.0
          %v1131 = vsel %vm1127, %v1110, 0.0
          %v1132 = vsel %vm1128, %v1102, 0.0
          %v1133 = vsel %vm1127, %v1111, 0.0
          %v1134 = vsel %vm1128, %v1103, 0.0
          %v1135 = vsel %vm1127, %v1112, 0.0
          %v1136 = vsel %vm1128, %v1104, 0.0
          %v1137 = vsel %vm1127, %v1113, 0.0
          %v1138 = vsel %vm1128, %v1105, 0.0
          %v1139 = vsel %vm1127, %v1114, 0.0
          %v1140 = vsel %vm1128, %v1106, 0.0
          %v1141 = vsel %vm1127, %v1115, 0.0
          %v1142 = vsel %vm1128, %v1107, 0.0
          %v1143 = vsel %vm1127, %v1116, 0.0
          %v1144 = vsel %vm1128, %v1108, 0.0
          %v1145 = vlaneseq
          %v1146 = vshrl.u32 %v1145, 7
          %v1147 = vsub.s32 1, %v1146
          %v1148 = vrot.slane %v915, %v1147
          %v1149 = vmul.f32 %v888, %v1148
          %v1150 = vmul.f32 %v889, %v1148
          %v1151 = vmul.f32 %v890, %v1148
          %v1152 = vmul.f32 %v891, %v1148
          %v1153 = vmul.f32 %v892, %v1148
          %v1154 = vmul.f32 %v893, %v1148
          %v1155 = vmul.f32 %v894, %v1148
          %v1156 = vmul.f32 %v895, %v1148
          %v1157 = vmul.f32 %v896, %v1148
          %v1158 = vmul.f32 %v897, %v1148
          %v1159 = vmul.f32 %v898, %v1148
          %v1160 = vmul.f32 %v899, %v1148
          %v1161 = vmul.f32 %v900, %v1148
          %v1162 = vmul.f32 %v901, %v1148
          %v1163 = vmul.f32 %v902, %v1148
          %v1164 = vmul.f32 %v903, %v1148
          %v1165 = vlaneseq
          %v1166 = vshrl.u32 %v1165, 7
          %v1167 = vsub.s32 1, %v1166
          %v1168 = vrot.slane %v916, %v1167
          %v1169 = vmul.f32 %v890, %v1168
          %v1170 = vmul.f32 %v891, %v1168
          %v1171 = vmul.f32 %v892, %v1168
          %v1172 = vmul.f32 %v893, %v1168
          %v1173 = vmul.f32 %v894, %v1168
          %v1174 = vmul.f32 %v895, %v1168
          %v1175 = vmul.f32 %v896, %v1168
          %v1176 = vmul.f32 %v897, %v1168
          %v1177 = vmul.f32 %v898, %v1168
          %v1178 = vmul.f32 %v899, %v1168
          %v1179 = vmul.f32 %v900, %v1168
          %v1180 = vmul.f32 %v901, %v1168
          %v1181 = vmul.f32 %v902, %v1168
          %v1182 = vmul.f32 %v903, %v1168
          %v1183 = vmul.f32 %v904, %v1168
          %v1184 = vmul.f32 %v905, %v1168
          %v1185 = vadd.f32 %v1149, %v1169
          %v1186 = vadd.f32 %v1150, %v1170
          %v1187 = vadd.f32 %v1151, %v1171
          %v1188 = vadd.f32 %v1152, %v1172
          %v1189 = vadd.f32 %v1153, %v1173
          %v1190 = vadd.f32 %v1154, %v1174
          %v1191 = vadd.f32 %v1155, %v1175
          %v1192 = vadd.f32 %v1156, %v1176
          %v1193 = vadd.f32 %v1157, %v1177
          %v1194 = vadd.f32 %v1158, %v1178
          %v1195 = vadd.f32 %v1159, %v1179
          %v1196 = vadd.f32 %v1160, %v1180
          %v1197 = vadd.f32 %v1161, %v1181
          %v1198 = vadd.f32 %v1162, %v1182
          %v1199 = vadd.f32 %v1163, %v1183
          %v1200 = vadd.f32 %v1164, %v1184
          %v1201 = vlaneseq
          %v1202 = vshrl.u32 %v1201, 7
          %v1203 = vsub.s32 1, %v1202
          %v1204 = vrot.slane %v917, %v1203
          %v1205 = vmul.f32 %v892, %v1204
          %v1206 = vmul.f32 %v893, %v1204
          %v1207 = vmul.f32 %v894, %v1204
          %v1208 = vmul.f32 %v895, %v1204
          %v1209 = vmul.f32 %v896, %v1204
          %v1210 = vmul.f32 %v897, %v1204
          %v1211 = vmul.f32 %v898, %v1204
          %v1212 = vmul.f32 %v899, %v1204
          %v1213 = vmul.f32 %v900, %v1204
          %v1214 = vmul.f32 %v901, %v1204
          %v1215 = vmul.f32 %v902, %v1204
          %v1216 = vmul.f32 %v903, %v1204
          %v1217 = vmul.f32 %v904, %v1204
          %v1218 = vmul.f32 %v905, %v1204
          %v1219 = vmul.f32 %v906, %v1204
          %v1220 = vmul.f32 %v907, %v1204
          %v1221 = vadd.f32 %v1185, %v1205
          %v1222 = vadd.f32 %v1186, %v1206
          %v1223 = vadd.f32 %v1187, %v1207
          %v1224 = vadd.f32 %v1188, %v1208
          %v1225 = vadd.f32 %v1189, %v1209
          %v1226 = vadd.f32 %v1190, %v1210
          %v1227 = vadd.f32 %v1191, %v1211
          %v1228 = vadd.f32 %v1192, %v1212
          %v1229 = vadd.f32 %v1193, %v1213
          %v1230 = vadd.f32 %v1194, %v1214
          %v1231 = vadd.f32 %v1195, %v1215
          %v1232 = vadd.f32 %v1196, %v1216
          %v1233 = vadd.f32 %v1197, %v1217
          %v1234 = vadd.f32 %v1198, %v1218
          %v1235 = vadd.f32 %v1199, %v1219
          %v1236 = vadd.f32 %v1200, %v1220
          %v1237 = vlaneseq
          %v1238 = vshrl.u32 %v1237, 7
          %v1239 = vsub.s32 1, %v1238
          %v1240 = vrot.slane %v918, %v1239
          %v1241 = vmul.f32 %v894, %v1240
          %v1242 = vmul.f32 %v895, %v1240
          %v1243 = vmul.f32 %v896, %v1240
          %v1244 = vmul.f32 %v897, %v1240
          %v1245 = vmul.f32 %v898, %v1240
          %v1246 = vmul.f32 %v899, %v1240
          %v1247 = vmul.f32 %v900, %v1240
          %v1248 = vmul.f32 %v901, %v1240
          %v1249 = vmul.f32 %v902, %v1240
          %v1250 = vmul.f32 %v903, %v1240
          %v1251 = vmul.f32 %v904, %v1240
          %v1252 = vmul.f32 %v905, %v1240
          %v1253 = vmul.f32 %v906, %v1240
          %v1254 = vmul.f32 %v907, %v1240
          %v1255 = vmul.f32 %v908, %v1240
          %v1256 = vmul.f32 %v909, %v1240
          %v1257 = vadd.f32 %v1221, %v1241
          %v1258 = vadd.f32 %v1222, %v1242
          %v1259 = vadd.f32 %v1223, %v1243
          %v1260 = vadd.f32 %v1224, %v1244
          %v1261 = vadd.f32 %v1225, %v1245
          %v1262 = vadd.f32 %v1226, %v1246
          %v1263 = vadd.f32 %v1227, %v1247
          %v1264 = vadd.f32 %v1228, %v1248
          %v1265 = vadd.f32 %v1229, %v1249
          %v1266 = vadd.f32 %v1230, %v1250
          %v1267 = vadd.f32 %v1231, %v1251
          %v1268 = vadd.f32 %v1232, %v1252
          %v1269 = vadd.f32 %v1233, %v1253
          %v1270 = vadd.f32 %v1234, %v1254
          %v1271 = vadd.f32 %v1235, %v1255
          %v1272 = vadd.f32 %v1236, %v1256
          %v1273 = vlaneseq
          %v1274 = vshrl.u32 %v1273, 7
          %v1275 = vsub.s32 1, %v1274
          %v1276 = vrot.slane %v919, %v1275
          %v1277 = vmul.f32 %v896, %v1276
          %v1278 = vmul.f32 %v897, %v1276
          %v1279 = vmul.f32 %v898, %v1276
          %v1280 = vmul.f32 %v899, %v1276
          %v1281 = vmul.f32 %v900, %v1276
          %v1282 = vmul.f32 %v901, %v1276
          %v1283 = vmul.f32 %v902, %v1276
          %v1284 = vmul.f32 %v903, %v1276
          %v1285 = vmul.f32 %v904, %v1276
          %v1286 = vmul.f32 %v905, %v1276
          %v1287 = vmul.f32 %v906, %v1276
          %v1288 = vmul.f32 %v907, %v1276
          %v1289 = vmul.f32 %v908, %v1276
          %v1290 = vmul.f32 %v909, %v1276
          %v1291 = vmul.f32 %v910, %v1276
          %v1292 = vmul.f32 %v911, %v1276
          %v1293 = vadd.f32 %v1257, %v1277
          %v1294 = vadd.f32 %v1258, %v1278
          %v1295 = vadd.f32 %v1259, %v1279
          %v1296 = vadd.f32 %v1260, %v1280
          %v1297 = vadd.f32 %v1261, %v1281
          %v1298 = vadd.f32 %v1262, %v1282
          %v1299 = vadd.f32 %v1263, %v1283
          %v1300 = vadd.f32 %v1264, %v1284
          %v1301 = vadd.f32 %v1265, %v1285
          %v1302 = vadd.f32 %v1266, %v1286
          %v1303 = vadd.f32 %v1267, %v1287
          %v1304 = vadd.f32 %v1268, %v1288
          %v1305 = vadd.f32 %v1269, %v1289
          %v1306 = vadd.f32 %v1270, %v1290
          %v1307 = vadd.f32 %v1271, %v1291
          %v1308 = vadd.f32 %v1272, %v1292
          %v1309 = vrot.slane %v1293, 7
          %v1310 = vrot.slane %v1295, 7
          %v1311 = vrot.slane %v1297, 7
          %v1312 = vrot.slane %v1299, 7
          %v1313 = vrot.slane %v1301, 7
          %v1314 = vrot.slane %v1303, 7
          %v1315 = vrot.slane %v1305, 7
          %v1316 = vrot.slane %v1307, 7
          %v1317 = vrot.slane %v1294, 7
          %v1318 = vrot.slane %v1296, 7
          %v1319 = vrot.slane %v1298, 7
          %v1320 = vrot.slane %v1300, 7
          %v1321 = vrot.slane %v1302, 7
          %v1322 = vrot.slane %v1304, 7
          %v1323 = vrot.slane %v1306, 7
          %v1324 = vrot.slane %v1308, 7
          %vm1325 = vcmp.lt.s32.totalorder %v913, 1
          %v1326 = vsel %vm1325, %v1309, %v1317
          %v1327 = vsel %vm1325, %v1310, %v1318
          %v1328 = vsel %vm1325, %v1311, %v1319
          %v1329 = vsel %vm1325, %v1312, %v1320
          %v1330 = vsel %vm1325, %v1313, %v1321
          %v1331 = vsel %vm1325, %v1314, %v1322
          %v1332 = vsel %vm1325, %v1315, %v1323
          %v1333 = vsel %vm1325, %v1316, %v1324
          %v1334 = vsel %vm1325, %v1317, %v1309
          %v1335 = vsel %vm1325, %v1318, %v1310
          %v1336 = vsel %vm1325, %v1319, %v1311
          %v1337 = vsel %vm1325, %v1320, %v1312
          %v1338 = vsel %vm1325, %v1321, %v1313
          %v1339 = vsel %vm1325, %v1322, %v1314
          %v1340 = vsel %vm1325, %v1323, %v1315
          %v1341 = vsel %vm1325, %v1324, %v1316
          %v1342 = vadd.s32 %v913, 4294967295
          %v1343 = vadd.s32 %v914, 4294967295
          %vm1344 = vcmp.ge.s32.totalorder %v1342, 0
          %vm1345 = vcmp.ge.s32.totalorder %v1343, 0
          %vm1346 = vcmp.lt.s32.totalorder %v1342, 16
          %vm1347 = vcmp.lt.s32.totalorder %v1343, 16
          %vm1348 = vmand %vm1344, %vm1346
          %vm1349 = vmand %vm1345, %vm1347
          %v1350 = vsel %vm1348, 1, 0
          %v1351 = vsel %vm1349, 1, 0
          %vm1352 = vcmp.eq.s32.totalorder %v1350, 1
          %vm1353 = vcmp.eq.s32.totalorder %v1351, 1
          %v1354 = vsel %vm1352, %v1334, 0.0
          %v1355 = vsel %vm1353, %v1326, 0.0
          %v1356 = vsel %vm1352, %v1335, 0.0
          %v1357 = vsel %vm1353, %v1327, 0.0
          %v1358 = vsel %vm1352, %v1336, 0.0
          %v1359 = vsel %vm1353, %v1328, 0.0
          %v1360 = vsel %vm1352, %v1337, 0.0
          %v1361 = vsel %vm1353, %v1329, 0.0
          %v1362 = vsel %vm1352, %v1338, 0.0
          %v1363 = vsel %vm1353, %v1330, 0.0
          %v1364 = vsel %vm1352, %v1339, 0.0
          %v1365 = vsel %vm1353, %v1331, 0.0
          %v1366 = vsel %vm1352, %v1340, 0.0
          %v1367 = vsel %vm1353, %v1332, 0.0
          %v1368 = vsel %vm1352, %v1341, 0.0
          %v1369 = vsel %vm1353, %v1333, 0.0
          %v1370 = vadd.f32 %v1129, %v1354
          %v1371 = vadd.f32 %v1130, %v1355
          %v1372 = vadd.f32 %v1131, %v1356
          %v1373 = vadd.f32 %v1132, %v1357
          %v1374 = vadd.f32 %v1133, %v1358
          %v1375 = vadd.f32 %v1134, %v1359
          %v1376 = vadd.f32 %v1135, %v1360
          %v1377 = vadd.f32 %v1136, %v1361
          %v1378 = vadd.f32 %v1137, %v1362
          %v1379 = vadd.f32 %v1138, %v1363
          %v1380 = vadd.f32 %v1139, %v1364
          %v1381 = vadd.f32 %v1140, %v1365
          %v1382 = vadd.f32 %v1141, %v1366
          %v1383 = vadd.f32 %v1142, %v1367
          %v1384 = vadd.f32 %v1143, %v1368
          %v1385 = vadd.f32 %v1144, %v1369
          %v1386 = vlaneseq
          %v1387 = vshrl.u32 %v1386, 7
          %v1388 = vsub.s32 2, %v1387
          %v1389 = vrot.slane %v915, %v1388
          %v1390 = vmul.f32 %v888, %v1389
          %v1391 = vmul.f32 %v889, %v1389
          %v1392 = vmul.f32 %v890, %v1389
          %v1393 = vmul.f32 %v891, %v1389
          %v1394 = vmul.f32 %v892, %v1389
          %v1395 = vmul.f32 %v893, %v1389
          %v1396 = vmul.f32 %v894, %v1389
          %v1397 = vmul.f32 %v895, %v1389
          %v1398 = vmul.f32 %v896, %v1389
          %v1399 = vmul.f32 %v897, %v1389
          %v1400 = vmul.f32 %v898, %v1389
          %v1401 = vmul.f32 %v899, %v1389
          %v1402 = vmul.f32 %v900, %v1389
          %v1403 = vmul.f32 %v901, %v1389
          %v1404 = vmul.f32 %v902, %v1389
          %v1405 = vmul.f32 %v903, %v1389
          %v1406 = vlaneseq
          %v1407 = vshrl.u32 %v1406, 7
          %v1408 = vsub.s32 2, %v1407
          %v1409 = vrot.slane %v916, %v1408
          %v1410 = vmul.f32 %v890, %v1409
          %v1411 = vmul.f32 %v891, %v1409
          %v1412 = vmul.f32 %v892, %v1409
          %v1413 = vmul.f32 %v893, %v1409
          %v1414 = vmul.f32 %v894, %v1409
          %v1415 = vmul.f32 %v895, %v1409
          %v1416 = vmul.f32 %v896, %v1409
          %v1417 = vmul.f32 %v897, %v1409
          %v1418 = vmul.f32 %v898, %v1409
          %v1419 = vmul.f32 %v899, %v1409
          %v1420 = vmul.f32 %v900, %v1409
          %v1421 = vmul.f32 %v901, %v1409
          %v1422 = vmul.f32 %v902, %v1409
          %v1423 = vmul.f32 %v903, %v1409
          %v1424 = vmul.f32 %v904, %v1409
          %v1425 = vmul.f32 %v905, %v1409
          %v1426 = vadd.f32 %v1390, %v1410
          %v1427 = vadd.f32 %v1391, %v1411
          %v1428 = vadd.f32 %v1392, %v1412
          %v1429 = vadd.f32 %v1393, %v1413
          %v1430 = vadd.f32 %v1394, %v1414
          %v1431 = vadd.f32 %v1395, %v1415
          %v1432 = vadd.f32 %v1396, %v1416
          %v1433 = vadd.f32 %v1397, %v1417
          %v1434 = vadd.f32 %v1398, %v1418
          %v1435 = vadd.f32 %v1399, %v1419
          %v1436 = vadd.f32 %v1400, %v1420
          %v1437 = vadd.f32 %v1401, %v1421
          %v1438 = vadd.f32 %v1402, %v1422
          %v1439 = vadd.f32 %v1403, %v1423
          %v1440 = vadd.f32 %v1404, %v1424
          %v1441 = vadd.f32 %v1405, %v1425
          %v1442 = vlaneseq
          %v1443 = vshrl.u32 %v1442, 7
          %v1444 = vsub.s32 2, %v1443
          %v1445 = vrot.slane %v917, %v1444
          %v1446 = vmul.f32 %v892, %v1445
          %v1447 = vmul.f32 %v893, %v1445
          %v1448 = vmul.f32 %v894, %v1445
          %v1449 = vmul.f32 %v895, %v1445
          %v1450 = vmul.f32 %v896, %v1445
          %v1451 = vmul.f32 %v897, %v1445
          %v1452 = vmul.f32 %v898, %v1445
          %v1453 = vmul.f32 %v899, %v1445
          %v1454 = vmul.f32 %v900, %v1445
          %v1455 = vmul.f32 %v901, %v1445
          %v1456 = vmul.f32 %v902, %v1445
          %v1457 = vmul.f32 %v903, %v1445
          %v1458 = vmul.f32 %v904, %v1445
          %v1459 = vmul.f32 %v905, %v1445
          %v1460 = vmul.f32 %v906, %v1445
          %v1461 = vmul.f32 %v907, %v1445
          %v1462 = vadd.f32 %v1426, %v1446
          %v1463 = vadd.f32 %v1427, %v1447
          %v1464 = vadd.f32 %v1428, %v1448
          %v1465 = vadd.f32 %v1429, %v1449
          %v1466 = vadd.f32 %v1430, %v1450
          %v1467 = vadd.f32 %v1431, %v1451
          %v1468 = vadd.f32 %v1432, %v1452
          %v1469 = vadd.f32 %v1433, %v1453
          %v1470 = vadd.f32 %v1434, %v1454
          %v1471 = vadd.f32 %v1435, %v1455
          %v1472 = vadd.f32 %v1436, %v1456
          %v1473 = vadd.f32 %v1437, %v1457
          %v1474 = vadd.f32 %v1438, %v1458
          %v1475 = vadd.f32 %v1439, %v1459
          %v1476 = vadd.f32 %v1440, %v1460
          %v1477 = vadd.f32 %v1441, %v1461
          %v1478 = vlaneseq
          %v1479 = vshrl.u32 %v1478, 7
          %v1480 = vsub.s32 2, %v1479
          %v1481 = vrot.slane %v918, %v1480
          %v1482 = vmul.f32 %v894, %v1481
          %v1483 = vmul.f32 %v895, %v1481
          %v1484 = vmul.f32 %v896, %v1481
          %v1485 = vmul.f32 %v897, %v1481
          %v1486 = vmul.f32 %v898, %v1481
          %v1487 = vmul.f32 %v899, %v1481
          %v1488 = vmul.f32 %v900, %v1481
          %v1489 = vmul.f32 %v901, %v1481
          %v1490 = vmul.f32 %v902, %v1481
          %v1491 = vmul.f32 %v903, %v1481
          %v1492 = vmul.f32 %v904, %v1481
          %v1493 = vmul.f32 %v905, %v1481
          %v1494 = vmul.f32 %v906, %v1481
          %v1495 = vmul.f32 %v907, %v1481
          %v1496 = vmul.f32 %v908, %v1481
          %v1497 = vmul.f32 %v909, %v1481
          %v1498 = vadd.f32 %v1462, %v1482
          %v1499 = vadd.f32 %v1463, %v1483
          %v1500 = vadd.f32 %v1464, %v1484
          %v1501 = vadd.f32 %v1465, %v1485
          %v1502 = vadd.f32 %v1466, %v1486
          %v1503 = vadd.f32 %v1467, %v1487
          %v1504 = vadd.f32 %v1468, %v1488
          %v1505 = vadd.f32 %v1469, %v1489
          %v1506 = vadd.f32 %v1470, %v1490
          %v1507 = vadd.f32 %v1471, %v1491
          %v1508 = vadd.f32 %v1472, %v1492
          %v1509 = vadd.f32 %v1473, %v1493
          %v1510 = vadd.f32 %v1474, %v1494
          %v1511 = vadd.f32 %v1475, %v1495
          %v1512 = vadd.f32 %v1476, %v1496
          %v1513 = vadd.f32 %v1477, %v1497
          %v1514 = vlaneseq
          %v1515 = vshrl.u32 %v1514, 7
          %v1516 = vsub.s32 2, %v1515
          %v1517 = vrot.slane %v919, %v1516
          %v1518 = vmul.f32 %v896, %v1517
          %v1519 = vmul.f32 %v897, %v1517
          %v1520 = vmul.f32 %v898, %v1517
          %v1521 = vmul.f32 %v899, %v1517
          %v1522 = vmul.f32 %v900, %v1517
          %v1523 = vmul.f32 %v901, %v1517
          %v1524 = vmul.f32 %v902, %v1517
          %v1525 = vmul.f32 %v903, %v1517
          %v1526 = vmul.f32 %v904, %v1517
          %v1527 = vmul.f32 %v905, %v1517
          %v1528 = vmul.f32 %v906, %v1517
          %v1529 = vmul.f32 %v907, %v1517
          %v1530 = vmul.f32 %v908, %v1517
          %v1531 = vmul.f32 %v909, %v1517
          %v1532 = vmul.f32 %v910, %v1517
          %v1533 = vmul.f32 %v911, %v1517
          %v1534 = vadd.f32 %v1498, %v1518
          %v1535 = vadd.f32 %v1499, %v1519
          %v1536 = vadd.f32 %v1500, %v1520
          %v1537 = vadd.f32 %v1501, %v1521
          %v1538 = vadd.f32 %v1502, %v1522
          %v1539 = vadd.f32 %v1503, %v1523
          %v1540 = vadd.f32 %v1504, %v1524
          %v1541 = vadd.f32 %v1505, %v1525
          %v1542 = vadd.f32 %v1506, %v1526
          %v1543 = vadd.f32 %v1507, %v1527
          %v1544 = vadd.f32 %v1508, %v1528
          %v1545 = vadd.f32 %v1509, %v1529
          %v1546 = vadd.f32 %v1510, %v1530
          %v1547 = vadd.f32 %v1511, %v1531
          %v1548 = vadd.f32 %v1512, %v1532
          %v1549 = vadd.f32 %v1513, %v1533
          %v1550 = vadd.f32 %v1370, %v1534
          %v1551 = vadd.f32 %v1371, %v1535
          %v1552 = vadd.f32 %v1372, %v1536
          %v1553 = vadd.f32 %v1373, %v1537
          %v1554 = vadd.f32 %v1374, %v1538
          %v1555 = vadd.f32 %v1375, %v1539
          %v1556 = vadd.f32 %v1376, %v1540
          %v1557 = vadd.f32 %v1377, %v1541
          %v1558 = vadd.f32 %v1378, %v1542
          %v1559 = vadd.f32 %v1379, %v1543
          %v1560 = vadd.f32 %v1380, %v1544
          %v1561 = vadd.f32 %v1381, %v1545
          %v1562 = vadd.f32 %v1382, %v1546
          %v1563 = vadd.f32 %v1383, %v1547
          %v1564 = vadd.f32 %v1384, %v1548
          %v1565 = vadd.f32 %v1385, %v1549
          %v1566 = vlaneseq
          %v1567 = vshrl.u32 %v1566, 7
          %v1568 = vsub.s32 3, %v1567
          %v1569 = vrot.slane %v915, %v1568
          %v1570 = vmul.f32 %v888, %v1569
          %v1571 = vmul.f32 %v889, %v1569
          %v1572 = vmul.f32 %v890, %v1569
          %v1573 = vmul.f32 %v891, %v1569
          %v1574 = vmul.f32 %v892, %v1569
          %v1575 = vmul.f32 %v893, %v1569
          %v1576 = vmul.f32 %v894, %v1569
          %v1577 = vmul.f32 %v895, %v1569
          %v1578 = vmul.f32 %v896, %v1569
          %v1579 = vmul.f32 %v897, %v1569
          %v1580 = vmul.f32 %v898, %v1569
          %v1581 = vmul.f32 %v899, %v1569
          %v1582 = vmul.f32 %v900, %v1569
          %v1583 = vmul.f32 %v901, %v1569
          %v1584 = vmul.f32 %v902, %v1569
          %v1585 = vmul.f32 %v903, %v1569
          %v1586 = vlaneseq
          %v1587 = vshrl.u32 %v1586, 7
          %v1588 = vsub.s32 3, %v1587
          %v1589 = vrot.slane %v916, %v1588
          %v1590 = vmul.f32 %v890, %v1589
          %v1591 = vmul.f32 %v891, %v1589
          %v1592 = vmul.f32 %v892, %v1589
          %v1593 = vmul.f32 %v893, %v1589
          %v1594 = vmul.f32 %v894, %v1589
          %v1595 = vmul.f32 %v895, %v1589
          %v1596 = vmul.f32 %v896, %v1589
          %v1597 = vmul.f32 %v897, %v1589
          %v1598 = vmul.f32 %v898, %v1589
          %v1599 = vmul.f32 %v899, %v1589
          %v1600 = vmul.f32 %v900, %v1589
          %v1601 = vmul.f32 %v901, %v1589
          %v1602 = vmul.f32 %v902, %v1589
          %v1603 = vmul.f32 %v903, %v1589
          %v1604 = vmul.f32 %v904, %v1589
          %v1605 = vmul.f32 %v905, %v1589
          %v1606 = vadd.f32 %v1570, %v1590
          %v1607 = vadd.f32 %v1571, %v1591
          %v1608 = vadd.f32 %v1572, %v1592
          %v1609 = vadd.f32 %v1573, %v1593
          %v1610 = vadd.f32 %v1574, %v1594
          %v1611 = vadd.f32 %v1575, %v1595
          %v1612 = vadd.f32 %v1576, %v1596
          %v1613 = vadd.f32 %v1577, %v1597
          %v1614 = vadd.f32 %v1578, %v1598
          %v1615 = vadd.f32 %v1579, %v1599
          %v1616 = vadd.f32 %v1580, %v1600
          %v1617 = vadd.f32 %v1581, %v1601
          %v1618 = vadd.f32 %v1582, %v1602
          %v1619 = vadd.f32 %v1583, %v1603
          %v1620 = vadd.f32 %v1584, %v1604
          %v1621 = vadd.f32 %v1585, %v1605
          %v1622 = vlaneseq
          %v1623 = vshrl.u32 %v1622, 7
          %v1624 = vsub.s32 3, %v1623
          %v1625 = vrot.slane %v917, %v1624
          %v1626 = vmul.f32 %v892, %v1625
          %v1627 = vmul.f32 %v893, %v1625
          %v1628 = vmul.f32 %v894, %v1625
          %v1629 = vmul.f32 %v895, %v1625
          %v1630 = vmul.f32 %v896, %v1625
          %v1631 = vmul.f32 %v897, %v1625
          %v1632 = vmul.f32 %v898, %v1625
          %v1633 = vmul.f32 %v899, %v1625
          %v1634 = vmul.f32 %v900, %v1625
          %v1635 = vmul.f32 %v901, %v1625
          %v1636 = vmul.f32 %v902, %v1625
          %v1637 = vmul.f32 %v903, %v1625
          %v1638 = vmul.f32 %v904, %v1625
          %v1639 = vmul.f32 %v905, %v1625
          %v1640 = vmul.f32 %v906, %v1625
          %v1641 = vmul.f32 %v907, %v1625
          %v1642 = vadd.f32 %v1606, %v1626
          %v1643 = vadd.f32 %v1607, %v1627
          %v1644 = vadd.f32 %v1608, %v1628
          %v1645 = vadd.f32 %v1609, %v1629
          %v1646 = vadd.f32 %v1610, %v1630
          %v1647 = vadd.f32 %v1611, %v1631
          %v1648 = vadd.f32 %v1612, %v1632
          %v1649 = vadd.f32 %v1613, %v1633
          %v1650 = vadd.f32 %v1614, %v1634
          %v1651 = vadd.f32 %v1615, %v1635
          %v1652 = vadd.f32 %v1616, %v1636
          %v1653 = vadd.f32 %v1617, %v1637
          %v1654 = vadd.f32 %v1618, %v1638
          %v1655 = vadd.f32 %v1619, %v1639
          %v1656 = vadd.f32 %v1620, %v1640
          %v1657 = vadd.f32 %v1621, %v1641
          %v1658 = vlaneseq
          %v1659 = vshrl.u32 %v1658, 7
          %v1660 = vsub.s32 3, %v1659
          %v1661 = vrot.slane %v918, %v1660
          %v1662 = vmul.f32 %v894, %v1661
          %v1663 = vmul.f32 %v895, %v1661
          %v1664 = vmul.f32 %v896, %v1661
          %v1665 = vmul.f32 %v897, %v1661
          %v1666 = vmul.f32 %v898, %v1661
          %v1667 = vmul.f32 %v899, %v1661
          %v1668 = vmul.f32 %v900, %v1661
          %v1669 = vmul.f32 %v901, %v1661
          %v1670 = vmul.f32 %v902, %v1661
          %v1671 = vmul.f32 %v903, %v1661
          %v1672 = vmul.f32 %v904, %v1661
          %v1673 = vmul.f32 %v905, %v1661
          %v1674 = vmul.f32 %v906, %v1661
          %v1675 = vmul.f32 %v907, %v1661
          %v1676 = vmul.f32 %v908, %v1661
          %v1677 = vmul.f32 %v909, %v1661
          %v1678 = vadd.f32 %v1642, %v1662
          %v1679 = vadd.f32 %v1643, %v1663
          %v1680 = vadd.f32 %v1644, %v1664
          %v1681 = vadd.f32 %v1645, %v1665
          %v1682 = vadd.f32 %v1646, %v1666
          %v1683 = vadd.f32 %v1647, %v1667
          %v1684 = vadd.f32 %v1648, %v1668
          %v1685 = vadd.f32 %v1649, %v1669
          %v1686 = vadd.f32 %v1650, %v1670
          %v1687 = vadd.f32 %v1651, %v1671
          %v1688 = vadd.f32 %v1652, %v1672
          %v1689 = vadd.f32 %v1653, %v1673
          %v1690 = vadd.f32 %v1654, %v1674
          %v1691 = vadd.f32 %v1655, %v1675
          %v1692 = vadd.f32 %v1656, %v1676
          %v1693 = vadd.f32 %v1657, %v1677
          %v1694 = vlaneseq
          %v1695 = vshrl.u32 %v1694, 7
          %v1696 = vsub.s32 3, %v1695
          %v1697 = vrot.slane %v919, %v1696
          %v1698 = vmul.f32 %v896, %v1697
          %v1699 = vmul.f32 %v897, %v1697
          %v1700 = vmul.f32 %v898, %v1697
          %v1701 = vmul.f32 %v899, %v1697
          %v1702 = vmul.f32 %v900, %v1697
          %v1703 = vmul.f32 %v901, %v1697
          %v1704 = vmul.f32 %v902, %v1697
          %v1705 = vmul.f32 %v903, %v1697
          %v1706 = vmul.f32 %v904, %v1697
          %v1707 = vmul.f32 %v905, %v1697
          %v1708 = vmul.f32 %v906, %v1697
          %v1709 = vmul.f32 %v907, %v1697
          %v1710 = vmul.f32 %v908, %v1697
          %v1711 = vmul.f32 %v909, %v1697
          %v1712 = vmul.f32 %v910, %v1697
          %v1713 = vmul.f32 %v911, %v1697
          %v1714 = vadd.f32 %v1678, %v1698
          %v1715 = vadd.f32 %v1679, %v1699
          %v1716 = vadd.f32 %v1680, %v1700
          %v1717 = vadd.f32 %v1681, %v1701
          %v1718 = vadd.f32 %v1682, %v1702
          %v1719 = vadd.f32 %v1683, %v1703
          %v1720 = vadd.f32 %v1684, %v1704
          %v1721 = vadd.f32 %v1685, %v1705
          %v1722 = vadd.f32 %v1686, %v1706
          %v1723 = vadd.f32 %v1687, %v1707
          %v1724 = vadd.f32 %v1688, %v1708
          %v1725 = vadd.f32 %v1689, %v1709
          %v1726 = vadd.f32 %v1690, %v1710
          %v1727 = vadd.f32 %v1691, %v1711
          %v1728 = vadd.f32 %v1692, %v1712
          %v1729 = vadd.f32 %v1693, %v1713
          %v1730 = vrot.slane %v1714, 1
          %v1731 = vrot.slane %v1716, 1
          %v1732 = vrot.slane %v1718, 1
          %v1733 = vrot.slane %v1720, 1
          %v1734 = vrot.slane %v1722, 1
          %v1735 = vrot.slane %v1724, 1
          %v1736 = vrot.slane %v1726, 1
          %v1737 = vrot.slane %v1728, 1
          %v1738 = vrot.slane %v1715, 1
          %v1739 = vrot.slane %v1717, 1
          %v1740 = vrot.slane %v1719, 1
          %v1741 = vrot.slane %v1721, 1
          %v1742 = vrot.slane %v1723, 1
          %v1743 = vrot.slane %v1725, 1
          %v1744 = vrot.slane %v1727, 1
          %v1745 = vrot.slane %v1729, 1
          %vm1746 = vcmp.lt.s32.totalorder %v913, 7
          %v1747 = vsel %vm1746, %v1730, %v1738
          %v1748 = vsel %vm1746, %v1731, %v1739
          %v1749 = vsel %vm1746, %v1732, %v1740
          %v1750 = vsel %vm1746, %v1733, %v1741
          %v1751 = vsel %vm1746, %v1734, %v1742
          %v1752 = vsel %vm1746, %v1735, %v1743
          %v1753 = vsel %vm1746, %v1736, %v1744
          %v1754 = vsel %vm1746, %v1737, %v1745
          %v1755 = vsel %vm1746, %v1738, %v1730
          %v1756 = vsel %vm1746, %v1739, %v1731
          %v1757 = vsel %vm1746, %v1740, %v1732
          %v1758 = vsel %vm1746, %v1741, %v1733
          %v1759 = vsel %vm1746, %v1742, %v1734
          %v1760 = vsel %vm1746, %v1743, %v1735
          %v1761 = vsel %vm1746, %v1744, %v1736
          %v1762 = vsel %vm1746, %v1745, %v1737
          %v1763 = vadd.s32 %v913, 1
          %v1764 = vadd.s32 %v914, 1
          %vm1765 = vcmp.ge.s32.totalorder %v1763, 0
          %vm1766 = vcmp.ge.s32.totalorder %v1764, 0
          %vm1767 = vcmp.lt.s32.totalorder %v1763, 16
          %vm1768 = vcmp.lt.s32.totalorder %v1764, 16
          %vm1769 = vmand %vm1765, %vm1767
          %vm1770 = vmand %vm1766, %vm1768
          %v1771 = vsel %vm1769, 1, 0
          %v1772 = vsel %vm1770, 1, 0
          %vm1773 = vcmp.eq.s32.totalorder %v1771, 1
          %vm1774 = vcmp.eq.s32.totalorder %v1772, 1
          %v1775 = vsel %vm1773, %v1747, 0.0
          %v1776 = vsel %vm1774, %v1755, 0.0
          %v1777 = vsel %vm1773, %v1748, 0.0
          %v1778 = vsel %vm1774, %v1756, 0.0
          %v1779 = vsel %vm1773, %v1749, 0.0
          %v1780 = vsel %vm1774, %v1757, 0.0
          %v1781 = vsel %vm1773, %v1750, 0.0
          %v1782 = vsel %vm1774, %v1758, 0.0
          %v1783 = vsel %vm1773, %v1751, 0.0
          %v1784 = vsel %vm1774, %v1759, 0.0
          %v1785 = vsel %vm1773, %v1752, 0.0
          %v1786 = vsel %vm1774, %v1760, 0.0
          %v1787 = vsel %vm1773, %v1753, 0.0
          %v1788 = vsel %vm1774, %v1761, 0.0
          %v1789 = vsel %vm1773, %v1754, 0.0
          %v1790 = vsel %vm1774, %v1762, 0.0
          %v1791 = vadd.f32 %v1550, %v1775
          %v1792 = vadd.f32 %v1551, %v1776
          %v1793 = vadd.f32 %v1552, %v1777
          %v1794 = vadd.f32 %v1553, %v1778
          %v1795 = vadd.f32 %v1554, %v1779
          %v1796 = vadd.f32 %v1555, %v1780
          %v1797 = vadd.f32 %v1556, %v1781
          %v1798 = vadd.f32 %v1557, %v1782
          %v1799 = vadd.f32 %v1558, %v1783
          %v1800 = vadd.f32 %v1559, %v1784
          %v1801 = vadd.f32 %v1560, %v1785
          %v1802 = vadd.f32 %v1561, %v1786
          %v1803 = vadd.f32 %v1562, %v1787
          %v1804 = vadd.f32 %v1563, %v1788
          %v1805 = vadd.f32 %v1564, %v1789
          %v1806 = vadd.f32 %v1565, %v1790
          %v1807 = vlaneseq
          %v1808 = vshrl.u32 %v1807, 7
          %v1809 = vsub.s32 4, %v1808
          %v1810 = vrot.slane %v915, %v1809
          %v1811 = vmul.f32 %v888, %v1810
          %v1812 = vmul.f32 %v889, %v1810
          %v1813 = vmul.f32 %v890, %v1810
          %v1814 = vmul.f32 %v891, %v1810
          %v1815 = vmul.f32 %v892, %v1810
          %v1816 = vmul.f32 %v893, %v1810
          %v1817 = vmul.f32 %v894, %v1810
          %v1818 = vmul.f32 %v895, %v1810
          %v1819 = vmul.f32 %v896, %v1810
          %v1820 = vmul.f32 %v897, %v1810
          %v1821 = vmul.f32 %v898, %v1810
          %v1822 = vmul.f32 %v899, %v1810
          %v1823 = vmul.f32 %v900, %v1810
          %v1824 = vmul.f32 %v901, %v1810
          %v1825 = vmul.f32 %v902, %v1810
          %v1826 = vmul.f32 %v903, %v1810
          %v1827 = vlaneseq
          %v1828 = vshrl.u32 %v1827, 7
          %v1829 = vsub.s32 4, %v1828
          %v1830 = vrot.slane %v916, %v1829
          %v1831 = vmul.f32 %v890, %v1830
          %v1832 = vmul.f32 %v891, %v1830
          %v1833 = vmul.f32 %v892, %v1830
          %v1834 = vmul.f32 %v893, %v1830
          %v1835 = vmul.f32 %v894, %v1830
          %v1836 = vmul.f32 %v895, %v1830
          %v1837 = vmul.f32 %v896, %v1830
          %v1838 = vmul.f32 %v897, %v1830
          %v1839 = vmul.f32 %v898, %v1830
          %v1840 = vmul.f32 %v899, %v1830
          %v1841 = vmul.f32 %v900, %v1830
          %v1842 = vmul.f32 %v901, %v1830
          %v1843 = vmul.f32 %v902, %v1830
          %v1844 = vmul.f32 %v903, %v1830
          %v1845 = vmul.f32 %v904, %v1830
          %v1846 = vmul.f32 %v905, %v1830
          %v1847 = vadd.f32 %v1811, %v1831
          %v1848 = vadd.f32 %v1812, %v1832
          %v1849 = vadd.f32 %v1813, %v1833
          %v1850 = vadd.f32 %v1814, %v1834
          %v1851 = vadd.f32 %v1815, %v1835
          %v1852 = vadd.f32 %v1816, %v1836
          %v1853 = vadd.f32 %v1817, %v1837
          %v1854 = vadd.f32 %v1818, %v1838
          %v1855 = vadd.f32 %v1819, %v1839
          %v1856 = vadd.f32 %v1820, %v1840
          %v1857 = vadd.f32 %v1821, %v1841
          %v1858 = vadd.f32 %v1822, %v1842
          %v1859 = vadd.f32 %v1823, %v1843
          %v1860 = vadd.f32 %v1824, %v1844
          %v1861 = vadd.f32 %v1825, %v1845
          %v1862 = vadd.f32 %v1826, %v1846
          %v1863 = vlaneseq
          %v1864 = vshrl.u32 %v1863, 7
          %v1865 = vsub.s32 4, %v1864
          %v1866 = vrot.slane %v917, %v1865
          %v1867 = vmul.f32 %v892, %v1866
          %v1868 = vmul.f32 %v893, %v1866
          %v1869 = vmul.f32 %v894, %v1866
          %v1870 = vmul.f32 %v895, %v1866
          %v1871 = vmul.f32 %v896, %v1866
          %v1872 = vmul.f32 %v897, %v1866
          %v1873 = vmul.f32 %v898, %v1866
          %v1874 = vmul.f32 %v899, %v1866
          %v1875 = vmul.f32 %v900, %v1866
          %v1876 = vmul.f32 %v901, %v1866
          %v1877 = vmul.f32 %v902, %v1866
          %v1878 = vmul.f32 %v903, %v1866
          %v1879 = vmul.f32 %v904, %v1866
          %v1880 = vmul.f32 %v905, %v1866
          %v1881 = vmul.f32 %v906, %v1866
          %v1882 = vmul.f32 %v907, %v1866
          %v1883 = vadd.f32 %v1847, %v1867
          %v1884 = vadd.f32 %v1848, %v1868
          %v1885 = vadd.f32 %v1849, %v1869
          %v1886 = vadd.f32 %v1850, %v1870
          %v1887 = vadd.f32 %v1851, %v1871
          %v1888 = vadd.f32 %v1852, %v1872
          %v1889 = vadd.f32 %v1853, %v1873
          %v1890 = vadd.f32 %v1854, %v1874
          %v1891 = vadd.f32 %v1855, %v1875
          %v1892 = vadd.f32 %v1856, %v1876
          %v1893 = vadd.f32 %v1857, %v1877
          %v1894 = vadd.f32 %v1858, %v1878
          %v1895 = vadd.f32 %v1859, %v1879
          %v1896 = vadd.f32 %v1860, %v1880
          %v1897 = vadd.f32 %v1861, %v1881
          %v1898 = vadd.f32 %v1862, %v1882
          %v1899 = vlaneseq
          %v1900 = vshrl.u32 %v1899, 7
          %v1901 = vsub.s32 4, %v1900
          %v1902 = vrot.slane %v918, %v1901
          %v1903 = vmul.f32 %v894, %v1902
          %v1904 = vmul.f32 %v895, %v1902
          %v1905 = vmul.f32 %v896, %v1902
          %v1906 = vmul.f32 %v897, %v1902
          %v1907 = vmul.f32 %v898, %v1902
          %v1908 = vmul.f32 %v899, %v1902
          %v1909 = vmul.f32 %v900, %v1902
          %v1910 = vmul.f32 %v901, %v1902
          %v1911 = vmul.f32 %v902, %v1902
          %v1912 = vmul.f32 %v903, %v1902
          %v1913 = vmul.f32 %v904, %v1902
          %v1914 = vmul.f32 %v905, %v1902
          %v1915 = vmul.f32 %v906, %v1902
          %v1916 = vmul.f32 %v907, %v1902
          %v1917 = vmul.f32 %v908, %v1902
          %v1918 = vmul.f32 %v909, %v1902
          %v1919 = vadd.f32 %v1883, %v1903
          %v1920 = vadd.f32 %v1884, %v1904
          %v1921 = vadd.f32 %v1885, %v1905
          %v1922 = vadd.f32 %v1886, %v1906
          %v1923 = vadd.f32 %v1887, %v1907
          %v1924 = vadd.f32 %v1888, %v1908
          %v1925 = vadd.f32 %v1889, %v1909
          %v1926 = vadd.f32 %v1890, %v1910
          %v1927 = vadd.f32 %v1891, %v1911
          %v1928 = vadd.f32 %v1892, %v1912
          %v1929 = vadd.f32 %v1893, %v1913
          %v1930 = vadd.f32 %v1894, %v1914
          %v1931 = vadd.f32 %v1895, %v1915
          %v1932 = vadd.f32 %v1896, %v1916
          %v1933 = vadd.f32 %v1897, %v1917
          %v1934 = vadd.f32 %v1898, %v1918
          %v1935 = vlaneseq
          %v1936 = vshrl.u32 %v1935, 7
          %v1937 = vsub.s32 4, %v1936
          %v1938 = vrot.slane %v919, %v1937
          %v1939 = vmul.f32 %v896, %v1938
          %v1940 = vmul.f32 %v897, %v1938
          %v1941 = vmul.f32 %v898, %v1938
          %v1942 = vmul.f32 %v899, %v1938
          %v1943 = vmul.f32 %v900, %v1938
          %v1944 = vmul.f32 %v901, %v1938
          %v1945 = vmul.f32 %v902, %v1938
          %v1946 = vmul.f32 %v903, %v1938
          %v1947 = vmul.f32 %v904, %v1938
          %v1948 = vmul.f32 %v905, %v1938
          %v1949 = vmul.f32 %v906, %v1938
          %v1950 = vmul.f32 %v907, %v1938
          %v1951 = vmul.f32 %v908, %v1938
          %v1952 = vmul.f32 %v909, %v1938
          %v1953 = vmul.f32 %v910, %v1938
          %v1954 = vmul.f32 %v911, %v1938
          %v1955 = vadd.f32 %v1919, %v1939
          %v1956 = vadd.f32 %v1920, %v1940
          %v1957 = vadd.f32 %v1921, %v1941
          %v1958 = vadd.f32 %v1922, %v1942
          %v1959 = vadd.f32 %v1923, %v1943
          %v1960 = vadd.f32 %v1924, %v1944
          %v1961 = vadd.f32 %v1925, %v1945
          %v1962 = vadd.f32 %v1926, %v1946
          %v1963 = vadd.f32 %v1927, %v1947
          %v1964 = vadd.f32 %v1928, %v1948
          %v1965 = vadd.f32 %v1929, %v1949
          %v1966 = vadd.f32 %v1930, %v1950
          %v1967 = vadd.f32 %v1931, %v1951
          %v1968 = vadd.f32 %v1932, %v1952
          %v1969 = vadd.f32 %v1933, %v1953
          %v1970 = vadd.f32 %v1934, %v1954
          %v1971 = vrot.slane %v1955, 2
          %v1972 = vrot.slane %v1957, 2
          %v1973 = vrot.slane %v1959, 2
          %v1974 = vrot.slane %v1961, 2
          %v1975 = vrot.slane %v1963, 2
          %v1976 = vrot.slane %v1965, 2
          %v1977 = vrot.slane %v1967, 2
          %v1978 = vrot.slane %v1969, 2
          %v1979 = vrot.slane %v1956, 2
          %v1980 = vrot.slane %v1958, 2
          %v1981 = vrot.slane %v1960, 2
          %v1982 = vrot.slane %v1962, 2
          %v1983 = vrot.slane %v1964, 2
          %v1984 = vrot.slane %v1966, 2
          %v1985 = vrot.slane %v1968, 2
          %v1986 = vrot.slane %v1970, 2
          %vm1987 = vcmp.lt.s32.totalorder %v913, 6
          %v1988 = vsel %vm1987, %v1971, %v1979
          %v1989 = vsel %vm1987, %v1972, %v1980
          %v1990 = vsel %vm1987, %v1973, %v1981
          %v1991 = vsel %vm1987, %v1974, %v1982
          %v1992 = vsel %vm1987, %v1975, %v1983
          %v1993 = vsel %vm1987, %v1976, %v1984
          %v1994 = vsel %vm1987, %v1977, %v1985
          %v1995 = vsel %vm1987, %v1978, %v1986
          %v1996 = vsel %vm1987, %v1979, %v1971
          %v1997 = vsel %vm1987, %v1980, %v1972
          %v1998 = vsel %vm1987, %v1981, %v1973
          %v1999 = vsel %vm1987, %v1982, %v1974
          %v2000 = vsel %vm1987, %v1983, %v1975
          %v2001 = vsel %vm1987, %v1984, %v1976
          %v2002 = vsel %vm1987, %v1985, %v1977
          %v2003 = vsel %vm1987, %v1986, %v1978
          %v2004 = vadd.s32 %v913, 2
          %v2005 = vadd.s32 %v914, 2
          %vm2006 = vcmp.ge.s32.totalorder %v2004, 0
          %vm2007 = vcmp.ge.s32.totalorder %v2005, 0
          %vm2008 = vcmp.lt.s32.totalorder %v2004, 16
          %vm2009 = vcmp.lt.s32.totalorder %v2005, 16
          %vm2010 = vmand %vm2006, %vm2008
          %vm2011 = vmand %vm2007, %vm2009
          %v2012 = vsel %vm2010, 1, 0
          %v2013 = vsel %vm2011, 1, 0
          %vm2014 = vcmp.eq.s32.totalorder %v2012, 1
          %vm2015 = vcmp.eq.s32.totalorder %v2013, 1
          %v2016 = vsel %vm2014, %v1988, 0.0
          %v2017 = vsel %vm2015, %v1996, 0.0
          %v2018 = vsel %vm2014, %v1989, 0.0
          %v2019 = vsel %vm2015, %v1997, 0.0
          %v2020 = vsel %vm2014, %v1990, 0.0
          %v2021 = vsel %vm2015, %v1998, 0.0
          %v2022 = vsel %vm2014, %v1991, 0.0
          %v2023 = vsel %vm2015, %v1999, 0.0
          %v2024 = vsel %vm2014, %v1992, 0.0
          %v2025 = vsel %vm2015, %v2000, 0.0
          %v2026 = vsel %vm2014, %v1993, 0.0
          %v2027 = vsel %vm2015, %v2001, 0.0
          %v2028 = vsel %vm2014, %v1994, 0.0
          %v2029 = vsel %vm2015, %v2002, 0.0
          %v2030 = vsel %vm2014, %v1995, 0.0
          %v2031 = vsel %vm2015, %v2003, 0.0
          %v2032 = vadd.f32 %v1791, %v2016
          %v2033 = vadd.f32 %v1792, %v2017
          %v2034 = vadd.f32 %v1793, %v2018
          %v2035 = vadd.f32 %v1794, %v2019
          %v2036 = vadd.f32 %v1795, %v2020
          %v2037 = vadd.f32 %v1796, %v2021
          %v2038 = vadd.f32 %v1797, %v2022
          %v2039 = vadd.f32 %v1798, %v2023
          %v2040 = vadd.f32 %v1799, %v2024
          %v2041 = vadd.f32 %v1800, %v2025
          %v2042 = vadd.f32 %v1801, %v2026
          %v2043 = vadd.f32 %v1802, %v2027
          %v2044 = vadd.f32 %v1803, %v2028
          %v2045 = vadd.f32 %v1804, %v2029
          %v2046 = vadd.f32 %v1805, %v2030
          %v2047 = vadd.f32 %v1806, %v2031
          %v2048 = vpack.c.bf16 %v2033, %v2032
          %v2049 = vpack.c.bf16 %v2035, %v2034
          %v2050 = vpack.c.bf16 %v2037, %v2036
          %v2051 = vpack.c.bf16 %v2039, %v2038
          %v2052 = vpack.c.bf16 %v2041, %v2040
          %v2053 = vpack.c.bf16 %v2043, %v2042
          %v2054 = vpack.c.bf16 %v2045, %v2044
          %v2055 = vpack.c.bf16 %v2047, %v2046
          %v2056 = vld [vmem:[%s6] sm:$0xf]
          %v2057 = vld [vmem:[%s6 + $0x4] sm:$0xf]
          %v2058 = vld [vmem:[%s6 + $0x8] sm:$0xf]
          %v2059 = vld [vmem:[%s6 + $0xc] sm:$0xf]
          %v2060 = vld [vmem:[%s6 + $0x10] sm:$0xf]
          %v2061 = vld [vmem:[%s6 + $0x14] sm:$0xf]
          %v2062 = vld [vmem:[%s6 + $0x18] sm:$0xf]
          %v2063 = vld [vmem:[%s6 + $0x1c] sm:$0xf]
          %v2064 = vld [vmem:[%s6 + $0x20] sm:$0xf]
          %v2065 = vld [vmem:[%s6 + $0x24] sm:$0xf]
          %v2066 = vld [vmem:[%s6 + $0x28] sm:$0xf]
          %v2067 = vld [vmem:[%s6 + $0x2c] sm:$0xf]
          %v2080 = vunpack.c.l.b16 %v2056
          %v2081 = vunpack.c.l.b16 %v2057
          %v2082 = vunpack.c.l.b16 %v2058
          %v2083 = vunpack.c.l.b16 %v2059
          %v2084 = vunpack.c.l.b16 %v2060
          %v2085 = vunpack.c.l.b16 %v2061
          %v2086 = vunpack.c.l.b16 %v2062
          %v2087 = vunpack.c.l.b16 %v2063
          %v2088 = vunpack.c.l.b16 %v2064
          %v2089 = vunpack.c.l.b16 %v2065
          %v2090 = vunpack.c.l.b16 %v2066
          %v2091 = vunpack.c.l.b16 %v2067
          %v2092 = vpack.c.b16 %v2081, %v2080
          %v2093 = vpack.c.b16 %v2083, %v2082
          %v2094 = vpack.c.b16 %v2085, %v2084
          %v2095 = vpack.c.b16 %v2087, %v2086
          %v2096 = vpack.c.b16 %v2089, %v2088
          %v2097 = vpack.c.b16 %v2091, %v2090
          %vm2104 = vcmask 785408
          %v2106 = vsel %vm2104, %v2048, 0
          %v2109 = vsel %vm2104, %v2049, 0
          %v2112 = vsel %vm2104, %v2050, 0
          %v2115 = vsel %vm2104, %v2051, 0
          %v2118 = vsel %vm2104, %v2052, 0
          %v2121 = vsel %vm2104, %v2053, 0
          %v2124 = vsel %vm2104, %v2054, 0
          %v2127 = vsel %vm2104, %v2055, 0
          %2129 = vmatprep.subr.bf16.mxu0 0
          %2130 = vmatpush1.bf16.msra.mxu0 %v2092
          %2131 = vmatprep.subr.bf16.mxu0 0
          %2132 = vmatpush1.bf16.msra.mxu0 %v2093
          %2133 = vmatprep.subr.bf16.mxu0 0
          %2134 = vmatpush1.bf16.msra.mxu0 %v2094
          %2135 = vmatprep.subr.bf16.mxu0 0
          %2136 = vmatpush1.bf16.msra.mxu0 %v2095
          %2137 = vmatprep.subr.bf16.mxu0 0
          %2138 = vmatpush1.bf16.msra.mxu0 %v2096
          %2139 = vmatprep.subr.bf16.mxu0 0
          %2140 = vmatpush1.bf16.msra.mxu0 %v2097
          %2141 = vmatprep.subr.bf16.mxu0 0
          %2142 = vmatpush1.bf16.msra.mxu0 0
          %2143 = vmatprep.subr.bf16.mxu0 0
          %2144 = vmatpush1.bf16.msra.mxu0 0
          %2145 = vmatprep.subr.bf16.mxu0 0
          %2146 = vmatpush1.bf16.msra.mxu0 0
          %2147 = vmatprep.subr.bf16.mxu0 0
          %2148 = vmatpush1.bf16.msra.mxu0 0
          %2149 = vmatprep.subr.bf16.mxu0 0
          %2150 = vmatpush1.bf16.msra.mxu0 0
          %2151 = vmatprep.subr.bf16.mxu0 0
          %2152 = vmatpush1.bf16.msra.mxu0 0
          %2153 = vmatprep.subr.bf16.mxu0 0
          %2154 = vmatpush1.bf16.msra.mxu0 0
          %2155 = vmatprep.subr.bf16.mxu0 0
          %2156 = vmatpush1.bf16.msra.mxu0 0
          %2157 = vmatprep.subr.bf16.mxu0 0
          %2158 = vmatpush1.bf16.msra.mxu0 0
          %2159 = vmatprep.subr.bf16.mxu0 0
          %2160 = vmatpush1.bf16.msra.mxu0 0
          %2161 = vmatprep.mubr.bf16.mxu0 0
          %2162 = vmatmul.mubr.bf16.gmra.mrb[0].mxu0 %v2106
          %v2163 = vpop.f32.mrb[0].mxu0
          %v2164 = vadd.f32 0.0, %v2163
          %v2165 = vpop.f32.mrb[0].mxu0
          %v2166 = vpop.f32.mrb[0].mxu0
          %v2167 = vadd.f32 0.0, %v2166
          %v2168 = vpop.f32.mrb[0].mxu0
          %2169 = vmatprep.mubr.bf16.mxu0 0
          %2170 = vmatmul.mubr.bf16.gmra.mrb[0].mxu0 %v2109
          %v2171 = vpop.f32.mrb[0].mxu0
          %v2172 = vadd.f32 0.0, %v2171
          %v2173 = vpop.f32.mrb[0].mxu0
          %v2174 = vpop.f32.mrb[0].mxu0
          %v2175 = vadd.f32 0.0, %v2174
          %v2176 = vpop.f32.mrb[0].mxu0
          %2177 = vmatprep.mubr.bf16.mxu0 0
          %2178 = vmatmul.mubr.bf16.gmra.mrb[0].mxu0 %v2112
          %v2179 = vpop.f32.mrb[0].mxu0
          %v2180 = vadd.f32 0.0, %v2179
          %v2181 = vpop.f32.mrb[0].mxu0
          %v2182 = vpop.f32.mrb[0].mxu0
          %v2183 = vadd.f32 0.0, %v2182
          %v2184 = vpop.f32.mrb[0].mxu0
          %2185 = vmatprep.mubr.bf16.mxu0 0
          %2186 = vmatmul.mubr.bf16.gmra.mrb[0].mxu0 %v2115
          %v2187 = vpop.f32.mrb[0].mxu0
          %v2188 = vadd.f32 0.0, %v2187
          %v2189 = vpop.f32.mrb[0].mxu0
          %v2190 = vpop.f32.mrb[0].mxu0
          %v2191 = vadd.f32 0.0, %v2190
          %v2192 = vpop.f32.mrb[0].mxu0
          %2193 = vmatprep.mubr.bf16.mxu0 0
          %2194 = vmatmul.mubr.bf16.gmra.mrb[0].mxu0 %v2118
          %v2195 = vpop.f32.mrb[0].mxu0
          %v2196 = vadd.f32 0.0, %v2195
          %v2197 = vpop.f32.mrb[0].mxu0
          %v2198 = vpop.f32.mrb[0].mxu0
          %v2199 = vadd.f32 0.0, %v2198
          %v2200 = vpop.f32.mrb[0].mxu0
          %2201 = vmatprep.mubr.bf16.mxu0 0
          %2202 = vmatmul.mubr.bf16.gmra.mrb[0].mxu0 %v2121
          %v2203 = vpop.f32.mrb[0].mxu0
          %v2204 = vadd.f32 0.0, %v2203
          %v2205 = vpop.f32.mrb[0].mxu0
          %v2206 = vpop.f32.mrb[0].mxu0
          %v2207 = vadd.f32 0.0, %v2206
          %v2208 = vpop.f32.mrb[0].mxu0
          %2209 = vmatprep.mubr.bf16.mxu0 0
          %2210 = vmatmul.mubr.bf16.gmra.mrb[0].mxu0 %v2124
          %v2211 = vpop.f32.mrb[0].mxu0
          %v2212 = vadd.f32 0.0, %v2211
          %v2213 = vpop.f32.mrb[0].mxu0
          %v2214 = vpop.f32.mrb[0].mxu0
          %v2215 = vadd.f32 0.0, %v2214
          %v2216 = vpop.f32.mrb[0].mxu0
          %2217 = vmatprep.mubr.bf16.mxu0 0
          %2218 = vmatmul.mubr.bf16.gmra.mrb[0].mxu0 %v2127
          %v2219 = vpop.f32.mrb[0].mxu0
          %v2220 = vadd.f32 0.0, %v2219
          %v2221 = vpop.f32.mrb[0].mxu0
          %v2222 = vpop.f32.mrb[0].mxu0
          %v2223 = vadd.f32 0.0, %v2222
          %v2224 = vpop.f32.mrb[0].mxu0
          %2225 = vdwg.mxu0
          %v2226 = vmax.f32 %v892, 0.0
          %v2227 = vmax.f32 %v893, 0.0
          %v2228 = vmax.f32 %v894, 0.0
          %v2229 = vmax.f32 %v895, 0.0
          %v2230 = vmax.f32 %v896, 0.0
          %v2231 = vmax.f32 %v897, 0.0
          %v2232 = vmax.f32 %v898, 0.0
          %v2233 = vmax.f32 %v899, 0.0
          %v2234 = vmax.f32 %v900, 0.0
          %v2235 = vmax.f32 %v901, 0.0
          %v2236 = vmax.f32 %v902, 0.0
          %v2237 = vmax.f32 %v903, 0.0
          %v2238 = vmax.f32 %v904, 0.0
          %v2239 = vmax.f32 %v905, 0.0
          %v2240 = vmax.f32 %v906, 0.0
          %v2241 = vmax.f32 %v907, 0.0
          %v2242 = vmax.f32 %v2164, 0.0
          %v2243 = vmax.f32 %v2167, 0.0
          %v2244 = vmax.f32 %v2172, 0.0
          %v2245 = vmax.f32 %v2175, 0.0
          %v2246 = vmax.f32 %v2180, 0.0
          %v2247 = vmax.f32 %v2183, 0.0
          %v2248 = vmax.f32 %v2188, 0.0
          %v2249 = vmax.f32 %v2191, 0.0
          %v2250 = vmax.f32 %v2196, 0.0
          %v2251 = vmax.f32 %v2199, 0.0
          %v2252 = vmax.f32 %v2204, 0.0
          %v2253 = vmax.f32 %v2207, 0.0
          %v2254 = vmax.f32 %v2212, 0.0
          %v2255 = vmax.f32 %v2215, 0.0
          %v2256 = vmax.f32 %v2220, 0.0
          %v2257 = vmax.f32 %v2223, 0.0
          %2274 = vrot.lane.b32.xlu0 %v2242, 32
          %v2275 = vpop.permute.xlu0 %2274
          %2276 = vrot.lane.b32.xlu0 %v2243, 32
          %v2277 = vpop.permute.xlu0 %2276
          %2278 = vrot.lane.b32.xlu0 %v2244, 32
          %v2279 = vpop.permute.xlu0 %2278
          %2280 = vrot.lane.b32.xlu0 %v2245, 32
          %v2281 = vpop.permute.xlu0 %2280
          %2282 = vrot.lane.b32.xlu0 %v2246, 32
          %v2283 = vpop.permute.xlu0 %2282
          %2284 = vrot.lane.b32.xlu0 %v2247, 32
          %v2285 = vpop.permute.xlu0 %2284
          %2286 = vrot.lane.b32.xlu0 %v2248, 32
          %v2287 = vpop.permute.xlu0 %2286
          %2288 = vrot.lane.b32.xlu0 %v2249, 32
          %v2289 = vpop.permute.xlu0 %2288
          %2290 = vrot.lane.b32.xlu0 %v2250, 32
          %v2291 = vpop.permute.xlu0 %2290
          %2292 = vrot.lane.b32.xlu0 %v2251, 32
          %v2293 = vpop.permute.xlu0 %2292
          %2294 = vrot.lane.b32.xlu0 %v2252, 32
          %v2295 = vpop.permute.xlu0 %2294
          %2296 = vrot.lane.b32.xlu0 %v2253, 32
          %v2297 = vpop.permute.xlu0 %2296
          %2298 = vrot.lane.b32.xlu0 %v2254, 32
          %v2299 = vpop.permute.xlu0 %2298
          %2300 = vrot.lane.b32.xlu0 %v2255, 32
          %v2301 = vpop.permute.xlu0 %2300
          %2302 = vrot.lane.b32.xlu0 %v2256, 32
          %v2303 = vpop.permute.xlu0 %2302
          %2304 = vrot.lane.b32.xlu0 %v2257, 32
          %v2305 = vpop.permute.xlu0 %2304
          %v2322 = vsel %vm648, %v2226, %v2275
          %v2323 = vsel %vm648, %v2227, %v2277
          %v2324 = vsel %vm648, %v2228, %v2279
          %v2325 = vsel %vm648, %v2229, %v2281
          %v2326 = vsel %vm648, %v2230, %v2283
          %v2327 = vsel %vm648, %v2231, %v2285
          %v2328 = vsel %vm648, %v2232, %v2287
          %v2329 = vsel %vm648, %v2233, %v2289
          %v2330 = vsel %vm648, %v2234, %v2291
          %v2331 = vsel %vm648, %v2235, %v2293
          %v2332 = vsel %vm648, %v2236, %v2295
          %v2333 = vsel %vm648, %v2237, %v2297
          %v2334 = vsel %vm648, %v2238, %v2299
          %v2335 = vsel %vm648, %v2239, %v2301
          %v2336 = vsel %vm648, %v2240, %v2303
          %v2337 = vsel %vm648, %v2241, %v2305
          %2354 = vrot.lane.b32.xlu0 %v2226, 96
          %v2355 = vpop.permute.xlu0 %2354
          %2356 = vrot.lane.b32.xlu0 %v2227, 96
          %v2357 = vpop.permute.xlu0 %2356
          %2358 = vrot.lane.b32.xlu0 %v2228, 96
          %v2359 = vpop.permute.xlu0 %2358
          %2360 = vrot.lane.b32.xlu0 %v2229, 96
          %v2361 = vpop.permute.xlu0 %2360
          %2362 = vrot.lane.b32.xlu0 %v2230, 96
          %v2363 = vpop.permute.xlu0 %2362
          %2364 = vrot.lane.b32.xlu0 %v2231, 96
          %v2365 = vpop.permute.xlu0 %2364
          %2366 = vrot.lane.b32.xlu0 %v2232, 96
          %v2367 = vpop.permute.xlu0 %2366
          %2368 = vrot.lane.b32.xlu0 %v2233, 96
          %v2369 = vpop.permute.xlu0 %2368
          %2370 = vrot.lane.b32.xlu0 %v2234, 96
          %v2371 = vpop.permute.xlu0 %2370
          %2372 = vrot.lane.b32.xlu0 %v2235, 96
          %v2373 = vpop.permute.xlu0 %2372
          %2374 = vrot.lane.b32.xlu0 %v2236, 96
          %v2375 = vpop.permute.xlu0 %2374
          %2376 = vrot.lane.b32.xlu0 %v2237, 96
          %v2377 = vpop.permute.xlu0 %2376
          %2378 = vrot.lane.b32.xlu0 %v2238, 96
          %v2379 = vpop.permute.xlu0 %2378
          %2380 = vrot.lane.b32.xlu0 %v2239, 96
          %v2381 = vpop.permute.xlu0 %2380
          %2382 = vrot.lane.b32.xlu0 %v2240, 96
          %v2383 = vpop.permute.xlu0 %2382
          %2384 = vrot.lane.b32.xlu0 %v2241, 96
          %v2385 = vpop.permute.xlu0 %2384
          %v2402 = vsel %vm648, %v2355, %v2242
          %v2403 = vsel %vm648, %v2357, %v2243
          %v2404 = vsel %vm648, %v2359, %v2244
          %v2405 = vsel %vm648, %v2361, %v2245
          %v2406 = vsel %vm648, %v2363, %v2246
          %v2407 = vsel %vm648, %v2365, %v2247
          %v2408 = vsel %vm648, %v2367, %v2248
          %v2409 = vsel %vm648, %v2369, %v2249
          %v2410 = vsel %vm648, %v2371, %v2250
          %v2411 = vsel %vm648, %v2373, %v2251
          %v2412 = vsel %vm648, %v2375, %v2252
          %v2413 = vsel %vm648, %v2377, %v2253
          %v2414 = vsel %vm648, %v2379, %v2254
          %v2415 = vsel %vm648, %v2381, %v2255
          %v2416 = vsel %vm648, %v2383, %v2256
          %v2417 = vsel %vm648, %v2385, %v2257
          %2434 = vrot.lane.b32.xlu0 %v892, 64
          %v2435 = vpop.permute.xlu0 %2434
          %2436 = vrot.lane.b32.xlu0 %v893, 64
          %v2437 = vpop.permute.xlu0 %2436
          %2438 = vrot.lane.b32.xlu0 %v894, 64
          %v2439 = vpop.permute.xlu0 %2438
          %2440 = vrot.lane.b32.xlu0 %v895, 64
          %v2441 = vpop.permute.xlu0 %2440
          %2442 = vrot.lane.b32.xlu0 %v896, 64
          %v2443 = vpop.permute.xlu0 %2442
          %2444 = vrot.lane.b32.xlu0 %v897, 64
          %v2445 = vpop.permute.xlu0 %2444
          %2446 = vrot.lane.b32.xlu0 %v898, 64
          %v2447 = vpop.permute.xlu0 %2446
          %2448 = vrot.lane.b32.xlu0 %v899, 64
          %v2449 = vpop.permute.xlu0 %2448
          %2450 = vrot.lane.b32.xlu0 %v900, 64
          %v2451 = vpop.permute.xlu0 %2450
          %2452 = vrot.lane.b32.xlu0 %v901, 64
          %v2453 = vpop.permute.xlu0 %2452
          %2454 = vrot.lane.b32.xlu0 %v902, 64
          %v2455 = vpop.permute.xlu0 %2454
          %2456 = vrot.lane.b32.xlu0 %v903, 64
          %v2457 = vpop.permute.xlu0 %2456
          %2458 = vrot.lane.b32.xlu0 %v904, 64
          %v2459 = vpop.permute.xlu0 %2458
          %2460 = vrot.lane.b32.xlu0 %v905, 64
          %v2461 = vpop.permute.xlu0 %2460
          %2462 = vrot.lane.b32.xlu0 %v906, 64
          %v2463 = vpop.permute.xlu0 %2462
          %2464 = vrot.lane.b32.xlu0 %v907, 64
          %v2465 = vpop.permute.xlu0 %2464
          %2498 = vrot.lane.b32.xlu0 %v2164, 96
          %v2499 = vpop.permute.xlu0 %2498
          %2500 = vrot.lane.b32.xlu0 %v2167, 96
          %v2501 = vpop.permute.xlu0 %2500
          %2502 = vrot.lane.b32.xlu0 %v2172, 96
          %v2503 = vpop.permute.xlu0 %2502
          %2504 = vrot.lane.b32.xlu0 %v2175, 96
          %v2505 = vpop.permute.xlu0 %2504
          %2506 = vrot.lane.b32.xlu0 %v2180, 96
          %v2507 = vpop.permute.xlu0 %2506
          %2508 = vrot.lane.b32.xlu0 %v2183, 96
          %v2509 = vpop.permute.xlu0 %2508
          %2510 = vrot.lane.b32.xlu0 %v2188, 96
          %v2511 = vpop.permute.xlu0 %2510
          %2512 = vrot.lane.b32.xlu0 %v2191, 96
          %v2513 = vpop.permute.xlu0 %2512
          %2514 = vrot.lane.b32.xlu0 %v2196, 96
          %v2515 = vpop.permute.xlu0 %2514
          %2516 = vrot.lane.b32.xlu0 %v2199, 96
          %v2517 = vpop.permute.xlu0 %2516
          %2518 = vrot.lane.b32.xlu0 %v2204, 96
          %v2519 = vpop.permute.xlu0 %2518
          %2520 = vrot.lane.b32.xlu0 %v2207, 96
          %v2521 = vpop.permute.xlu0 %2520
          %2522 = vrot.lane.b32.xlu0 %v2212, 96
          %v2523 = vpop.permute.xlu0 %2522
          %2524 = vrot.lane.b32.xlu0 %v2215, 96
          %v2525 = vpop.permute.xlu0 %2524
          %2526 = vrot.lane.b32.xlu0 %v2220, 96
          %v2527 = vpop.permute.xlu0 %2526
          %2528 = vrot.lane.b32.xlu0 %v2223, 96
          %v2529 = vpop.permute.xlu0 %2528
          %v2546 = vsel %vm648, %v2435, %v2499
          %v2547 = vsel %vm648, %v2437, %v2501
          %v2548 = vsel %vm648, %v2439, %v2503
          %v2549 = vsel %vm648, %v2441, %v2505
          %v2550 = vsel %vm648, %v2443, %v2507
          %v2551 = vsel %vm648, %v2445, %v2509
          %v2552 = vsel %vm648, %v2447, %v2511
          %v2553 = vsel %vm648, %v2449, %v2513
          %v2554 = vsel %vm648, %v2451, %v2515
          %v2555 = vsel %vm648, %v2453, %v2517
          %v2556 = vsel %vm648, %v2455, %v2519
          %v2557 = vsel %vm648, %v2457, %v2521
          %v2558 = vsel %vm648, %v2459, %v2523
          %v2559 = vsel %vm648, %v2461, %v2525
          %v2560 = vsel %vm648, %v2463, %v2527
          %v2561 = vsel %vm648, %v2465, %v2529
          %vm2562 = vcmask 523264
          %v2563 = vsel %vm2562, %v2546, 1.0
          %v2564 = vsel %vm2562, %v2547, 1.0
          %v2565 = vsel %vm2562, %v2548, 1.0
          %v2566 = vsel %vm2562, %v2549, 1.0
          %v2567 = vsel %vm2562, %v2550, 1.0
          %v2568 = vsel %vm2562, %v2551, 1.0
          %v2569 = vsel %vm2562, %v2552, 1.0
          %v2570 = vsel %vm2562, %v2553, 1.0
          %v2571 = vsel %vm2562, %v2554, 1.0
          %v2572 = vsel %vm2562, %v2555, 1.0
          %v2573 = vsel %vm2562, %v2556, 1.0
          %v2574 = vsel %vm2562, %v2557, 1.0
          %v2575 = vsel %vm2562, %v2558, 1.0
          %v2576 = vsel %vm2562, %v2559, 1.0
          %v2577 = vsel %vm2562, %v2560, 1.0
          %v2578 = vsel %vm2562, %v2561, 1.0
          %s2579 = smul.u32 %s35, 128
          %s2580 = scalar_lea.vmem [#allocation3], %s2579
          %2581 = vst.msk [vmem:[%s2580] sm:$0xff] %vm2562, %v2322
          %2582 = vst.msk [vmem:[%s2580 + $0x8] sm:$0xff] %vm2562, %v2323
          %2583 = vst.msk [vmem:[%s2580 + $0x10] sm:$0xff] %vm2562, %v2324
          %2584 = vst.msk [vmem:[%s2580 + $0x18] sm:$0xff] %vm2562, %v2325
          %2585 = vst.msk [vmem:[%s2580 + $0x20] sm:$0xff] %vm2562, %v2326
          %2586 = vst.msk [vmem:[%s2580 + $0x28] sm:$0xff] %vm2562, %v2327
          %2587 = vst.msk [vmem:[%s2580 + $0x30] sm:$0xff] %vm2562, %v2328
          %2588 = vst.msk [vmem:[%s2580 + $0x38] sm:$0xff] %vm2562, %v2329
          %2589 = vst.msk [vmem:[%s2580 + $0x40] sm:$0xff] %vm2562, %v2330
          %2590 = vst.msk [vmem:[%s2580 + $0x48] sm:$0xff] %vm2562, %v2331
          %2591 = vst.msk [vmem:[%s2580 + $0x50] sm:$0xff] %vm2562, %v2332
          %2592 = vst.msk [vmem:[%s2580 + $0x58] sm:$0xff] %vm2562, %v2333
          %2593 = vst.msk [vmem:[%s2580 + $0x60] sm:$0xff] %vm2562, %v2334
          %2594 = vst.msk [vmem:[%s2580 + $0x68] sm:$0xff] %vm2562, %v2335
          %2595 = vst.msk [vmem:[%s2580 + $0x70] sm:$0xff] %vm2562, %v2336
          %2596 = vst.msk [vmem:[%s2580 + $0x78] sm:$0xff] %vm2562, %v2337
          %v2597 = vld [vmem:[#allocation2] sm:$0xff]
          %v2598 = vld [vmem:[#allocation2 + $0x8] sm:$0xff]
          %v2599 = vld [vmem:[#allocation2 + $0x10] sm:$0xff]
          %v2600 = vld [vmem:[#allocation2 + $0x18] sm:$0xff]
          %v2601 = vld [vmem:[#allocation2 + $0x20] sm:$0xff]
          %v2602 = vld [vmem:[#allocation2 + $0x28] sm:$0xff]
          %v2603 = vld [vmem:[#allocation2 + $0x30] sm:$0xff]
          %v2604 = vld [vmem:[#allocation2 + $0x38] sm:$0xff]
          %v2605 = vpack.c.bf16 %v2403, %v2402
          %v2606 = vpack.c.bf16 %v2405, %v2404
          %v2607 = vpack.c.bf16 %v2407, %v2406
          %v2608 = vpack.c.bf16 %v2409, %v2408
          %v2609 = vpack.c.bf16 %v2411, %v2410
          %v2610 = vpack.c.bf16 %v2413, %v2412
          %v2611 = vpack.c.bf16 %v2415, %v2414
          %v2612 = vpack.c.bf16 %v2417, %v2416
          %v2613 = vpack.c.bf16 %v2564, %v2563
          %v2614 = vpack.c.bf16 %v2566, %v2565
          %v2615 = vpack.c.bf16 %v2568, %v2567
          %v2616 = vpack.c.bf16 %v2570, %v2569
          %v2617 = vpack.c.bf16 %v2572, %v2571
          %v2618 = vpack.c.bf16 %v2574, %v2573
          %v2619 = vpack.c.bf16 %v2576, %v2575
          %v2620 = vpack.c.bf16 %v2578, %v2577
          %2621 = vxpose.xlu0.c.b16.start [1/8] %v2605, 128
          %2622 = vxpose.xlu0.c.b16.cont [2/8] %v2606, 128
          %2623 = vxpose.xlu0.c.b16.cont [3/8] %v2607, 128
          %2624 = vxpose.xlu0.c.b16.cont [4/8] %v2608, 128
          %2625 = vxpose.xlu0.c.b16.cont [5/8] %v2609, 128
          %2626 = vxpose.xlu0.c.b16.cont [6/8] %v2610, 128
          %2627 = vxpose.xlu0.c.b16.cont [7/8] %v2611, 128
          %2628 = vxpose.xlu0.c.b16.end [8/8] %v2612, 128
          %v2629 = vpop.trf.xlu0
          %v2630 = vpop.trf.xlu0
          %v2631 = vpop.trf.xlu0
          %v2632 = vpop.trf.xlu0
          %v2633 = vpop.trf.xlu0
          %v2634 = vpop.trf.xlu0
          %v2635 = vpop.trf.xlu0
          %v2636 = vpop.trf.xlu0
          %2637 = vmatprep.subr.bf16.mxu0 0
          %2638 = vmatpush1.bf16.msra.mxu0 %v2613
          %2639 = vmatprep.subr.bf16.mxu0 0
          %2640 = vmatpush1.bf16.msra.mxu0 %v2614
          %2641 = vmatprep.subr.bf16.mxu0 0
          %2642 = vmatpush1.bf16.msra.mxu0 %v2615
          %2643 = vmatprep.subr.bf16.mxu0 0
          %2644 = vmatpush1.bf16.msra.mxu0 %v2616
          %2645 = vmatprep.subr.bf16.mxu0 0
          %2646 = vmatpush1.bf16.msra.mxu0 %v2617
          %2647 = vmatprep.subr.bf16.mxu0 0
          %2648 = vmatpush1.bf16.msra.mxu0 %v2618
          %2649 = vmatprep.subr.bf16.mxu0 0
          %2650 = vmatpush1.bf16.msra.mxu0 %v2619
          %2651 = vmatprep.subr.bf16.mxu0 0
          %2652 = vmatpush1.bf16.msra.mxu0 %v2620
          %2653 = vmatprep.subr.bf16.mxu0 0
          %2654 = vmatpush1.bf16.msra.mxu0 0
          %2655 = vmatprep.subr.bf16.mxu0 0
          %2656 = vmatpush1.bf16.msra.mxu0 0
          %2657 = vmatprep.subr.bf16.mxu0 0
          %2658 = vmatpush1.bf16.msra.mxu0 0
          %2659 = vmatprep.subr.bf16.mxu0 0
          %2660 = vmatpush1.bf16.msra.mxu0 0
          %2661 = vmatprep.subr.bf16.mxu0 0
          %2662 = vmatpush1.bf16.msra.mxu0 0
          %2663 = vmatprep.subr.bf16.mxu0 0
          %2664 = vmatpush1.bf16.msra.mxu0 0
          %2665 = vmatprep.subr.bf16.mxu0 0
          %2666 = vmatpush1.bf16.msra.mxu0 0
          %2667 = vmatprep.subr.bf16.mxu0 0
          %2668 = vmatpush1.bf16.msra.mxu0 0
          %2669 = vmatprep.mubr.bf16.mxu0 0
          %2670 = vmatmul.mubr.bf16.gmra.mrb[0].mxu0 %v2629
          %v2671 = vpop.f32.mrb[0].mxu0
          %v2672 = vadd.f32 0.0, %v2671
          %v2673 = vpop.f32.mrb[0].mxu0
          %v2674 = vpop.f32.mrb[0].mxu0
          %v2675 = vadd.f32 0.0, %v2674
          %v2676 = vpop.f32.mrb[0].mxu0
          %2677 = vmatprep.mubr.bf16.mxu0 0
          %2678 = vmatmul.mubr.bf16.gmra.mrb[0].mxu0 %v2630
          %v2679 = vpop.f32.mrb[0].mxu0
          %v2680 = vadd.f32 0.0, %v2679
          %v2681 = vpop.f32.mrb[0].mxu0
          %v2682 = vpop.f32.mrb[0].mxu0
          %v2683 = vadd.f32 0.0, %v2682
          %v2684 = vpop.f32.mrb[0].mxu0
          %2685 = vmatprep.mubr.bf16.mxu0 0
          %2686 = vmatmul.mubr.bf16.gmra.mrb[0].mxu0 %v2631
          %v2687 = vpop.f32.mrb[0].mxu0
          %v2688 = vadd.f32 0.0, %v2687
          %v2689 = vpop.f32.mrb[0].mxu0
          %v2690 = vpop.f32.mrb[0].mxu0
          %v2691 = vadd.f32 0.0, %v2690
          %v2692 = vpop.f32.mrb[0].mxu0
          %2693 = vmatprep.mubr.bf16.mxu0 0
          %2694 = vmatmul.mubr.bf16.gmra.mrb[0].mxu0 %v2632
          %v2695 = vpop.f32.mrb[0].mxu0
          %v2696 = vadd.f32 0.0, %v2695
          %v2697 = vpop.f32.mrb[0].mxu0
          %v2698 = vpop.f32.mrb[0].mxu0
          %v2699 = vadd.f32 0.0, %v2698
          %v2700 = vpop.f32.mrb[0].mxu0
          %2701 = vdwg.mxu0
          %v2702 = vadd.f32 %v2597, %v2672
          %v2703 = vadd.f32 %v2598, %v2675
          %v2704 = vadd.f32 %v2599, %v2680
          %v2705 = vadd.f32 %v2600, %v2683
          %v2706 = vadd.f32 %v2601, %v2688
          %v2707 = vadd.f32 %v2602, %v2691
          %v2708 = vadd.f32 %v2603, %v2696
          %v2709 = vadd.f32 %v2604, %v2699
          %vm2710 = vcmask 531456
          %2711 = vst.msk [vmem:[#allocation2] sm:$0xff] %vm2710, %v2702
          %2712 = vst.msk [vmem:[#allocation2 + $0x8] sm:$0xff] %vm2710, %v2703
          %2713 = vst.msk [vmem:[#allocation2 + $0x10] sm:$0xff] %vm2710, %v2704
          %2714 = vst.msk [vmem:[#allocation2 + $0x18] sm:$0xff] %vm2710, %v2705
          %2715 = vst.msk [vmem:[#allocation2 + $0x20] sm:$0xff] %vm2710, %v2706
          %2716 = vst.msk [vmem:[#allocation2 + $0x28] sm:$0xff] %vm2710, %v2707
          %2717 = vst.msk [vmem:[#allocation2 + $0x30] sm:$0xff] %vm2710, %v2708
          %2718 = vst.msk [vmem:[#allocation2 + $0x38] sm:$0xff] %vm2710, %v2709
        $region84: #{lite_mla_forward.1} parent=59 // pred_fallthru
          _
        %p2719 = scmp.eq.s32.totalorder %s34, 1
        // Predicated region
        $region89: #{lite_mla_forward.1} parent=59 // pred_check
          %p2720 = pneg %p2719
        $region90: #{lite_mla_forward.1} parent=59 // pred_check_branch
          %2722 = sbr.rel (%p2720) target = $region92
        $region91: #{lite_mla_forward.1} parent=59 // pred_region
          %p2723 = scmp.eq.s32.totalorder %s35, 0
          // Predicated region
          $region93: #{lite_mla_forward.1} parent=91 // pred_check
            %p2724 = pneg %p2723
          $region94: #{lite_mla_forward.1} parent=91 // pred_check_branch
            %2726 = sbr.rel (%p2724) target = $region96
          $region95: #{lite_mla_forward.1} parent=91 // pred_region
            %v2727 = vld [vmem:[#allocation12] sm:$0xff]
            %v2728 = vld [vmem:[#allocation12 + $0x8] sm:$0xff]
            %v2729 = vld [vmem:[#allocation12 + $0x10] sm:$0xff]
            %v2730 = vld [vmem:[#allocation12 + $0x18] sm:$0xff]
            %v2731 = vld [vmem:[#allocation12 + $0x20] sm:$0xff]
            %v2732 = vld [vmem:[#allocation12 + $0x28] sm:$0xff]
            %v2733 = vld [vmem:[#allocation12 + $0x30] sm:$0xff]
            %v2734 = vld [vmem:[#allocation12 + $0x38] sm:$0xff]
            %v2735 = vld [vmem:[#allocation2] sm:$0xff]
            %v2736 = vld [vmem:[#allocation2 + $0x8] sm:$0xff]
            %v2737 = vld [vmem:[#allocation2 + $0x10] sm:$0xff]
            %v2738 = vld [vmem:[#allocation2 + $0x18] sm:$0xff]
            %v2739 = vld [vmem:[#allocation2 + $0x20] sm:$0xff]
            %v2740 = vld [vmem:[#allocation2 + $0x28] sm:$0xff]
            %v2741 = vld [vmem:[#allocation2 + $0x30] sm:$0xff]
            %v2742 = vld [vmem:[#allocation2 + $0x38] sm:$0xff]
            %v2743 = vmul.f32 %v2735, %v2727
            %v2744 = vmul.f32 %v2736, %v2728
            %v2745 = vmul.f32 %v2737, %v2729
            %v2746 = vmul.f32 %v2738, %v2730
            %v2747 = vmul.f32 %v2739, %v2731
            %v2748 = vmul.f32 %v2740, %v2732
            %v2749 = vmul.f32 %v2741, %v2733
            %v2750 = vmul.f32 %v2742, %v2734
            %2752 = vset.pattern.permute.xlu0 64
            %2753 = vperm.xlu0 %2752, %v2735
            %v2754 = vpop.permute.xlu0 %2753
            %2757 = vset.pattern.permute.xlu0 64
            %2758 = vperm.xlu0 %2757, %v2736
            %v2759 = vpop.permute.xlu0 %2758
            %2762 = vset.pattern.permute.xlu0 64
            %2763 = vperm.xlu0 %2762, %v2737
            %v2764 = vpop.permute.xlu0 %2763
            %2767 = vset.pattern.permute.xlu0 64
            %2768 = vperm.xlu0 %2767, %v2738
            %v2769 = vpop.permute.xlu0 %2768
            %2772 = vset.pattern.permute.xlu0 64
            %2773 = vperm.xlu0 %2772, %v2739
            %v2774 = vpop.permute.xlu0 %2773
            %2777 = vset.pattern.permute.xlu0 64
            %2778 = vperm.xlu0 %2777, %v2740
            %v2779 = vpop.permute.xlu0 %2778
            %2782 = vset.pattern.permute.xlu0 64
            %2783 = vperm.xlu0 %2782, %v2741
            %v2784 = vpop.permute.xlu0 %2783
            %2787 = vset.pattern.permute.xlu0 64
            %2788 = vperm.xlu0 %2787, %v2742
            %v2789 = vpop.permute.xlu0 %2788
            %v2791 = vmul.f32 %v2754, %v2727
            %v2792 = vmul.f32 %v2759, %v2728
            %v2793 = vmul.f32 %v2764, %v2729
            %v2794 = vmul.f32 %v2769, %v2730
            %v2795 = vmul.f32 %v2774, %v2731
            %v2796 = vmul.f32 %v2779, %v2732
            %v2797 = vmul.f32 %v2784, %v2733
            %v2798 = vmul.f32 %v2789, %v2734
            %2807 = vrot.lane.b32.xlu0 %v2791, 64
            %v2808 = vpop.permute.xlu0 %2807
            %2809 = vrot.lane.b32.xlu0 %v2792, 64
            %v2810 = vpop.permute.xlu0 %2809
            %2811 = vrot.lane.b32.xlu0 %v2793, 64
            %v2812 = vpop.permute.xlu0 %2811
            %2813 = vrot.lane.b32.xlu0 %v2794, 64
            %v2814 = vpop.permute.xlu0 %2813
            %2815 = vrot.lane.b32.xlu0 %v2795, 64
            %v2816 = vpop.permute.xlu0 %2815
            %2817 = vrot.lane.b32.xlu0 %v2796, 64
            %v2818 = vpop.permute.xlu0 %2817
            %2819 = vrot.lane.b32.xlu0 %v2797, 64
            %v2820 = vpop.permute.xlu0 %2819
            %2821 = vrot.lane.b32.xlu0 %v2798, 64
            %v2822 = vpop.permute.xlu0 %2821
            %vm2831 = vcmask 523264
            %v2832 = vsel %vm2831, %v2743, %v2808
            %v2833 = vsel %vm2831, %v2744, %v2810
            %v2834 = vsel %vm2831, %v2745, %v2812
            %v2835 = vsel %vm2831, %v2746, %v2814
            %v2836 = vsel %vm2831, %v2747, %v2816
            %v2837 = vsel %vm2831, %v2748, %v2818
            %v2838 = vsel %vm2831, %v2749, %v2820
            %v2839 = vsel %vm2831, %v2750, %v2822
            %v2840 = vpack.c.bf16 %v2833, %v2832
            %v2841 = vpack.c.bf16 %v2835, %v2834
            %v2842 = vpack.c.bf16 %v2837, %v2836
            %v2843 = vpack.c.bf16 %v2839, %v2838
            %2844 = vst [vmem:[#allocation4] sm:$0xff] %v2840
            %2845 = vst [vmem:[#allocation4 + $0x8] sm:$0xff] %v2841
            %2846 = vst [vmem:[#allocation4 + $0x10] sm:$0xff] %v2842
            %2847 = vst [vmem:[#allocation4 + $0x18] sm:$0xff] %v2843
          $region96: #{lite_mla_forward.1} parent=91 // pred_fallthru
            _
          %s2848 = smul.u32 %s35, 128
          %s2849 = scalar_lea.vmem [#allocation3], %s2848
          %v2850 = vld [vmem:[%s2849] sm:$0xff]
          %v2851 = vld [vmem:[%s2849 + $0x8] sm:$0xff]
          %v2852 = vld [vmem:[%s2849 + $0x10] sm:$0xff]
          %v2853 = vld [vmem:[%s2849 + $0x18] sm:$0xff]
          %v2854 = vld [vmem:[%s2849 + $0x20] sm:$0xff]
          %v2855 = vld [vmem:[%s2849 + $0x28] sm:$0xff]
          %v2856 = vld [vmem:[%s2849 + $0x30] sm:$0xff]
          %v2857 = vld [vmem:[%s2849 + $0x38] sm:$0xff]
          %v2858 = vld [vmem:[%s2849 + $0x40] sm:$0xff]
          %v2859 = vld [vmem:[%s2849 + $0x48] sm:$0xff]
          %v2860 = vld [vmem:[%s2849 + $0x50] sm:$0xff]
          %v2861 = vld [vmem:[%s2849 + $0x58] sm:$0xff]
          %v2862 = vld [vmem:[%s2849 + $0x60] sm:$0xff]
          %v2863 = vld [vmem:[%s2849 + $0x68] sm:$0xff]
          %v2864 = vld [vmem:[%s2849 + $0x70] sm:$0xff]
          %v2865 = vld [vmem:[%s2849 + $0x78] sm:$0xff]
          %v2866 = vpack.c.bf16 %v2851, %v2850
          %v2867 = vpack.c.bf16 %v2853, %v2852
          %v2868 = vpack.c.bf16 %v2855, %v2854
          %v2869 = vpack.c.bf16 %v2857, %v2856
          %v2870 = vpack.c.bf16 %v2859, %v2858
          %v2871 = vpack.c.bf16 %v2861, %v2860
          %v2872 = vpack.c.bf16 %v2863, %v2862
          %v2873 = vpack.c.bf16 %v2865, %v2864
          %v2874 = vld [vmem:[#allocation4] sm:$0xff]
          %v2875 = vld [vmem:[#allocation4 + $0x8] sm:$0xff]
          %v2876 = vld [vmem:[#allocation4 + $0x10] sm:$0xff]
          %v2877 = vld [vmem:[#allocation4 + $0x18] sm:$0xff]
          %vm2878 = vcmask 523264
          %v2880 = vsel %vm2878, %v2866, 0
          %v2883 = vsel %vm2878, %v2867, 0
          %v2886 = vsel %vm2878, %v2868, 0
          %v2889 = vsel %vm2878, %v2869, 0
          %v2892 = vsel %vm2878, %v2870, 0
          %v2895 = vsel %vm2878, %v2871, 0
          %v2898 = vsel %vm2878, %v2872, 0
          %v2901 = vsel %vm2878, %v2873, 0
          %2903 = vmatprep.subr.bf16.mxu0 0
          %2904 = vmatpush1.bf16.msra.mxu0 %v2874
          %2905 = vmatprep.subr.bf16.mxu0 0
          %2906 = vmatpush1.bf16.msra.mxu0 %v2875
          %2907 = vmatprep.subr.bf16.mxu0 0
          %2908 = vmatpush1.bf16.msra.mxu0 %v2876
          %2909 = vmatprep.subr.bf16.mxu0 0
          %2910 = vmatpush1.bf16.msra.mxu0 %v2877
          %2911 = vmatprep.subr.bf16.mxu0 0
          %2912 = vmatpush1.bf16.msra.mxu0 0
          %2913 = vmatprep.subr.bf16.mxu0 0
          %2914 = vmatpush1.bf16.msra.mxu0 0
          %2915 = vmatprep.subr.bf16.mxu0 0
          %2916 = vmatpush1.bf16.msra.mxu0 0
          %2917 = vmatprep.subr.bf16.mxu0 0
          %2918 = vmatpush1.bf16.msra.mxu0 0
          %2919 = vmatprep.subr.bf16.mxu0 0
          %2920 = vmatpush1.bf16.msra.mxu0 0
          %2921 = vmatprep.subr.bf16.mxu0 0
          %2922 = vmatpush1.bf16.msra.mxu0 0
          %2923 = vmatprep.subr.bf16.mxu0 0
          %2924 = vmatpush1.bf16.msra.mxu0 0
          %2925 = vmatprep.subr.bf16.mxu0 0
          %2926 = vmatpush1.bf16.msra.mxu0 0
          %2927 = vmatprep.subr.bf16.mxu0 0
          %2928 = vmatpush1.bf16.msra.mxu0 0
          %2929 = vmatprep.subr.bf16.mxu0 0
          %2930 = vmatpush1.bf16.msra.mxu0 0
          %2931 = vmatprep.subr.bf16.mxu0 0
          %2932 = vmatpush1.bf16.msra.mxu0 0
          %2933 = vmatprep.subr.bf16.mxu0 0
          %2934 = vmatpush1.bf16.msra.mxu0 0
          %2935 = vmatprep.mubr.bf16.mxu0 0
          %2936 = vmatmul.mubr.bf16.gmra.mrb[0].mxu0 %v2880
          %v2937 = vpop.f32.mrb[0].mxu0
          %v2938 = vadd.f32 0.0, %v2937
          %v2939 = vpop.f32.mrb[0].mxu0
          %v2940 = vpop.f32.mrb[0].mxu0
          %v2941 = vadd.f32 0.0, %v2940
          %v2942 = vpop.f32.mrb[0].mxu0
          %2943 = vmatprep.mubr.bf16.mxu0 0
          %2944 = vmatmul.mubr.bf16.gmra.mrb[0].mxu0 %v2883
          %v2945 = vpop.f32.mrb[0].mxu0
          %v2946 = vadd.f32 0.0, %v2945
          %v2947 = vpop.f32.mrb[0].mxu0
          %v2948 = vpop.f32.mrb[0].mxu0
          %v2949 = vadd.f32 0.0, %v2948
          %v2950 = vpop.f32.mrb[0].mxu0
          %2951 = vmatprep.mubr.bf16.mxu0 0
          %2952 = vmatmul.mubr.bf16.gmra.mrb[0].mxu0 %v2886
          %v2953 = vpop.f32.mrb[0].mxu0
          %v2954 = vadd.f32 0.0, %v2953
          %v2955 = vpop.f32.mrb[0].mxu0
          %v2956 = vpop.f32.mrb[0].mxu0
          %v2957 = vadd.f32 0.0, %v2956
          %v2958 = vpop.f32.mrb[0].mxu0
          %2959 = vmatprep.mubr.bf16.mxu0 0
          %2960 = vmatmul.mubr.bf16.gmra.mrb[0].mxu0 %v2889
          %v2961 = vpop.f32.mrb[0].mxu0
          %v2962 = vadd.f32 0.0, %v2961
          %v2963 = vpop.f32.mrb[0].mxu0
          %v2964 = vpop.f32.mrb[0].mxu0
          %v2965 = vadd.f32 0.0, %v2964
          %v2966 = vpop.f32.mrb[0].mxu0
          %2967 = vmatprep.mubr.bf16.mxu0 0
          %2968 = vmatmul.mubr.bf16.gmra.mrb[0].mxu0 %v2892
          %v2969 = vpop.f32.mrb[0].mxu0
          %v2970 = vadd.f32 0.0, %v2969
          %v2971 = vpop.f32.mrb[0].mxu0
          %v2972 = vpop.f32.mrb[0].mxu0
          %v2973 = vadd.f32 0.0, %v2972
          %v2974 = vpop.f32.mrb[0].mxu0
          %2975 = vmatprep.mubr.bf16.mxu0 0
          %2976 = vmatmul.mubr.bf16.gmra.mrb[0].mxu0 %v2895
          %v2977 = vpop.f32.mrb[0].mxu0
          %v2978 = vadd.f32 0.0, %v2977
          %v2979 = vpop.f32.mrb[0].mxu0
          %v2980 = vpop.f32.mrb[0].mxu0
          %v2981 = vadd.f32 0.0, %v2980
          %v2982 = vpop.f32.mrb[0].mxu0
          %2983 = vmatprep.mubr.bf16.mxu0 0
          %2984 = vmatmul.mubr.bf16.gmra.mrb[0].mxu0 %v2898
          %v2985 = vpop.f32.mrb[0].mxu0
          %v2986 = vadd.f32 0.0, %v2985
          %v2987 = vpop.f32.mrb[0].mxu0
          %v2988 = vpop.f32.mrb[0].mxu0
          %v2989 = vadd.f32 0.0, %v2988
          %v2990 = vpop.f32.mrb[0].mxu0
          %2991 = vmatprep.mubr.bf16.mxu0 0
          %2992 = vmatmul.mubr.bf16.gmra.mrb[0].mxu0 %v2901
          %v2993 = vpop.f32.mrb[0].mxu0
          %v2994 = vadd.f32 0.0, %v2993
          %v2995 = vpop.f32.mrb[0].mxu0
          %v2996 = vpop.f32.mrb[0].mxu0
          %v2997 = vadd.f32 0.0, %v2996
          %v2998 = vpop.f32.mrb[0].mxu0
          %2999 = vdwg.mxu0
          %v3000 = vadd.f32 %v2938, 1e-15
          %v3001 = vadd.f32 %v2941, 1e-15
          %v3002 = vadd.f32 %v2946, 1e-15
          %v3003 = vadd.f32 %v2949, 1e-15
          %v3004 = vadd.f32 %v2954, 1e-15
          %v3005 = vadd.f32 %v2957, 1e-15
          %v3006 = vadd.f32 %v2962, 1e-15
          %v3007 = vadd.f32 %v2965, 1e-15
          %v3008 = vadd.f32 %v2970, 1e-15
          %v3009 = vadd.f32 %v2973, 1e-15
          %v3010 = vadd.f32 %v2978, 1e-15
          %v3011 = vadd.f32 %v2981, 1e-15
          %v3012 = vadd.f32 %v2986, 1e-15
          %v3013 = vadd.f32 %v2989, 1e-15
          %v3014 = vadd.f32 %v2994, 1e-15
          %v3015 = vadd.f32 %v2997, 1e-15
          %v3016 = vrcp.pop %v3000
          %v3017 = vrcp.pop %v3001
          %v3018 = vrcp.pop %v3002
          %v3019 = vrcp.pop %v3003
          %v3020 = vrcp.pop %v3004
          %v3021 = vrcp.pop %v3005
          %v3022 = vrcp.pop %v3006
          %v3023 = vrcp.pop %v3007
          %v3024 = vrcp.pop %v3008
          %v3025 = vrcp.pop %v3009
          %v3026 = vrcp.pop %v3010
          %v3027 = vrcp.pop %v3011
          %v3028 = vrcp.pop %v3012
          %v3029 = vrcp.pop %v3013
          %v3030 = vrcp.pop %v3014
          %v3031 = vrcp.pop %v3015
          %3048 = vrot.lane.b32.xlu0 %v3016, 64
          %v3049 = vpop.permute.xlu0 %3048
          %3050 = vrot.lane.b32.xlu0 %v3017, 64
          %v3051 = vpop.permute.xlu0 %3050
          %3052 = vrot.lane.b32.xlu0 %v3018, 64
          %v3053 = vpop.permute.xlu0 %3052
          %3054 = vrot.lane.b32.xlu0 %v3019, 64
          %v3055 = vpop.permute.xlu0 %3054
          %3056 = vrot.lane.b32.xlu0 %v3020, 64
          %v3057 = vpop.permute.xlu0 %3056
          %3058 = vrot.lane.b32.xlu0 %v3021, 64
          %v3059 = vpop.permute.xlu0 %3058
          %3060 = vrot.lane.b32.xlu0 %v3022, 64
          %v3061 = vpop.permute.xlu0 %3060
          %3062 = vrot.lane.b32.xlu0 %v3023, 64
          %v3063 = vpop.permute.xlu0 %3062
          %3064 = vrot.lane.b32.xlu0 %v3024, 64
          %v3065 = vpop.permute.xlu0 %3064
          %3066 = vrot.lane.b32.xlu0 %v3025, 64
          %v3067 = vpop.permute.xlu0 %3066
          %3068 = vrot.lane.b32.xlu0 %v3026, 64
          %v3069 = vpop.permute.xlu0 %3068
          %3070 = vrot.lane.b32.xlu0 %v3027, 64
          %v3071 = vpop.permute.xlu0 %3070
          %3072 = vrot.lane.b32.xlu0 %v3028, 64
          %v3073 = vpop.permute.xlu0 %3072
          %3074 = vrot.lane.b32.xlu0 %v3029, 64
          %v3075 = vpop.permute.xlu0 %3074
          %3076 = vrot.lane.b32.xlu0 %v3030, 64
          %v3077 = vpop.permute.xlu0 %3076
          %3078 = vrot.lane.b32.xlu0 %v3031, 64
          %v3079 = vpop.permute.xlu0 %3078
          %v3096 = vmul.f32 %v2938, %v3049
          %v3097 = vmul.f32 %v2941, %v3051
          %v3098 = vmul.f32 %v2946, %v3053
          %v3099 = vmul.f32 %v2949, %v3055
          %v3100 = vmul.f32 %v2954, %v3057
          %v3101 = vmul.f32 %v2957, %v3059
          %v3102 = vmul.f32 %v2962, %v3061
          %v3103 = vmul.f32 %v2965, %v3063
          %v3104 = vmul.f32 %v2970, %v3065
          %v3105 = vmul.f32 %v2973, %v3067
          %v3106 = vmul.f32 %v2978, %v3069
          %v3107 = vmul.f32 %v2981, %v3071
          %v3108 = vmul.f32 %v2986, %v3073
          %v3109 = vmul.f32 %v2989, %v3075
          %v3110 = vmul.f32 %v2994, %v3077
          %v3111 = vmul.f32 %v2997, %v3079
          %v3112 = vpack.c.bf16 %v3097, %v3096
          %v3113 = vpack.c.bf16 %v3099, %v3098
          %v3114 = vpack.c.bf16 %v3101, %v3100
          %v3115 = vpack.c.bf16 %v3103, %v3102
          %v3116 = vpack.c.bf16 %v3105, %v3104
          %v3117 = vpack.c.bf16 %v3107, %v3106
          %v3118 = vpack.c.bf16 %v3109, %v3108
          %v3119 = vpack.c.bf16 %v3111, %v3110
          %v3120 = vld [vmem:[%s8] sm:$0xf]
          %v3121 = vld [vmem:[%s8 + $0x4] sm:$0xf]
          %v3122 = vld [vmem:[%s8 + $0x8] sm:$0xf]
          %v3123 = vld [vmem:[%s8 + $0xc] sm:$0xf]
          %v3124 = vld [vmem:[%s8 + $0x10] sm:$0xf]
          %v3125 = vld [vmem:[%s8 + $0x14] sm:$0xf]
          %v3126 = vld [vmem:[%s8 + $0x18] sm:$0xf]
          %v3127 = vld [vmem:[%s8 + $0x1c] sm:$0xf]
          %v3128 = vld [vmem:[%s9] sm:$0x1]
          %v3130 = vlaneseq
          %v3131 = vshrl.u32 %v3130, 7
          %v3132 = vsub.s32 0, %v3131
          %v3133 = vrot.slane %v3128, %v3132
          %v3143 = vunpack.c.l.b16 %v3120
          %v3144 = vunpack.c.l.b16 %v3121
          %v3145 = vunpack.c.l.b16 %v3122
          %v3146 = vunpack.c.l.b16 %v3123
          %v3147 = vunpack.c.l.b16 %v3124
          %v3148 = vunpack.c.l.b16 %v3125
          %v3149 = vunpack.c.l.b16 %v3126
          %v3150 = vunpack.c.l.b16 %v3127
          %v3151 = vpack.c.b16 %v3144, %v3143
          %v3152 = vpack.c.b16 %v3146, %v3145
          %v3153 = vpack.c.b16 %v3148, %v3147
          %v3154 = vpack.c.b16 %v3150, %v3149
          %v3160 = vsel %vm2878, %v3112, 0
          %v3163 = vsel %vm2878, %v3113, 0
          %v3166 = vsel %vm2878, %v3114, 0
          %v3169 = vsel %vm2878, %v3115, 0
          %v3172 = vsel %vm2878, %v3116, 0
          %v3175 = vsel %vm2878, %v3117, 0
          %v3178 = vsel %vm2878, %v3118, 0
          %v3181 = vsel %vm2878, %v3119, 0
          %3183 = vmatprep.subr.bf16.mxu0 0
          %3184 = vmatpush1.bf16.msra.mxu0 %v3151
          %3185 = vmatprep.subr.bf16.mxu0 0
          %3186 = vmatpush1.bf16.msra.mxu0 %v3152
          %3187 = vmatprep.subr.bf16.mxu0 0
          %3188 = vmatpush1.bf16.msra.mxu0 %v3153
          %3189 = vmatprep.subr.bf16.mxu0 0
          %3190 = vmatpush1.bf16.msra.mxu0 %v3154
          %3191 = vmatprep.subr.bf16.mxu0 0
          %3192 = vmatpush1.bf16.msra.mxu0 0
          %3193 = vmatprep.subr.bf16.mxu0 0
          %3194 = vmatpush1.bf16.msra.mxu0 0
          %3195 = vmatprep.subr.bf16.mxu0 0
          %3196 = vmatpush1.bf16.msra.mxu0 0
          %3197 = vmatprep.subr.bf16.mxu0 0
          %3198 = vmatpush1.bf16.msra.mxu0 0
          %3199 = vmatprep.subr.bf16.mxu0 0
          %3200 = vmatpush1.bf16.msra.mxu0 0
          %3201 = vmatprep.subr.bf16.mxu0 0
          %3202 = vmatpush1.bf16.msra.mxu0 0
          %3203 = vmatprep.subr.bf16.mxu0 0
          %3204 = vmatpush1.bf16.msra.mxu0 0
          %3205 = vmatprep.subr.bf16.mxu0 0
          %3206 = vmatpush1.bf16.msra.mxu0 0
          %3207 = vmatprep.subr.bf16.mxu0 0
          %3208 = vmatpush1.bf16.msra.mxu0 0
          %3209 = vmatprep.subr.bf16.mxu0 0
          %3210 = vmatpush1.bf16.msra.mxu0 0
          %3211 = vmatprep.subr.bf16.mxu0 0
          %3212 = vmatpush1.bf16.msra.mxu0 0
          %3213 = vmatprep.subr.bf16.mxu0 0
          %3214 = vmatpush1.bf16.msra.mxu0 0
          %3215 = vmatprep.mubr.bf16.mxu0 0
          %3216 = vmatmul.mubr.bf16.gmra.mrb[0].mxu0 %v3160
          %v3217 = vpop.f32.mrb[0].mxu0
          %v3218 = vadd.f32 %v3133, %v3217
          %v3219 = vpop.f32.mrb[0].mxu0
          %v3220 = vpop.f32.mrb[0].mxu0
          %v3221 = vadd.f32 %v3133, %v3220
          %v3222 = vpop.f32.mrb[0].mxu0
          %3223 = vmatprep.mubr.bf16.mxu0 0
          %3224 = vmatmul.mubr.bf16.gmra.mrb[0].mxu0 %v3163
          %v3225 = vpop.f32.mrb[0].mxu0
          %v3226 = vadd.f32 %v3133, %v3225
          %v3227 = vpop.f32.mrb[0].mxu0
          %v3228 = vpop.f32.mrb[0].mxu0
          %v3229 = vadd.f32 %v3133, %v3228
          %v3230 = vpop.f32.mrb[0].mxu0
          %3231 = vmatprep.mubr.bf16.mxu0 0
          %3232 = vmatmul.mubr.bf16.gmra.mrb[0].mxu0 %v3166
          %v3233 = vpop.f32.mrb[0].mxu0
          %v3234 = vadd.f32 %v3133, %v3233
          %v3235 = vpop.f32.mrb[0].mxu0
          %v3236 = vpop.f32.mrb[0].mxu0
          %v3237 = vadd.f32 %v3133, %v3236
          %v3238 = vpop.f32.mrb[0].mxu0
          %3239 = vmatprep.mubr.bf16.mxu0 0
          %3240 = vmatmul.mubr.bf16.gmra.mrb[0].mxu0 %v3169
          %v3241 = vpop.f32.mrb[0].mxu0
          %v3242 = vadd.f32 %v3133, %v3241
          %v3243 = vpop.f32.mrb[0].mxu0
          %v3244 = vpop.f32.mrb[0].mxu0
          %v3245 = vadd.f32 %v3133, %v3244
          %v3246 = vpop.f32.mrb[0].mxu0
          %3247 = vmatprep.mubr.bf16.mxu0 0
          %3248 = vmatmul.mubr.bf16.gmra.mrb[0].mxu0 %v3172
          %v3249 = vpop.f32.mrb[0].mxu0
          %v3250 = vadd.f32 %v3133, %v3249
          %v3251 = vpop.f32.mrb[0].mxu0
          %v3252 = vpop.f32.mrb[0].mxu0
          %v3253 = vadd.f32 %v3133, %v3252
          %v3254 = vpop.f32.mrb[0].mxu0
          %3255 = vmatprep.mubr.bf16.mxu0 0
          %3256 = vmatmul.mubr.bf16.gmra.mrb[0].mxu0 %v3175
          %v3257 = vpop.f32.mrb[0].mxu0
          %v3258 = vadd.f32 %v3133, %v3257
          %v3259 = vpop.f32.mrb[0].mxu0
          %v3260 = vpop.f32.mrb[0].mxu0
          %v3261 = vadd.f32 %v3133, %v3260
          %v3262 = vpop.f32.mrb[0].mxu0
          %3263 = vmatprep.mubr.bf16.mxu0 0
          %3264 = vmatmul.mubr.bf16.gmra.mrb[0].mxu0 %v3178
          %v3265 = vpop.f32.mrb[0].mxu0
          %v3266 = vadd.f32 %v3133, %v3265
          %v3267 = vpop.f32.mrb[0].mxu0
          %v3268 = vpop.f32.mrb[0].mxu0
          %v3269 = vadd.f32 %v3133, %v3268
          %v3270 = vpop.f32.mrb[0].mxu0
          %3271 = vmatprep.mubr.bf16.mxu0 0
          %3272 = vmatmul.mubr.bf16.gmra.mrb[0].mxu0 %v3181
          %v3273 = vpop.f32.mrb[0].mxu0
          %v3274 = vadd.f32 %v3133, %v3273
          %v3275 = vpop.f32.mrb[0].mxu0
          %v3276 = vpop.f32.mrb[0].mxu0
          %v3277 = vadd.f32 %v3133, %v3276
          %v3278 = vpop.f32.mrb[0].mxu0
          %3279 = vdwg.mxu0
          %3280 = vxpose.xlu0.b32.start [1/16] %v3218, 128
          %3281 = vxpose.xlu0.b32.cont [2/16] %v3221, 128
          %3282 = vxpose.xlu0.b32.cont [3/16] %v3226, 128
          %3283 = vxpose.xlu0.b32.cont [4/16] %v3229, 128
          %3284 = vxpose.xlu0.b32.cont [5/16] %v3234, 128
          %3285 = vxpose.xlu0.b32.cont [6/16] %v3237, 128
          %3286 = vxpose.xlu0.b32.cont [7/16] %v3242, 128
          %3287 = vxpose.xlu0.b32.cont [8/16] %v3245, 128
          %3288 = vxpose.xlu0.b32.cont [9/16] %v3250, 128
          %3289 = vxpose.xlu0.b32.cont [10/16] %v3253, 128
          %3290 = vxpose.xlu0.b32.cont [11/16] %v3258, 128
          %3291 = vxpose.xlu0.b32.cont [12/16] %v3261, 128
          %3292 = vxpose.xlu0.b32.cont [13/16] %v3266, 128
          %3293 = vxpose.xlu0.b32.cont [14/16] %v3269, 128
          %3294 = vxpose.xlu0.b32.cont [15/16] %v3274, 128
          %3295 = vxpose.xlu0.b32.end [16/16] %v3277, 128
          %v3296 = vpop.trf.xlu0
          %v3297 = vpop.trf.xlu0
          %v3298 = vpop.trf.xlu0
          %v3299 = vpop.trf.xlu0
          %v3300 = vpop.trf.xlu0
          %v3301 = vpop.trf.xlu0
          %v3302 = vpop.trf.xlu0
          %v3303 = vpop.trf.xlu0
          %v3304 = vpop.trf.xlu0
          %v3305 = vpop.trf.xlu0
          %v3306 = vpop.trf.xlu0
          %v3307 = vpop.trf.xlu0
          %v3308 = vpop.trf.xlu0
          %v3309 = vpop.trf.xlu0
          %v3310 = vpop.trf.xlu0
          %v3311 = vpop.trf.xlu0
          %3312 = vst [vmem:[%s553] sm:$0xff] %v3296
          %3313 = vst [vmem:[%s553 + $0x8] sm:$0xff] %v3297
          %3314 = vst [vmem:[%s553 + $0x10] sm:$0xff] %v3298
          %3315 = vst [vmem:[%s553 + $0x18] sm:$0xff] %v3299
        $region92: #{lite_mla_forward.1} parent=59 // pred_fallthru
          _
        %s3316 = sand.u32 %s314, 1
        %s3317 = sand.u32 %s314, 1
        %s3318 = smul.addr %s3317, 32
        %s3319 = scalar_lea.vmem [#allocation13], %s3318
        // Predicated region
        $region97: #{lite_mla_forward.1} parent=59 // pred_check
          %p3320 = pneg %p324
        $region98: #{lite_mla_forward.1} parent=59 // pred_check_branch
          %3322 = sbr.rel (%p3320) target = $region100
        $region99: #{lite_mla_forward.1} parent=59 // pred_region
          %s3323 = smul.u32 %s35, %s34
          %s3324 = smul.addr %s33, 8
          %s3325 = sadd.s32 %s3323, %s3324
          %s3326 = smul.addr %s3325, 8
          %s3327 = scalar_lea.vmem %s10, %s3326
          // Predicated region
          $region101: #{lite_mla_forward.1} parent=99 // pred_check
            _
          $region102: #{lite_mla_forward.1} parent=99 // pred_check_branch
            %3329 = sbr.rel (0) target = $region104
          $region103: #{lite_mla_forward.1} parent=99 // pred_region
            // Predicated region
            $region105: #{lite_mla_forward.1} parent=103 // pred_check
              _
            $region106: #{lite_mla_forward.1} parent=103 // pred_check_branch
              %3331 = sbr.rel (0) target = $region108
            $region107: #{lite_mla_forward.1} parent=103 // pred_region
              // Predicated region
              $region120: #{lite_mla_forward.1} parent=107 // pred_check
                _
              $region121: #{lite_mla_forward.1} parent=107 // pred_check_branch
                %3352 = sbr.rel (0) target = $region123
              $region122: #{lite_mla_forward.1} parent=107 // pred_region
                loop: start=0, step=1, limit=1
                $region124: #{lite_mla_forward.1} parent=122 // loop_pre_header
                  _
                $region125: #{lite_mla_forward.1} parent=122 // loop_header
                  %s3354 = sphi 0, %s3358
                  %p3355 = scmp.ge.s32.totalorder %s3354, 1
                  %s3359 = sphi %s3319, %s3319
                  %s3360 = sphi %s3327, %s3327
                $region126: #{lite_mla_forward.1} parent=122 // loop_header_branch
                  %3357 = sbr.rel (%p3355) target = $region130
                $region127: #{lite_mla_forward.1} parent=122 // loop_body
                  %v3361 = vld [vmem:[%s3359] sm:$0xff]
                  %3362 = vst [vmem:[%s3360] sm:$0xff] %v3361
                  %v3363 = vld [vmem:[%s3359 + $0x8] sm:$0xff]
                  %3364 = vst [vmem:[%s3360 + $0x10] sm:$0xff] %v3363
                  %v3365 = vld [vmem:[%s3359 + $0x10] sm:$0xff]
                  %3366 = vst [vmem:[%s3360 + $0x20] sm:$0xff] %v3365
                  %v3367 = vld [vmem:[%s3359 + $0x18] sm:$0xff]
                  %3368 = vst [vmem:[%s3360 + $0x30] sm:$0xff] %v3367
                $region128: #{lite_mla_forward.1} parent=122 // loop_footer
                  %s3358 = sadd.s32 1, %s3354
                $region129: #{lite_mla_forward.1} parent=122 // loop_footer_branch
                  %3353 = sbr.rel target = $region125
                $region130: #{lite_mla_forward.1} parent=122 // loop_exit
                  _
              $region123: #{lite_mla_forward.1} parent=107 // pred_fallthru
                _
              // Predicated region
              $region131: #{lite_mla_forward.1} parent=107 // pred_check
                _
              $region132: #{lite_mla_forward.1} parent=107 // pred_check_branch
                %3370 = sbr.rel target = $region134
              $region133: #{lite_mla_forward.1} parent=107 // pred_region
                _
              $region134: #{lite_mla_forward.1} parent=107 // pred_fallthru
                _
            $region108: #{lite_mla_forward.1} parent=103 // pred_fallthru
              _
            // Predicated region
            $region109: #{lite_mla_forward.1} parent=103 // pred_check
              _
            $region110: #{lite_mla_forward.1} parent=103 // pred_check_branch
              %3333 = sbr.rel target = $region112
            $region111: #{lite_mla_forward.1} parent=103 // pred_region
              loop: start=0, step=1, limit=1
              $region113: #{lite_mla_forward.1} parent=111 // loop_pre_header
                _
              $region114: #{lite_mla_forward.1} parent=111 // loop_header
                %s3336 = sphi 0, %s3340
                %p3337 = scmp.ge.s32.totalorder %s3336, 1
                %s3341 = sphi %s3319, %s3319
                %s3342 = sphi %s3327, %s3327
              $region115: #{lite_mla_forward.1} parent=111 // loop_header_branch
                %3339 = sbr.rel (%p3337) target = $region119
              $region116: #{lite_mla_forward.1} parent=111 // loop_body
                %v3343 = vld [vmem:[%s3341] sm:$0xff]
                %3344 = vst [vmem:[%s3342] sm:$0xff] %v3343
                %v3345 = vld [vmem:[%s3341 + $0x8] sm:$0xff]
                %3346 = vst [vmem:[%s3342 + $0x10] sm:$0xff] %v3345
                %v3347 = vld [vmem:[%s3341 + $0x10] sm:$0xff]
                %3348 = vst [vmem:[%s3342 + $0x20] sm:$0xff] %v3347
                %v3349 = vld [vmem:[%s3341 + $0x18] sm:$0xff]
                %3350 = vst [vmem:[%s3342 + $0x30] sm:$0xff] %v3349
              $region117: #{lite_mla_forward.1} parent=111 // loop_footer
                %s3340 = sadd.s32 1, %s3336
              $region118: #{lite_mla_forward.1} parent=111 // loop_footer_branch
                %3335 = sbr.rel target = $region114
              $region119: #{lite_mla_forward.1} parent=111 // loop_exit
                _
            $region112: #{lite_mla_forward.1} parent=103 // pred_fallthru
              _
          $region104: #{lite_mla_forward.1} parent=99 // pred_fallthru
            _
          %3371 = vnop
        $region100: #{lite_mla_forward.1} parent=59 // pred_fallthru
          _
      $region60: #{lite_mla_forward.1} parent=5 // pred_fallthru
        _
      %p3372 = scmp.le.s32.totalorder 2, %s23
      // Predicated region
      $region135: #{lite_mla_forward.1} parent=5 // pred_check
        %p3373 = pneg %p3372
      $region136: #{lite_mla_forward.1} parent=5 // pred_check_branch
        %3375 = sbr.rel (%p3373) target = $region138
      $region137: #{lite_mla_forward.1} parent=5 // pred_region
        %s3376 = ssub.s32 %s23, 2
        // Predicated region
        $region139: #{lite_mla_forward.1} parent=137 // pred_check
          %p3377 = pneg %p330
        $region140: #{lite_mla_forward.1} parent=137 // pred_check_branch
          %3379 = sbr.rel (%p3377) target = $region142
        $region141: #{lite_mla_forward.1} parent=137 // pred_region
          %s3380 = sand.u32 %s315, 1
          %s3381 = sand.u32 %s315, 1
          %s3382 = smul.addr %s3381, 32
          %s3383 = scalar_lea.vmem [#allocation13], %s3382
        $region142: #{lite_mla_forward.1} parent=137 // pred_fallthru
          _
      $region138: #{lite_mla_forward.1} parent=5 // pred_fallthru
        _
    $region6: #{lite_mla_forward.1} parent=1 // loop_footer
      %s27 = sadd.s32 1, %s23
    $region7: #{lite_mla_forward.1} parent=1 // loop_footer_branch
      %22 = sbr.rel target = $region3
    $region8: #{lite_mla_forward.1} parent=1 // loop_exit
      _
    %3384 = vsyncpa [#allocation6], 1
    %s3385 = scalar_lea.sflag [#allocation6], 1
    %3386 = vsyncpa %s3385, 1
    %3387 = vsyncpa [#allocation8], 1
    %s3388 = scalar_lea.sflag [#allocation8], 1
    %3389 = vsyncpa %s3388, 1
    %3390 = vsyncpa [#allocation11], 1

</llo_original>
